<compile_context>
chip_gen: v6e
topology: v6e:2x2x1
jax: 0.10.0
libtpu: 0.0.40
codegen_flags: <defaults>
</compile_context>

<pallas_src>
import functools

import numpy as np
import jax
import jax.numpy as jnp
from jax.experimental import pallas as pl
from jax.experimental.pallas import tpu as pltpu

DEPTH = 1
HAS_RESIDUAL = True
LANE = 128
N_CLASSES = 200
N_CLASSES_PAD = 256
NEG_INF = -1e30


def _round_up(x, m):
    return ((x + m - 1) // m) * m


# ----------------------------- trace-time constant builders ------------------

def _pool_matrix(h, w, k, stride, pad):
    """AvgPool2d as a (Ho*Wo, H*W) matrix (count_include_pad=True; 1/k^2 folded in)."""
    ho = (h + 2 * pad - k) // stride + 1
    wo = (w + 2 * pad - k) // stride + 1
    mat = np.zeros((ho * wo, h * w), np.float32)
    inv = 1.0 / float(k * k)
    for a in range(ho):
        for b in range(wo):
            for r in range(a * stride - pad, a * stride - pad + k):
                for s in range(b * stride - pad, b * stride - pad + k):
                    if 0 <= r < h and 0 <= s < w:
                        mat[a * wo + b, r * w + s] = inv
    return ho, wo, jnp.asarray(mat)


def _shift_matrices(h, w):
    """Nine (H*W, H*W) 0/1 matrices; G[t] @ x_flat gathers 3x3 tap t (zero at the boundary)."""
    m = h * w
    mats = np.zeros((9, m, m), np.float32)
    t = 0
    for di in (-1, 0, 1):
        for dj in (-1, 0, 1):
            for r in range(h):
                for s in range(w):
                    rr, ss = r + di, s + dj
                    if 0 <= rr < h and 0 <= ss < w:
                        mats[t, r * w + s, rr * w + ss] = 1.0
            t += 1
    return jnp.asarray(mats)


# ----------------------------- fused kernel ----------------------------------

def _conv3x3_relu(x, gm_ref, w_ref, b_ref):
    """3x3 / stride-1 / pad-1 conv + ReLU on a row-major flattened (H*W, C) f32 tile.
    Patches are gathered with constant 0/1 shift matrices (exact), and the 9 taps are folded
    into the contraction dim -> ONE (H*W, 9C) x (9C, C) MXU matmul with f32 accumulation."""
    slabs = [jnp.dot(gm_ref[t], x, preferred_element_type=jnp.float32)
             for t in range(gm_ref.shape[0])]
    col = jnp.concatenate(slabs, axis=-1).astype(jnp.bfloat16)        # (H*W, 9C)
    y = jnp.dot(col, w_ref[...], preferred_element_type=jnp.float32)
    return jnp.maximum(y + b_ref[...], 0.0)


def _fused_forward_kernel(col_ref, pm_ref, gm_ref, ws_ref, bs_ref,
                          w1_ref, b1_ref, w2_ref, b2_ref, w3_ref, b3_ref,
                          wf_ref, bf_ref, o_ref, *, gap_scale, has_residual):
    # Stem: Conv2d(3, 64, k7, s2, p3) as one matmul over wrapper-built patches, + bias + ReLU.
    y = jnp.dot(col_ref[...], ws_ref[...], preferred_element_type=jnp.float32)
    y = jnp.maximum(y + bs_ref[...], 0.0)                              # (Hc*Wc, C) f32
    # AvgPool2d(3, 2, 1), count_include_pad=True: one constant-matrix matmul (1/9 folded in).
    x = jnp.dot(pm_ref[...], y, preferred_element_type=jnp.float32)   # (H*W, C) f32
    # ResidualBlock: conv3x3+ReLU -> conv3x3+ReLU -> (+x) -> ReLU (matches the reference).
    h1 = _conv3x3_relu(x, gm_ref, w1_ref, b1_ref)
    h2 = _conv3x3_relu(h1, gm_ref, w2_ref, b2_ref)
    if has_residual:
        h2 = h2 + x
    x = jnp.maximum(h2, 0.0)
    # Conv2d(C, 2C, kernel_size=1): plain matmul, no activation.
    z = jnp.dot(x.astype(jnp.bfloat16), w3_ref[...],
                preferred_element_type=jnp.float32) + b3_ref[...]      # (H*W, 2C) f32
    # AvgPool2d(2,2,1) + AdaptiveAvgPool2d(1,1): stride == kernel -> disjoint windows, and no
    # nonlinearity in between, so the pair is exactly a scaled sum over all spatial positions.
    feat = jnp.sum(z, axis=0, keepdims=True) * gap_scale               # (1, 2C) f32
    # Linear(2C, 200 padded to 256) + Softmax; padded classes carry bias -1e30 -> probability 0.
    logits = jnp.dot(feat.astype(jnp.bfloat16), wf_ref[...],
                     preferred_element_type=jnp.float32) + bf_ref[...]  # (1, 256) f32
    mx = jnp.max(logits, axis=-1, keepdims=True)
    e = jnp.exp(logits - mx)
    probs = e / jnp.sum(e, axis=-1, keepdims=True)
    # Lane-dense full-tile store; row 0 holds the result, the wrapper slices [:, 0, :200].
    o_ref[...] = jnp.broadcast_to(probs, o_ref.shape)


# ----------------------------- forward wrapper --------------------------------

def my_module_forward(x_nchw, prep):
    x = jnp.transpose(x_nchw, (0, 2, 3, 1)).astype(jnp.float32)        # NCHW -> NHWC
    n, h, w, cin = x.shape

    # Stem geometry + wrapper-side im2col for the stride-2 7x7 conv (tiny: (n, 64, 256) bf16).
    k0, s0, p0 = 7, 2, 3
    hc = (h + 2 * p0 - k0) // s0 + 1
    wc = (w + 2 * p0 - k0) // s0 + 1
    xpad = jnp.pad(x, ((0, 0), (p0, p0), (p0, p0), (0, 0)))
    slabs = [xpad[:, i:i + s0 * hc:s0, j:j + s0 * wc:s0, :]
             for i in range(k0) for j in range(k0)]
    col = jnp.concatenate(slabs, axis=-1).reshape(n, hc * wc, k0 * k0 * cin)
    k_stem = prep["stem_w"].shape[0]
    col = jnp.pad(col, ((0, 0), (0, 0), (0, k_stem - k0 * k0 * cin))).astype(jnp.bfloat16)

    # Static pooling / gather constants and head scale.
    h2, w2, pmat = _pool_matrix(hc, wc, 3, 2, 1)
    gmats = _shift_matrices(h2, w2)
    hp = (h2 + 2 - 2) // 2 + 1           # AvgPool2d(2,2,1) output height
    wp = (w2 + 2 - 2) // 2 + 1
    gap_scale = 1.0 / (4.0 * hp * wp)

    kernel = functools.partial(_fused_forward_kernel,
                               gap_scale=gap_scale, has_residual=HAS_RESIDUAL)

    def batch_spec(tail):
        return pl.BlockSpec((None,) + tuple(tail), lambda i: (i,) + (0,) * len(tail))

    def const_spec(arr):
        nd = arr.ndim
        return pl.BlockSpec(arr.shape, lambda i: (0,) * nd)

    consts = (pmat, gmats,
              prep["stem_w"], prep["stem_b"],
              prep["c1_w"], prep["c1_b"], prep["c2_w"], prep["c2_b"],
              prep["proj_w"], prep["proj_b"],
              prep["fc_w"], prep["fc_b"])

    out = pl.pallas_call(
        kernel,
        out_shape=jax.ShapeDtypeStruct((n, 8, N_CLASSES_PAD), jnp.float32),
        grid=(n,),
        in_specs=[batch_spec((hc * wc, k_stem))] + [const_spec(a) for a in consts],
        out_specs=batch_spec((8, N_CLASSES_PAD)),
        compiler_params=pltpu.CompilerParams(dimension_semantics=("parallel",)),
    )(col, *consts)
    return out[:, 0, :N_CLASSES]


# ----------------------------- parameters -------------------------------------

def init_params(key):
    """Torch-layout float32 parameters (Conv2d: (Cout, Cin, KH, KW); Linear: (out, in))."""
    def conv_init(key, cout, cin, kh, kw):
        k1, k2 = jax.random.split(key)
        fan_in = cin * kh * kw
        wgt = jax.random.normal(k1, (cout, cin, kh, kw), jnp.float32) / jnp.sqrt(fan_in)
        b = 0.01 * jax.random.normal(k2, (cout,), jnp.float32)
        return wgt, b

    ks = jax.random.split(key, 5)
    c = 64
    p = {}
    p["stem_w"], p["stem_b"] = conv_init(ks[0], c, 3, 7, 7)
    p["c1_w"], p["c1_b"] = conv_init(ks[1], c, c, 3, 3)
    p["c2_w"], p["c2_b"] = conv_init(ks[2], c, c, 3, 3)
    p["proj_w"], p["proj_b"] = conv_init(ks[3], 2 * c, c, 1, 1)
    kfw, kfb = jax.random.split(ks[4])
    p["fc_w"] = jax.random.normal(kfw, (N_CLASSES, 2 * c), jnp.float32) / jnp.sqrt(2 * c)
    p["fc_b"] = 0.01 * jax.random.normal(kfb, (N_CLASSES,), jnp.float32)
    return p


def prepare_params(p):
    """Torch layouts -> kernel layouts: conv taps folded into the contraction dim, channels
    zero-padded to 128 lanes, bf16 matmul operands, f32 biases, classifier padded to 256."""
    def fold_conv_w(w_oihw, cin_per_tap, k_total, cout_pad):
        co, ci, kh, kw = w_oihw.shape
        wgt = jnp.transpose(w_oihw, (2, 3, 1, 0))                      # (kh, kw, cin, cout)
        wgt = jnp.pad(wgt, ((0, 0), (0, 0), (0, cin_per_tap - ci), (0, cout_pad - co)))
        wgt = wgt.reshape(kh * kw * cin_per_tap, cout_pad)
        wgt = jnp.pad(wgt, ((0, k_total - wgt.shape[0]), (0, 0)))
        return wgt.astype(jnp.bfloat16)

    def fold_bias(b, cout_pad):
        return jnp.pad(b, (0, cout_pad - b.shape[0])).reshape(1, cout_pad).astype(jnp.float32)

    c = p["c1_w"].shape[0]                                   # 64
    cpad = _round_up(c, LANE)                                # 128
    c2pad = _round_up(p["proj_w"].shape[0], LANE)            # 128
    k_stem = _round_up(7 * 7 * p["stem_w"].shape[1], LANE)   # 49*3 -> 256

    prep = {
        "stem_w": fold_conv_w(p["stem_w"], p["stem_w"].shape[1], k_stem, cpad),
        "stem_b": fold_bias(p["stem_b"], cpad),
        "c1_w": fold_conv_w(p["c1_w"], cpad, 9 * cpad, cpad),
        "c1_b": fold_bias(p["c1_b"], cpad),
        "c2_w": fold_conv_w(p["c2_w"], cpad, 9 * cpad, cpad),
        "c2_b": fold_bias(p["c2_b"], cpad),
        "proj_w": fold_conv_w(p["proj_w"], cpad, cpad, c2pad),
        "proj_b": fold_bias(p["proj_b"], c2pad),
    }
    wfc = jnp.transpose(p["fc_w"])                                       # (2c, 200)
    wfc = jnp.pad(wfc, ((0, c2pad - wfc.shape[0]), (0, N_CLASSES_PAD - N_CLASSES)))
    bfc = jnp.concatenate([p["fc_b"],
                           jnp.full((N_CLASSES_PAD - N_CLASSES,), NEG_INF, jnp.float32)])
    prep["fc_w"] = wfc.astype(jnp.bfloat16)
    prep["fc_b"] = bfc.reshape(1, N_CLASSES_PAD)
    return prep


# ----------------------------- main --------------------------------------------

if __name__ == "__main__":
    key = jax.random.PRNGKey(0)
    kx, kp = jax.random.split(key)
    # Small input consistent with the module (in_channel=3): batch=2, 3x16x16, NCHW.
    x = jax.random.normal(kx, (2, 3, 16, 16), jnp.float32)
    params = init_params(kp)
    prep = prepare_params(params)

    fwd = jax.jit(my_module_forward)
    out = jax.block_until_ready(fwd(x, prep))
    assert out.shape == (2, N_CLASSES)
    assert bool(jnp.all(jnp.isfinite(out)))
    # Softmax rows sum to ~1 (padded classes carry -1e30 logits -> exactly 0 probability).
    assert bool(jnp.all(jnp.abs(jnp.sum(out, axis=1) - 1.0) < 1e-4))
    print("KERNEL_OK")
</pallas_src>

<mosaic_0001>
module attributes {stable_mosaic.version = 11 : i64} {
  func.func @_fused_forward_kernel(%arg0: i32, %arg1: memref<1x64x256xbf16, #tpu.memory_space<vmem>>, %arg2: memref<16x64xf32, #tpu.memory_space<vmem>>, %arg3: memref<9x16x16xf32, #tpu.memory_space<vmem>>, %arg4: memref<256x128xbf16, #tpu.memory_space<vmem>>, %arg5: memref<1x128xf32, #tpu.memory_space<vmem>>, %arg6: memref<1152x128xbf16, #tpu.memory_space<vmem>>, %arg7: memref<1x128xf32, #tpu.memory_space<vmem>>, %arg8: memref<1152x128xbf16, #tpu.memory_space<vmem>>, %arg9: memref<1x128xf32, #tpu.memory_space<vmem>>, %arg10: memref<128x128xbf16, #tpu.memory_space<vmem>>, %arg11: memref<1x128xf32, #tpu.memory_space<vmem>>, %arg12: memref<128x256xbf16, #tpu.memory_space<vmem>>, %arg13: memref<1x256xf32, #tpu.memory_space<vmem>>, %arg14: memref<1x8x256xf32, #tpu.memory_space<vmem>>) attributes {dimension_semantics = [#tpu.dimension_semantics<parallel>], iteration_bounds = array<i64: 2>, scalar_prefetch = 0 : i64, scratch_operands = 0 : i64, tpu.core_type = #tpu.core_type<tc>, window_params = [{transform_indices = @transform_0, window_bounds = array<i64: 1, 64, 256>}, {pipeline_mode = #tpu.pipeline_mode<synchronous>, transform_indices = @transform_1, window_bounds = array<i64: 16, 64>}, {pipeline_mode = #tpu.pipeline_mode<synchronous>, transform_indices = @transform_2, window_bounds = array<i64: 9, 16, 16>}, {pipeline_mode = #tpu.pipeline_mode<synchronous>, transform_indices = @transform_3, window_bounds = array<i64: 256, 128>}, {pipeline_mode = #tpu.pipeline_mode<synchronous>, transform_indices = @transform_4, window_bounds = array<i64: 1, 128>}, {pipeline_mode = #tpu.pipeline_mode<synchronous>, transform_indices = @transform_5, window_bounds = array<i64: 1152, 128>}, {pipeline_mode = #tpu.pipeline_mode<synchronous>, transform_indices = @transform_6, window_bounds = array<i64: 1, 128>}, {pipeline_mode = #tpu.pipeline_mode<synchronous>, transform_indices = @transform_7, window_bounds = array<i64: 1152, 128>}, {pipeline_mode = #tpu.pipeline_mode<synchronous>, transform_indices = @transform_8, window_bounds = array<i64: 1, 128>}, {pipeline_mode = #tpu.pipeline_mode<synchronous>, transform_indices = @transform_9, window_bounds = array<i64: 128, 128>}, {pipeline_mode = #tpu.pipeline_mode<synchronous>, transform_indices = @transform_10, window_bounds = array<i64: 1, 128>}, {pipeline_mode = #tpu.pipeline_mode<synchronous>, transform_indices = @transform_11, window_bounds = array<i64: 128, 256>}, {pipeline_mode = #tpu.pipeline_mode<synchronous>, transform_indices = @transform_12, window_bounds = array<i64: 1, 256>}, {transform_indices = @transform_13, window_bounds = array<i64: 1, 8, 256>}]} {
    %c0 = arith.constant 0 : index
    %c0_0 = arith.constant 0 : index
    %c0_1 = arith.constant 0 : index
    %0 = vector.load %arg1[%c0, %c0_0, %c0_1] : memref<1x64x256xbf16, #tpu.memory_space<vmem>>, vector<1x64x256xbf16>
    %1 = vector.shape_cast %0 : vector<1x64x256xbf16> to vector<64x256xbf16>
    %c0_2 = arith.constant 0 : index
    %c0_3 = arith.constant 0 : index
    %2 = vector.load %arg4[%c0_2, %c0_3] : memref<256x128xbf16, #tpu.memory_space<vmem>>, vector<256x128xbf16>
    %cst = arith.constant dense<0.000000e+00> : vector<64x128xf32>
    %3 = tpu.matmul %1, %2, %cst {dimension_numbers = #tpu.dot_dimension_numbers<[1], [0], [0], [1], [0, 0, 1, 1], [], []>} : vector<64x256xbf16>, vector<256x128xbf16>, vector<64x128xf32> -> vector<64x128xf32>
    %c0_4 = arith.constant 0 : index
    %c0_5 = arith.constant 0 : index
    %4 = vector.load %arg5[%c0_4, %c0_5] : memref<1x128xf32, #tpu.memory_space<vmem>>, vector<1x128xf32>
    %5 = vector.broadcast %4 : vector<1x128xf32> to vector<64x128xf32>
    %6 = arith.addf %3, %5 : vector<64x128xf32>
    %cst_6 = arith.constant 0.000000e+00 : f32
    %7 = vector.broadcast %cst_6 : f32 to vector<64x128xf32>
    %8 = arith.maximumf %6, %7 : vector<64x128xf32>
    %c0_7 = arith.constant 0 : index
    %c0_8 = arith.constant 0 : index
    %9 = vector.load %arg2[%c0_7, %c0_8] : memref<16x64xf32, #tpu.memory_space<vmem>>, vector<16x64xf32>
    %cst_9 = arith.constant dense<0.000000e+00> : vector<16x128xf32>
    %10 = tpu.matmul %9, %8, %cst_9 {dimension_numbers = #tpu.dot_dimension_numbers<[1], [0], [0], [1], [0, 0, 1, 1], [], []>} : vector<16x64xf32>, vector<64x128xf32>, vector<16x128xf32> -> vector<16x128xf32>
    %c0_10 = arith.constant 0 : index
    %c0_11 = arith.constant 0 : index
    %c0_12 = arith.constant 0 : index
    %11 = vector.load %arg3[%c0_10, %c0_11, %c0_12] : memref<9x16x16xf32, #tpu.memory_space<vmem>>, vector<1x16x16xf32>
    %12 = vector.shape_cast %11 : vector<1x16x16xf32> to vector<16x16xf32>
    %cst_13 = arith.constant dense<0.000000e+00> : vector<16x128xf32>
    %13 = tpu.matmul %12, %10, %cst_13 {dimension_numbers = #tpu.dot_dimension_numbers<[1], [0], [0], [1], [0, 0, 1, 1], [], []>} : vector<16x16xf32>, vector<16x128xf32>, vector<16x128xf32> -> vector<16x128xf32>
    %c1 = arith.constant 1 : index
    %c0_14 = arith.constant 0 : index
    %c0_15 = arith.constant 0 : index
    %14 = vector.load %arg3[%c1, %c0_14, %c0_15] : memref<9x16x16xf32, #tpu.memory_space<vmem>>, vector<1x16x16xf32>
    %15 = vector.shape_cast %14 : vector<1x16x16xf32> to vector<16x16xf32>
    %cst_16 = arith.constant dense<0.000000e+00> : vector<16x128xf32>
    %16 = tpu.matmul %15, %10, %cst_16 {dimension_numbers = #tpu.dot_dimension_numbers<[1], [0], [0], [1], [0, 0, 1, 1], [], []>} : vector<16x16xf32>, vector<16x128xf32>, vector<16x128xf32> -> vector<16x128xf32>
    %c2 = arith.constant 2 : index
    %c0_17 = arith.constant 0 : index
    %c0_18 = arith.constant 0 : index
    %17 = vector.load %arg3[%c2, %c0_17, %c0_18] : memref<9x16x16xf32, #tpu.memory_space<vmem>>, vector<1x16x16xf32>
    %18 = vector.shape_cast %17 : vector<1x16x16xf32> to vector<16x16xf32>
    %cst_19 = arith.constant dense<0.000000e+00> : vector<16x128xf32>
    %19 = tpu.matmul %18, %10, %cst_19 {dimension_numbers = #tpu.dot_dimension_numbers<[1], [0], [0], [1], [0, 0, 1, 1], [], []>} : vector<16x16xf32>, vector<16x128xf32>, vector<16x128xf32> -> vector<16x128xf32>
    %c3 = arith.constant 3 : index
    %c0_20 = arith.constant 0 : index
    %c0_21 = arith.constant 0 : index
    %20 = vector.load %arg3[%c3, %c0_20, %c0_21] : memref<9x16x16xf32, #tpu.memory_space<vmem>>, vector<1x16x16xf32>
    %21 = vector.shape_cast %20 : vector<1x16x16xf32> to vector<16x16xf32>
    %cst_22 = arith.constant dense<0.000000e+00> : vector<16x128xf32>
    %22 = tpu.matmul %21, %10, %cst_22 {dimension_numbers = #tpu.dot_dimension_numbers<[1], [0], [0], [1], [0, 0, 1, 1], [], []>} : vector<16x16xf32>, vector<16x128xf32>, vector<16x128xf32> -> vector<16x128xf32>
    %c4 = arith.constant 4 : index
    %c0_23 = arith.constant 0 : index
    %c0_24 = arith.constant 0 : index
    %23 = vector.load %arg3[%c4, %c0_23, %c0_24] : memref<9x16x16xf32, #tpu.memory_space<vmem>>, vector<1x16x16xf32>
    %24 = vector.shape_cast %23 : vector<1x16x16xf32> to vector<16x16xf32>
    %cst_25 = arith.constant dense<0.000000e+00> : vector<16x128xf32>
    %25 = tpu.matmul %24, %10, %cst_25 {dimension_numbers = #tpu.dot_dimension_numbers<[1], [0], [0], [1], [0, 0, 1, 1], [], []>} : vector<16x16xf32>, vector<16x128xf32>, vector<16x128xf32> -> vector<16x128xf32>
    %c5 = arith.constant 5 : index
    %c0_26 = arith.constant 0 : index
    %c0_27 = arith.constant 0 : index
    %26 = vector.load %arg3[%c5, %c0_26, %c0_27] : memref<9x16x16xf32, #tpu.memory_space<vmem>>, vector<1x16x16xf32>
    %27 = vector.shape_cast %26 : vector<1x16x16xf32> to vector<16x16xf32>
    %cst_28 = arith.constant dense<0.000000e+00> : vector<16x128xf32>
    %28 = tpu.matmul %27, %10, %cst_28 {dimension_numbers = #tpu.dot_dimension_numbers<[1], [0], [0], [1], [0, 0, 1, 1], [], []>} : vector<16x16xf32>, vector<16x128xf32>, vector<16x128xf32> -> vector<16x128xf32>
    %c6 = arith.constant 6 : index
    %c0_29 = arith.constant 0 : index
    %c0_30 = arith.constant 0 : index
    %29 = vector.load %arg3[%c6, %c0_29, %c0_30] : memref<9x16x16xf32, #tpu.memory_space<vmem>>, vector<1x16x16xf32>
    %30 = vector.shape_cast %29 : vector<1x16x16xf32> to vector<16x16xf32>
    %cst_31 = arith.constant dense<0.000000e+00> : vector<16x128xf32>
    %31 = tpu.matmul %30, %10, %cst_31 {dimension_numbers = #tpu.dot_dimension_numbers<[1], [0], [0], [1], [0, 0, 1, 1], [], []>} : vector<16x16xf32>, vector<16x128xf32>, vector<16x128xf32> -> vector<16x128xf32>
    %c7 = arith.constant 7 : index
    %c0_32 = arith.constant 0 : index
    %c0_33 = arith.constant 0 : index
    %32 = vector.load %arg3[%c7, %c0_32, %c0_33] : memref<9x16x16xf32, #tpu.memory_space<vmem>>, vector<1x16x16xf32>
    %33 = vector.shape_cast %32 : vector<1x16x16xf32> to vector<16x16xf32>
    %cst_34 = arith.constant dense<0.000000e+00> : vector<16x128xf32>
    %34 = tpu.matmul %33, %10, %cst_34 {dimension_numbers = #tpu.dot_dimension_numbers<[1], [0], [0], [1], [0, 0, 1, 1], [], []>} : vector<16x16xf32>, vector<16x128xf32>, vector<16x128xf32> -> vector<16x128xf32>
    %c8 = arith.constant 8 : index
    %c0_35 = arith.constant 0 : index
    %c0_36 = arith.constant 0 : index
    %35 = vector.load %arg3[%c8, %c0_35, %c0_36] : memref<9x16x16xf32, #tpu.memory_space<vmem>>, vector<1x16x16xf32>
    %36 = vector.shape_cast %35 : vector<1x16x16xf32> to vector<16x16xf32>
    %cst_37 = arith.constant dense<0.000000e+00> : vector<16x128xf32>
    %37 = tpu.matmul %36, %10, %cst_37 {dimension_numbers = #tpu.dot_dimension_numbers<[1], [0], [0], [1], [0, 0, 1, 1], [], []>} : vector<16x16xf32>, vector<16x128xf32>, vector<16x128xf32> -> vector<16x128xf32>
    %38 = tpu.concatenate %13, %16, %19, %22, %25, %28, %31, %34, %37 in 1 : vector<16x128xf32>, vector<16x128xf32>, vector<16x128xf32>, vector<16x128xf32>, vector<16x128xf32>, vector<16x128xf32>, vector<16x128xf32>, vector<16x128xf32>, vector<16x128xf32> -> vector<16x1152xf32>
    %39 = arith.truncf %38 : vector<16x1152xf32> to vector<16x1152xbf16>
    %c0_38 = arith.constant 0 : index
    %c0_39 = arith.constant 0 : index
    %40 = vector.load %arg6[%c0_38, %c0_39] : memref<1152x128xbf16, #tpu.memory_space<vmem>>, vector<1152x128xbf16>
    %cst_40 = arith.constant dense<0.000000e+00> : vector<16x128xf32>
    %41 = tpu.matmul %39, %40, %cst_40 {dimension_numbers = #tpu.dot_dimension_numbers<[1], [0], [0], [1], [0, 0, 1, 1], [], []>} : vector<16x1152xbf16>, vector<1152x128xbf16>, vector<16x128xf32> -> vector<16x128xf32>
    %c0_41 = arith.constant 0 : index
    %c0_42 = arith.constant 0 : index
    %42 = vector.load %arg7[%c0_41, %c0_42] : memref<1x128xf32, #tpu.memory_space<vmem>>, vector<1x128xf32>
    %43 = vector.broadcast %42 : vector<1x128xf32> to vector<16x128xf32>
    %44 = arith.addf %41, %43 : vector<16x128xf32>
    %cst_43 = arith.constant 0.000000e+00 : f32
    %45 = vector.broadcast %cst_43 : f32 to vector<16x128xf32>
    %46 = arith.maximumf %44, %45 : vector<16x128xf32>
    %c0_44 = arith.constant 0 : index
    %c0_45 = arith.constant 0 : index
    %c0_46 = arith.constant 0 : index
    %47 = vector.load %arg3[%c0_44, %c0_45, %c0_46] : memref<9x16x16xf32, #tpu.memory_space<vmem>>, vector<1x16x16xf32>
    %48 = vector.shape_cast %47 : vector<1x16x16xf32> to vector<16x16xf32>
    %cst_47 = arith.constant dense<0.000000e+00> : vector<16x128xf32>
    %49 = tpu.matmul %48, %46, %cst_47 {dimension_numbers = #tpu.dot_dimension_numbers<[1], [0], [0], [1], [0, 0, 1, 1], [], []>} : vector<16x16xf32>, vector<16x128xf32>, vector<16x128xf32> -> vector<16x128xf32>
    %c1_48 = arith.constant 1 : index
    %c0_49 = arith.constant 0 : index
    %c0_50 = arith.constant 0 : index
    %50 = vector.load %arg3[%c1_48, %c0_49, %c0_50] : memref<9x16x16xf32, #tpu.memory_space<vmem>>, vector<1x16x16xf32>
    %51 = vector.shape_cast %50 : vector<1x16x16xf32> to vector<16x16xf32>
    %cst_51 = arith.constant dense<0.000000e+00> : vector<16x128xf32>
    %52 = tpu.matmul %51, %46, %cst_51 {dimension_numbers = #tpu.dot_dimension_numbers<[1], [0], [0], [1], [0, 0, 1, 1], [], []>} : vector<16x16xf32>, vector<16x128xf32>, vector<16x128xf32> -> vector<16x128xf32>
    %c2_52 = arith.constant 2 : index
    %c0_53 = arith.constant 0 : index
    %c0_54 = arith.constant 0 : index
    %53 = vector.load %arg3[%c2_52, %c0_53, %c0_54] : memref<9x16x16xf32, #tpu.memory_space<vmem>>, vector<1x16x16xf32>
    %54 = vector.shape_cast %53 : vector<1x16x16xf32> to vector<16x16xf32>
    %cst_55 = arith.constant dense<0.000000e+00> : vector<16x128xf32>
    %55 = tpu.matmul %54, %46, %cst_55 {dimension_numbers = #tpu.dot_dimension_numbers<[1], [0], [0], [1], [0, 0, 1, 1], [], []>} : vector<16x16xf32>, vector<16x128xf32>, vector<16x128xf32> -> vector<16x128xf32>
    %c3_56 = arith.constant 3 : index
    %c0_57 = arith.constant 0 : index
    %c0_58 = arith.constant 0 : index
    %56 = vector.load %arg3[%c3_56, %c0_57, %c0_58] : memref<9x16x16xf32, #tpu.memory_space<vmem>>, vector<1x16x16xf32>
    %57 = vector.shape_cast %56 : vector<1x16x16xf32> to vector<16x16xf32>
    %cst_59 = arith.constant dense<0.000000e+00> : vector<16x128xf32>
    %58 = tpu.matmul %57, %46, %cst_59 {dimension_numbers = #tpu.dot_dimension_numbers<[1], [0], [0], [1], [0, 0, 1, 1], [], []>} : vector<16x16xf32>, vector<16x128xf32>, vector<16x128xf32> -> vector<16x128xf32>
    %c4_60 = arith.constant 4 : index
    %c0_61 = arith.constant 0 : index
    %c0_62 = arith.constant 0 : index
    %59 = vector.load %arg3[%c4_60, %c0_61, %c0_62] : memref<9x16x16xf32, #tpu.memory_space<vmem>>, vector<1x16x16xf32>
    %60 = vector.shape_cast %59 : vector<1x16x16xf32> to vector<16x16xf32>
    %cst_63 = arith.constant dense<0.000000e+00> : vector<16x128xf32>
    %61 = tpu.matmul %60, %46, %cst_63 {dimension_numbers = #tpu.dot_dimension_numbers<[1], [0], [0], [1], [0, 0, 1, 1], [], []>} : vector<16x16xf32>, vector<16x128xf32>, vector<16x128xf32> -> vector<16x128xf32>
    %c5_64 = arith.constant 5 : index
    %c0_65 = arith.constant 0 : index
    %c0_66 = arith.constant 0 : index
    %62 = vector.load %arg3[%c5_64, %c0_65, %c0_66] : memref<9x16x16xf32, #tpu.memory_space<vmem>>, vector<1x16x16xf32>
    %63 = vector.shape_cast %62 : vector<1x16x16xf32> to vector<16x16xf32>
    %cst_67 = arith.constant dense<0.000000e+00> : vector<16x128xf32>
    %64 = tpu.matmul %63, %46, %cst_67 {dimension_numbers = #tpu.dot_dimension_numbers<[1], [0], [0], [1], [0, 0, 1, 1], [], []>} : vector<16x16xf32>, vector<16x128xf32>, vector<16x128xf32> -> vector<16x128xf32>
    %c6_68 = arith.constant 6 : index
    %c0_69 = arith.constant 0 : index
    %c0_70 = arith.constant 0 : index
    %65 = vector.load %arg3[%c6_68, %c0_69, %c0_70] : memref<9x16x16xf32, #tpu.memory_space<vmem>>, vector<1x16x16xf32>
    %66 = vector.shape_cast %65 : vector<1x16x16xf32> to vector<16x16xf32>
    %cst_71 = arith.constant dense<0.000000e+00> : vector<16x128xf32>
    %67 = tpu.matmul %66, %46, %cst_71 {dimension_numbers = #tpu.dot_dimension_numbers<[1], [0], [0], [1], [0, 0, 1, 1], [], []>} : vector<16x16xf32>, vector<16x128xf32>, vector<16x128xf32> -> vector<16x128xf32>
    %c7_72 = arith.constant 7 : index
    %c0_73 = arith.constant 0 : index
    %c0_74 = arith.constant 0 : index
    %68 = vector.load %arg3[%c7_72, %c0_73, %c0_74] : memref<9x16x16xf32, #tpu.memory_space<vmem>>, vector<1x16x16xf32>
    %69 = vector.shape_cast %68 : vector<1x16x16xf32> to vector<16x16xf32>
    %cst_75 = arith.constant dense<0.000000e+00> : vector<16x128xf32>
    %70 = tpu.matmul %69, %46, %cst_75 {dimension_numbers = #tpu.dot_dimension_numbers<[1], [0], [0], [1], [0, 0, 1, 1], [], []>} : vector<16x16xf32>, vector<16x128xf32>, vector<16x128xf32> -> vector<16x128xf32>
    %c8_76 = arith.constant 8 : index
    %c0_77 = arith.constant 0 : index
    %c0_78 = arith.constant 0 : index
    %71 = vector.load %arg3[%c8_76, %c0_77, %c0_78] : memref<9x16x16xf32, #tpu.memory_space<vmem>>, vector<1x16x16xf32>
    %72 = vector.shape_cast %71 : vector<1x16x16xf32> to vector<16x16xf32>
    %cst_79 = arith.constant dense<0.000000e+00> : vector<16x128xf32>
    %73 = tpu.matmul %72, %46, %cst_79 {dimension_numbers = #tpu.dot_dimension_numbers<[1], [0], [0], [1], [0, 0, 1, 1], [], []>} : vector<16x16xf32>, vector<16x128xf32>, vector<16x128xf32> -> vector<16x128xf32>
    %74 = tpu.concatenate %49, %52, %55, %58, %61, %64, %67, %70, %73 in 1 : vector<16x128xf32>, vector<16x128xf32>, vector<16x128xf32>, vector<16x128xf32>, vector<16x128xf32>, vector<16x128xf32>, vector<16x128xf32>, vector<16x128xf32>, vector<16x128xf32> -> vector<16x1152xf32>
    %75 = arith.truncf %74 : vector<16x1152xf32> to vector<16x1152xbf16>
    %c0_80 = arith.constant 0 : index
    %c0_81 = arith.constant 0 : index
    %76 = vector.load %arg8[%c0_80, %c0_81] : memref<1152x128xbf16, #tpu.memory_space<vmem>>, vector<1152x128xbf16>
    %cst_82 = arith.constant dense<0.000000e+00> : vector<16x128xf32>
    %77 = tpu.matmul %75, %76, %cst_82 {dimension_numbers = #tpu.dot_dimension_numbers<[1], [0], [0], [1], [0, 0, 1, 1], [], []>} : vector<16x1152xbf16>, vector<1152x128xbf16>, vector<16x128xf32> -> vector<16x128xf32>
    %c0_83 = arith.constant 0 : index
    %c0_84 = arith.constant 0 : index
    %78 = vector.load %arg9[%c0_83, %c0_84] : memref<1x128xf32, #tpu.memory_space<vmem>>, vector<1x128xf32>
    %79 = vector.broadcast %78 : vector<1x128xf32> to vector<16x128xf32>
    %80 = arith.addf %77, %79 : vector<16x128xf32>
    %cst_85 = arith.constant 0.000000e+00 : f32
    %81 = vector.broadcast %cst_85 : f32 to vector<16x128xf32>
    %82 = arith.maximumf %80, %81 : vector<16x128xf32>
    %83 = arith.addf %82, %10 : vector<16x128xf32>
    %cst_86 = arith.constant 0.000000e+00 : f32
    %84 = vector.broadcast %cst_86 : f32 to vector<16x128xf32>
    %85 = arith.maximumf %83, %84 : vector<16x128xf32>
    %86 = arith.truncf %85 : vector<16x128xf32> to vector<16x128xbf16>
    %c0_87 = arith.constant 0 : index
    %c0_88 = arith.constant 0 : index
    %87 = vector.load %arg10[%c0_87, %c0_88] : memref<128x128xbf16, #tpu.memory_space<vmem>>, vector<128x128xbf16>
    %cst_89 = arith.constant dense<0.000000e+00> : vector<16x128xf32>
    %88 = tpu.matmul %86, %87, %cst_89 {dimension_numbers = #tpu.dot_dimension_numbers<[1], [0], [0], [1], [0, 0, 1, 1], [], []>} : vector<16x128xbf16>, vector<128x128xbf16>, vector<16x128xf32> -> vector<16x128xf32>
    %c0_90 = arith.constant 0 : index
    %c0_91 = arith.constant 0 : index
    %89 = vector.load %arg11[%c0_90, %c0_91] : memref<1x128xf32, #tpu.memory_space<vmem>>, vector<1x128xf32>
    %90 = vector.broadcast %89 : vector<1x128xf32> to vector<16x128xf32>
    %91 = arith.addf %88, %90 : vector<16x128xf32>
    %cst_92 = arith.constant dense<0.000000e+00> : vector<128xf32>
    %92 = vector.multi_reduction <add>, %91, %cst_92 [0] : vector<16x128xf32> to vector<128xf32>
    %93 = vector.shape_cast %92 : vector<128xf32> to vector<1x128xf32>
    %cst_93 = arith.constant 0.027777778 : f32
    %94 = vector.broadcast %cst_93 : f32 to vector<1x128xf32>
    %95 = arith.mulf %93, %94 : vector<1x128xf32>
    %96 = arith.truncf %95 : vector<1x128xf32> to vector<1x128xbf16>
    %c0_94 = arith.constant 0 : index
    %c0_95 = arith.constant 0 : index
    %97 = vector.load %arg12[%c0_94, %c0_95] : memref<128x256xbf16, #tpu.memory_space<vmem>>, vector<128x256xbf16>
    %cst_96 = arith.constant dense<0.000000e+00> : vector<1x256xf32>
    %98 = tpu.matmul %96, %97, %cst_96 {dimension_numbers = #tpu.dot_dimension_numbers<[1], [0], [0], [1], [0, 0, 1, 1], [], []>} : vector<1x128xbf16>, vector<128x256xbf16>, vector<1x256xf32> -> vector<1x256xf32>
    %c0_97 = arith.constant 0 : index
    %c0_98 = arith.constant 0 : index
    %99 = vector.load %arg13[%c0_97, %c0_98] : memref<1x256xf32, #tpu.memory_space<vmem>>, vector<1x256xf32>
    %100 = arith.addf %98, %99 : vector<1x256xf32>
    %cst_99 = arith.constant dense<0xFF800000> : vector<1xf32>
    %101 = vector.multi_reduction <maximumf>, %100, %cst_99 [1] : vector<1x256xf32> to vector<1xf32>
    %102 = vector.shape_cast %101 : vector<1xf32> to vector<1x1xf32>
    %103 = vector.broadcast %102 : vector<1x1xf32> to vector<1x256xf32>
    %104 = arith.subf %100, %103 : vector<1x256xf32>
    %105 = math.exp %104 : vector<1x256xf32>
    %cst_100 = arith.constant dense<0.000000e+00> : vector<1xf32>
    %106 = vector.multi_reduction <add>, %105, %cst_100 [1] : vector<1x256xf32> to vector<1xf32>
    %107 = vector.shape_cast %106 : vector<1xf32> to vector<1x1xf32>
    %108 = vector.broadcast %107 : vector<1x1xf32> to vector<1x256xf32>
    %109 = arith.divf %105, %108 : vector<1x256xf32>
    %110 = vector.shape_cast %109 : vector<1x256xf32> to vector<1x256xf32>
    %111 = vector.broadcast %110 : vector<1x256xf32> to vector<8x256xf32>
    %c0_101 = arith.constant 0 : index
    %c0_102 = arith.constant 0 : index
    %c0_103 = arith.constant 0 : index
    %112 = vector.load %arg14[%c0_101, %c0_102, %c0_103] : memref<1x8x256xf32, #tpu.memory_space<vmem>>, vector<1x8x256xf32>
    %113 = vector.shape_cast %112 : vector<1x8x256xf32> to vector<8x256xf32>
    %114 = vector.shape_cast %111 : vector<8x256xf32> to vector<1x8x256xf32>
    tpu.vector_store %arg14[%c0_101, %c0_102, %c0_103], %114 {strides = array<i32>} : memref<1x8x256xf32, #tpu.memory_space<vmem>>, vector<1x8x256xf32>,
    return
  }
  func.func @transform_0(%arg0: i32) -> (i32, i32, i32) {
    %c0_i32 = arith.constant 0 : i32
    %c0_i32_0 = arith.constant 0 : i32
    %c0_i32_1 = arith.constant 0 : i32
    return %arg0, %c0_i32, %c0_i32_0 : i32, i32, i32
  }
  func.func @transform_1(%arg0: i32) -> (i32, i32) {
    %c0_i32 = arith.constant 0 : i32
    %c0_i32_0 = arith.constant 0 : i32
    %c0_i32_1 = arith.constant 0 : i32
    return %c0_i32, %c0_i32_0 : i32, i32
  }
  func.func @transform_2(%arg0: i32) -> (i32, i32, i32) {
    %c0_i32 = arith.constant 0 : i32
    %c0_i32_0 = arith.constant 0 : i32
    %c0_i32_1 = arith.constant 0 : i32
    %c0_i32_2 = arith.constant 0 : i32
    return %c0_i32, %c0_i32_0, %c0_i32_1 : i32, i32, i32
  }
  func.func @transform_3(%arg0: i32) -> (i32, i32) {
    %c0_i32 = arith.constant 0 : i32
    %c0_i32_0 = arith.constant 0 : i32
    %c0_i32_1 = arith.constant 0 : i32
    return %c0_i32, %c0_i32_0 : i32, i32
  }
  func.func @transform_4(%arg0: i32) -> (i32, i32) {
    %c0_i32 = arith.constant 0 : i32
    %c0_i32_0 = arith.constant 0 : i32
    %c0_i32_1 = arith.constant 0 : i32
    return %c0_i32, %c0_i32_0 : i32, i32
  }
  func.func @transform_5(%arg0: i32) -> (i32, i32) {
    %c0_i32 = arith.constant 0 : i32
    %c0_i32_0 = arith.constant 0 : i32
    %c0_i32_1 = arith.constant 0 : i32
    return %c0_i32, %c0_i32_0 : i32, i32
  }
  func.func @transform_6(%arg0: i32) -> (i32, i32) {
    %c0_i32 = arith.constant 0 : i32
    %c0_i32_0 = arith.constant 0 : i32
    %c0_i32_1 = arith.constant 0 : i32
    return %c0_i32, %c0_i32_0 : i32, i32
  }
  func.func @transform_7(%arg0: i32) -> (i32, i32) {
    %c0_i32 = arith.constant 0 : i32
    %c0_i32_0 = arith.constant 0 : i32
    %c0_i32_1 = arith.constant 0 : i32
    return %c0_i32, %c0_i32_0 : i32, i32
  }
  func.func @transform_8(%arg0: i32) -> (i32, i32) {
    %c0_i32 = arith.constant 0 : i32
    %c0_i32_0 = arith.constant 0 : i32
    %c0_i32_1 = arith.constant 0 : i32
    return %c0_i32, %c0_i32_0 : i32, i32
  }
  func.func @transform_9(%arg0: i32) -> (i32, i32) {
    %c0_i32 = arith.constant 0 : i32
    %c0_i32_0 = arith.constant 0 : i32
    %c0_i32_1 = arith.constant 0 : i32
    return %c0_i32, %c0_i32_0 : i32, i32
  }
  func.func @transform_10(%arg0: i32) -> (i32, i32) {
    %c0_i32 = arith.constant 0 : i32
    %c0_i32_0 = arith.constant 0 : i32
    %c0_i32_1 = arith.constant 0 : i32
    return %c0_i32, %c0_i32_0 : i32, i32
  }
  func.func @transform_11(%arg0: i32) -> (i32, i32) {
    %c0_i32 = arith.constant 0 : i32
    %c0_i32_0 = arith.constant 0 : i32
    %c0_i32_1 = arith.constant 0 : i32
    return %c0_i32, %c0_i32_0 : i32, i32
  }
  func.func @transform_12(%arg0: i32) -> (i32, i32) {
    %c0_i32 = arith.constant 0 : i32
    %c0_i32_0 = arith.constant 0 : i32
    %c0_i32_1 = arith.constant 0 : i32
    return %c0_i32, %c0_i32_0 : i32, i32
  }
  func.func @transform_13(%arg0: i32) -> (i32, i32, i32) {
    %c0_i32 = arith.constant 0 : i32
    %c0_i32_0 = arith.constant 0 : i32
    %c0_i32_1 = arith.constant 0 : i32
    return %arg0, %c0_i32, %c0_i32_0 : i32, i32, i32
  }
}

</mosaic_0001>

<llo_original>
// kernel: my_module_forward.1
$region0: #{my_module_forward.1}
  #allocation0 [shape = 'u32[]', space=smem, size = 0x4, offset = 0x4, fixed_abs, tag = 'smem constant byte address 0x4 - core index']
  #allocation1 [shape = 'u32[144,128]{1,0:T(1,128)}', space=vmem, size = 0x12000, scoped, tag = 'internal scratch']
  %s0 = inlined_call_operand.vmem [shape: bf16[2,64,256], index: 0, kind: input, shape index: {}]
  %s1 = inlined_call_operand.vmem [shape: f32[16,64], index: 1, kind: input, shape index: {}]
  %s2 = inlined_call_operand.vmem [shape: f32[9,16,16], index: 2, kind: input, shape index: {}]
  %s3 = inlined_call_operand.vmem [shape: bf16[256,128], index: 3, kind: input, shape index: {}]
  %s4 = inlined_call_operand.vmem [shape: f32[1,128], index: 4, kind: input, shape index: {}]
  %s5 = inlined_call_operand.vmem [shape: bf16[1152,128], index: 5, kind: input, shape index: {}]
  %s6 = inlined_call_operand.vmem [shape: f32[1,128], index: 6, kind: input, shape index: {}]
  %s7 = inlined_call_operand.vmem [shape: bf16[1152,128], index: 7, kind: input, shape index: {}]
  %s8 = inlined_call_operand.vmem [shape: f32[1,128], index: 8, kind: input, shape index: {}]
  %s9 = inlined_call_operand.vmem [shape: bf16[128,128], index: 9, kind: input, shape index: {}]
  %s10 = inlined_call_operand.vmem [shape: f32[1,128], index: 10, kind: input, shape index: {}]
  %s11 = inlined_call_operand.vmem [shape: bf16[128,256], index: 11, kind: input, shape index: {}]
  %s12 = inlined_call_operand.vmem [shape: f32[1,256], index: 12, kind: input, shape index: {}]
  %s13 = inlined_call_operand.vmem [shape: f32[2,8,256], index: 13, kind: output, shape index: {}]
  %s14 = sld [smem:[#allocation0]]
  $region85: #{my_module_forward.1} parent=0
    _
  %s16 = ssub.s32 1, %s14
  %s17 = scalar_select 0, %s16, %s14
  loop: start=0, step=1, limit=4
  $region2: #{my_module_forward.1} parent=0 // loop_pre_header
    _
  $region3: #{my_module_forward.1} parent=0 // loop_header
    %s19 = sphi 0, %s23
    %p20 = scmp.ge.s32.totalorder %s19, 4
    %s29 = sphi 0, %s31
    %s32 = sphi 0, %s29
    %s33 = sphi 0, %s32
    %s49 = sphi 0, %s33
    %s53 = sphi 0, %s53
    %s55 = sphi 0, %s53
    %s56 = sphi 0, %s55
    %s70 = sphi 0, %s56
    %s74 = sphi 0, %s74
    %s76 = sphi 0, %s74
    %s77 = sphi 0, %s76
    %s91 = sphi 0, %s77
    %s95 = sphi 0, %s95
    %s97 = sphi 0, %s95
    %s98 = sphi 0, %s97
    %s112 = sphi 0, %s98
    %s116 = sphi 0, %s116
    %s118 = sphi 0, %s116
    %s119 = sphi 0, %s118
    %s133 = sphi 0, %s119
    %s137 = sphi 0, %s137
    %s139 = sphi 0, %s137
    %s140 = sphi 0, %s139
    %s154 = sphi 0, %s140
    %s158 = sphi 0, %s158
    %s160 = sphi 0, %s158
    %s161 = sphi 0, %s160
    %s175 = sphi 0, %s161
    %s179 = sphi 0, %s179
    %s181 = sphi 0, %s179
    %s182 = sphi 0, %s181
    %s196 = sphi 0, %s182
    %s200 = sphi 0, %s200
    %s202 = sphi 0, %s200
    %s203 = sphi 0, %s202
    %s217 = sphi 0, %s203
    %s221 = sphi 0, %s221
    %s223 = sphi 0, %s221
    %s224 = sphi 0, %s223
    %s238 = sphi 0, %s224
    %s242 = sphi 0, %s242
    %s244 = sphi 0, %s242
    %s245 = sphi 0, %s244
    %s259 = sphi 0, %s245
    %s263 = sphi 0, %s263
    %s265 = sphi 0, %s263
    %s266 = sphi 0, %s265
    %s280 = sphi 0, %s266
    %s284 = sphi 0, %s284
    %s286 = sphi 0, %s284
    %s287 = sphi 0, %s286
    %s301 = sphi 0, %s287
    %s307 = sphi 0, %s309
    %s310 = sphi 0, %s307
    %s311 = sphi 0, %s310
    %s327 = sphi 0, %s311
  $region4: #{my_module_forward.1} parent=0 // loop_header_branch
    %22 = sbr.rel (%p20) target = $region8
  $region5: #{my_module_forward.1} parent=0 // loop_body
    %s24 = ssub.s32 %s19, 1
    %s25 = ssub.s32 %s19, 2
    %s26 = sadd.s32 %s19, 1
    %s27 = ssub.s32 %s19, %s26
    %p28 = scmp.eq.s32.totalorder %s27, 0
    %s30 = sadd.s32 %s29, 1
    %s31 = scalar_select %p28, %s29, %s30
    %p34 = pneg %p28
    %p35 = scmp.eq.s32.totalorder %s19, 1
    %p36 = por %p34, %p35
    %p37 = scmp.ne.s32.totalorder %s29, %s32
    %p38 = scmp.eq.s32.totalorder %s19, 0
    %p39 = por %p37, %p38
    %p40 = scmp.ne.s32.totalorder %s29, %s32
    %p41 = scmp.eq.s32.totalorder %s24, 1
    %p42 = por %p40, %p41
    %p43 = scmp.ne.s32.totalorder %s32, %s33
    %p44 = scmp.eq.s32.totalorder %s24, 0
    %p45 = por %p43, %p44
    %p46 = scmp.ne.s32.totalorder %s32, %s33
    %p47 = scmp.eq.s32.totalorder %s25, 1
    %p48 = por %p46, %p47
    %p50 = scmp.ne.s32.totalorder %s33, %s49
    %p51 = scmp.eq.s32.totalorder %s25, 0
    %p52 = por %p50, %p51
    %s54 = sadd.s32 %s53, 1
    %p57 = scmp.eq.s32.totalorder %s19, 1
    %p58 = scmp.ne.s32.totalorder %s53, %s55
    %p59 = scmp.eq.s32.totalorder %s19, 0
    %p60 = por %p58, %p59
    %p61 = scmp.ne.s32.totalorder %s53, %s55
    %p62 = scmp.eq.s32.totalorder %s24, 1
    %p63 = por %p61, %p62
    %p64 = scmp.ne.s32.totalorder %s55, %s56
    %p65 = scmp.eq.s32.totalorder %s24, 0
    %p66 = por %p64, %p65
    %p67 = scmp.ne.s32.totalorder %s55, %s56
    %p68 = scmp.eq.s32.totalorder %s25, 1
    %p69 = por %p67, %p68
    %p71 = scmp.ne.s32.totalorder %s56, %s70
    %p72 = scmp.eq.s32.totalorder %s25, 0
    %p73 = por %p71, %p72
    %s75 = sadd.s32 %s74, 1
    %p78 = scmp.eq.s32.totalorder %s19, 1
    %p79 = scmp.ne.s32.totalorder %s74, %s76
    %p80 = scmp.eq.s32.totalorder %s19, 0
    %p81 = por %p79, %p80
    %p82 = scmp.ne.s32.totalorder %s74, %s76
    %p83 = scmp.eq.s32.totalorder %s24, 1
    %p84 = por %p82, %p83
    %p85 = scmp.ne.s32.totalorder %s76, %s77
    %p86 = scmp.eq.s32.totalorder %s24, 0
    %p87 = por %p85, %p86
    %p88 = scmp.ne.s32.totalorder %s76, %s77
    %p89 = scmp.eq.s32.totalorder %s25, 1
    %p90 = por %p88, %p89
    %p92 = scmp.ne.s32.totalorder %s77, %s91
    %p93 = scmp.eq.s32.totalorder %s25, 0
    %p94 = por %p92, %p93
    %s96 = sadd.s32 %s95, 1
    %p99 = scmp.eq.s32.totalorder %s19, 1
    %p100 = scmp.ne.s32.totalorder %s95, %s97
    %p101 = scmp.eq.s32.totalorder %s19, 0
    %p102 = por %p100, %p101
    %p103 = scmp.ne.s32.totalorder %s95, %s97
    %p104 = scmp.eq.s32.totalorder %s24, 1
    %p105 = por %p103, %p104
    %p106 = scmp.ne.s32.totalorder %s97, %s98
    %p107 = scmp.eq.s32.totalorder %s24, 0
    %p108 = por %p106, %p107
    %p109 = scmp.ne.s32.totalorder %s97, %s98
    %p110 = scmp.eq.s32.totalorder %s25, 1
    %p111 = por %p109, %p110
    %p113 = scmp.ne.s32.totalorder %s98, %s112
    %p114 = scmp.eq.s32.totalorder %s25, 0
    %p115 = por %p113, %p114
    %s117 = sadd.s32 %s116, 1
    %p120 = scmp.eq.s32.totalorder %s19, 1
    %p121 = scmp.ne.s32.totalorder %s116, %s118
    %p122 = scmp.eq.s32.totalorder %s19, 0
    %p123 = por %p121, %p122
    %p124 = scmp.ne.s32.totalorder %s116, %s118
    %p125 = scmp.eq.s32.totalorder %s24, 1
    %p126 = por %p124, %p125
    %p127 = scmp.ne.s32.totalorder %s118, %s119
    %p128 = scmp.eq.s32.totalorder %s24, 0
    %p129 = por %p127, %p128
    %p130 = scmp.ne.s32.totalorder %s118, %s119
    %p131 = scmp.eq.s32.totalorder %s25, 1
    %p132 = por %p130, %p131
    %p134 = scmp.ne.s32.totalorder %s119, %s133
    %p135 = scmp.eq.s32.totalorder %s25, 0
    %p136 = por %p134, %p135
    %s138 = sadd.s32 %s137, 1
    %p141 = scmp.eq.s32.totalorder %s19, 1
    %p142 = scmp.ne.s32.totalorder %s137, %s139
    %p143 = scmp.eq.s32.totalorder %s19, 0
    %p144 = por %p142, %p143
    %p145 = scmp.ne.s32.totalorder %s137, %s139
    %p146 = scmp.eq.s32.totalorder %s24, 1
    %p147 = por %p145, %p146
    %p148 = scmp.ne.s32.totalorder %s139, %s140
    %p149 = scmp.eq.s32.totalorder %s24, 0
    %p150 = por %p148, %p149
    %p151 = scmp.ne.s32.totalorder %s139, %s140
    %p152 = scmp.eq.s32.totalorder %s25, 1
    %p153 = por %p151, %p152
    %p155 = scmp.ne.s32.totalorder %s140, %s154
    %p156 = scmp.eq.s32.totalorder %s25, 0
    %p157 = por %p155, %p156
    %s159 = sadd.s32 %s158, 1
    %p162 = scmp.eq.s32.totalorder %s19, 1
    %p163 = scmp.ne.s32.totalorder %s158, %s160
    %p164 = scmp.eq.s32.totalorder %s19, 0
    %p165 = por %p163, %p164
    %p166 = scmp.ne.s32.totalorder %s158, %s160
    %p167 = scmp.eq.s32.totalorder %s24, 1
    %p168 = por %p166, %p167
    %p169 = scmp.ne.s32.totalorder %s160, %s161
    %p170 = scmp.eq.s32.totalorder %s24, 0
    %p171 = por %p169, %p170
    %p172 = scmp.ne.s32.totalorder %s160, %s161
    %p173 = scmp.eq.s32.totalorder %s25, 1
    %p174 = por %p172, %p173
    %p176 = scmp.ne.s32.totalorder %s161, %s175
    %p177 = scmp.eq.s32.totalorder %s25, 0
    %p178 = por %p176, %p177
    %s180 = sadd.s32 %s179, 1
    %p183 = scmp.eq.s32.totalorder %s19, 1
    %p184 = scmp.ne.s32.totalorder %s179, %s181
    %p185 = scmp.eq.s32.totalorder %s19, 0
    %p186 = por %p184, %p185
    %p187 = scmp.ne.s32.totalorder %s179, %s181
    %p188 = scmp.eq.s32.totalorder %s24, 1
    %p189 = por %p187, %p188
    %p190 = scmp.ne.s32.totalorder %s181, %s182
    %p191 = scmp.eq.s32.totalorder %s24, 0
    %p192 = por %p190, %p191
    %p193 = scmp.ne.s32.totalorder %s181, %s182
    %p194 = scmp.eq.s32.totalorder %s25, 1
    %p195 = por %p193, %p194
    %p197 = scmp.ne.s32.totalorder %s182, %s196
    %p198 = scmp.eq.s32.totalorder %s25, 0
    %p199 = por %p197, %p198
    %s201 = sadd.s32 %s200, 1
    %p204 = scmp.eq.s32.totalorder %s19, 1
    %p205 = scmp.ne.s32.totalorder %s200, %s202
    %p206 = scmp.eq.s32.totalorder %s19, 0
    %p207 = por %p205, %p206
    %p208 = scmp.ne.s32.totalorder %s200, %s202
    %p209 = scmp.eq.s32.totalorder %s24, 1
    %p210 = por %p208, %p209
    %p211 = scmp.ne.s32.totalorder %s202, %s203
    %p212 = scmp.eq.s32.totalorder %s24, 0
    %p213 = por %p211, %p212
    %p214 = scmp.ne.s32.totalorder %s202, %s203
    %p215 = scmp.eq.s32.totalorder %s25, 1
    %p216 = por %p214, %p215
    %p218 = scmp.ne.s32.totalorder %s203, %s217
    %p219 = scmp.eq.s32.totalorder %s25, 0
    %p220 = por %p218, %p219
    %s222 = sadd.s32 %s221, 1
    %p225 = scmp.eq.s32.totalorder %s19, 1
    %p226 = scmp.ne.s32.totalorder %s221, %s223
    %p227 = scmp.eq.s32.totalorder %s19, 0
    %p228 = por %p226, %p227
    %p229 = scmp.ne.s32.totalorder %s221, %s223
    %p230 = scmp.eq.s32.totalorder %s24, 1
    %p231 = por %p229, %p230
    %p232 = scmp.ne.s32.totalorder %s223, %s224
    %p233 = scmp.eq.s32.totalorder %s24, 0
    %p234 = por %p232, %p233
    %p235 = scmp.ne.s32.totalorder %s223, %s224
    %p236 = scmp.eq.s32.totalorder %s25, 1
    %p237 = por %p235, %p236
    %p239 = scmp.ne.s32.totalorder %s224, %s238
    %p240 = scmp.eq.s32.totalorder %s25, 0
    %p241 = por %p239, %p240
    %s243 = sadd.s32 %s242, 1
    %p246 = scmp.eq.s32.totalorder %s19, 1
    %p247 = scmp.ne.s32.totalorder %s242, %s244
    %p248 = scmp.eq.s32.totalorder %s19, 0
    %p249 = por %p247, %p248
    %p250 = scmp.ne.s32.totalorder %s242, %s244
    %p251 = scmp.eq.s32.totalorder %s24, 1
    %p252 = por %p250, %p251
    %p253 = scmp.ne.s32.totalorder %s244, %s245
    %p254 = scmp.eq.s32.totalorder %s24, 0
    %p255 = por %p253, %p254
    %p256 = scmp.ne.s32.totalorder %s244, %s245
    %p257 = scmp.eq.s32.totalorder %s25, 1
    %p258 = por %p256, %p257
    %p260 = scmp.ne.s32.totalorder %s245, %s259
    %p261 = scmp.eq.s32.totalorder %s25, 0
    %p262 = por %p260, %p261
    %s264 = sadd.s32 %s263, 1
    %p267 = scmp.eq.s32.totalorder %s19, 1
    %p268 = scmp.ne.s32.totalorder %s263, %s265
    %p269 = scmp.eq.s32.totalorder %s19, 0
    %p270 = por %p268, %p269
    %p271 = scmp.ne.s32.totalorder %s263, %s265
    %p272 = scmp.eq.s32.totalorder %s24, 1
    %p273 = por %p271, %p272
    %p274 = scmp.ne.s32.totalorder %s265, %s266
    %p275 = scmp.eq.s32.totalorder %s24, 0
    %p276 = por %p274, %p275
    %p277 = scmp.ne.s32.totalorder %s265, %s266
    %p278 = scmp.eq.s32.totalorder %s25, 1
    %p279 = por %p277, %p278
    %p281 = scmp.ne.s32.totalorder %s266, %s280
    %p282 = scmp.eq.s32.totalorder %s25, 0
    %p283 = por %p281, %p282
    %s285 = sadd.s32 %s284, 1
    %p288 = scmp.eq.s32.totalorder %s19, 1
    %p289 = scmp.ne.s32.totalorder %s284, %s286
    %p290 = scmp.eq.s32.totalorder %s19, 0
    %p291 = por %p289, %p290
    %p292 = scmp.ne.s32.totalorder %s284, %s286
    %p293 = scmp.eq.s32.totalorder %s24, 1
    %p294 = por %p292, %p293
    %p295 = scmp.ne.s32.totalorder %s286, %s287
    %p296 = scmp.eq.s32.totalorder %s24, 0
    %p297 = por %p295, %p296
    %p298 = scmp.ne.s32.totalorder %s286, %s287
    %p299 = scmp.eq.s32.totalorder %s25, 1
    %p300 = por %p298, %p299
    %p302 = scmp.ne.s32.totalorder %s287, %s301
    %p303 = scmp.eq.s32.totalorder %s25, 0
    %p304 = por %p302, %p303
    %s305 = ssub.s32 %s19, %s26
    %p306 = scmp.eq.s32.totalorder %s305, 0
    %s308 = sadd.s32 %s307, 1
    %s309 = scalar_select %p306, %s307, %s308
    %p312 = pneg %p306
    %p313 = scmp.eq.s32.totalorder %s19, 1
    %p314 = por %p312, %p313
    %p315 = scmp.ne.s32.totalorder %s307, %s310
    %p316 = scmp.eq.s32.totalorder %s19, 0
    %p317 = por %p315, %p316
    %p318 = scmp.ne.s32.totalorder %s307, %s310
    %p319 = scmp.eq.s32.totalorder %s24, 1
    %p320 = por %p318, %p319
    %p321 = scmp.ne.s32.totalorder %s310, %s311
    %p322 = scmp.eq.s32.totalorder %s24, 0
    %p323 = por %p321, %p322
    %p324 = scmp.ne.s32.totalorder %s310, %s311
    %p325 = scmp.eq.s32.totalorder %s25, 1
    %p326 = por %p324, %p325
    %p328 = scmp.ne.s32.totalorder %s311, %s327
    %p329 = scmp.eq.s32.totalorder %s25, 0
    %p330 = por %p328, %p329
    %p331 = scmp.le.s32.totalorder 1, %s19
    %p332 = scmp.lt.s32.totalorder %s19, 3
    %p333 = pnand %p331, %p332
    %p334 = pneg %p333
    // Predicated region
    $region9: #{my_module_forward.1} parent=5 // pred_check
      _
    $region10: #{my_module_forward.1} parent=5 // pred_check_branch
      %336 = sbr.rel (%p333) target = $region12
    $region11: #{my_module_forward.1} parent=5 // pred_region
      %s337 = ssub.s32 %s19, 1
      // Predicated region
      $region13: #{my_module_forward.1} parent=11 // pred_check
        %p338 = pneg %p66
      $region14: #{my_module_forward.1} parent=11 // pred_check_branch
        %340 = sbr.rel (%p338) target = $region16
      $region15: #{my_module_forward.1} parent=11 // pred_region
        _
      $region16: #{my_module_forward.1} parent=11 // pred_fallthru
        _
      // Predicated region
      $region17: #{my_module_forward.1} parent=11 // pred_check
        %p341 = pneg %p87
      $region18: #{my_module_forward.1} parent=11 // pred_check_branch
        %343 = sbr.rel (%p341) target = $region20
      $region19: #{my_module_forward.1} parent=11 // pred_region
        _
      $region20: #{my_module_forward.1} parent=11 // pred_fallthru
        _
      // Predicated region
      $region21: #{my_module_forward.1} parent=11 // pred_check
        %p344 = pneg %p108
      $region22: #{my_module_forward.1} parent=11 // pred_check_branch
        %346 = sbr.rel (%p344) target = $region24
      $region23: #{my_module_forward.1} parent=11 // pred_region
        _
      $region24: #{my_module_forward.1} parent=11 // pred_fallthru
        _
      // Predicated region
      $region25: #{my_module_forward.1} parent=11 // pred_check
        %p347 = pneg %p129
      $region26: #{my_module_forward.1} parent=11 // pred_check_branch
        %349 = sbr.rel (%p347) target = $region28
      $region27: #{my_module_forward.1} parent=11 // pred_region
        _
      $region28: #{my_module_forward.1} parent=11 // pred_fallthru
        _
      // Predicated region
      $region29: #{my_module_forward.1} parent=11 // pred_check
        %p350 = pneg %p150
      $region30: #{my_module_forward.1} parent=11 // pred_check_branch
        %352 = sbr.rel (%p350) target = $region32
      $region31: #{my_module_forward.1} parent=11 // pred_region
        _
      $region32: #{my_module_forward.1} parent=11 // pred_fallthru
        _
      // Predicated region
      $region33: #{my_module_forward.1} parent=11 // pred_check
        %p353 = pneg %p171
      $region34: #{my_module_forward.1} parent=11 // pred_check_branch
        %355 = sbr.rel (%p353) target = $region36
      $region35: #{my_module_forward.1} parent=11 // pred_region
        _
      $region36: #{my_module_forward.1} parent=11 // pred_fallthru
        _
      // Predicated region
      $region37: #{my_module_forward.1} parent=11 // pred_check
        %p356 = pneg %p192
      $region38: #{my_module_forward.1} parent=11 // pred_check_branch
        %358 = sbr.rel (%p356) target = $region40
      $region39: #{my_module_forward.1} parent=11 // pred_region
        _
      $region40: #{my_module_forward.1} parent=11 // pred_fallthru
        _
      // Predicated region
      $region41: #{my_module_forward.1} parent=11 // pred_check
        %p359 = pneg %p213
      $region42: #{my_module_forward.1} parent=11 // pred_check_branch
        %361 = sbr.rel (%p359) target = $region44
      $region43: #{my_module_forward.1} parent=11 // pred_region
        _
      $region44: #{my_module_forward.1} parent=11 // pred_fallthru
        _
      // Predicated region
      $region45: #{my_module_forward.1} parent=11 // pred_check
        %p362 = pneg %p234
      $region46: #{my_module_forward.1} parent=11 // pred_check_branch
        %364 = sbr.rel (%p362) target = $region48
      $region47: #{my_module_forward.1} parent=11 // pred_region
        _
      $region48: #{my_module_forward.1} parent=11 // pred_fallthru
        _
      // Predicated region
      $region49: #{my_module_forward.1} parent=11 // pred_check
        %p365 = pneg %p255
      $region50: #{my_module_forward.1} parent=11 // pred_check_branch
        %367 = sbr.rel (%p365) target = $region52
      $region51: #{my_module_forward.1} parent=11 // pred_region
        _
      $region52: #{my_module_forward.1} parent=11 // pred_fallthru
        _
      // Predicated region
      $region53: #{my_module_forward.1} parent=11 // pred_check
        %p368 = pneg %p276
      $region54: #{my_module_forward.1} parent=11 // pred_check_branch
        %370 = sbr.rel (%p368) target = $region56
      $region55: #{my_module_forward.1} parent=11 // pred_region
        _
      $region56: #{my_module_forward.1} parent=11 // pred_fallthru
        _
      // Predicated region
      $region57: #{my_module_forward.1} parent=11 // pred_check
        %p371 = pneg %p297
      $region58: #{my_module_forward.1} parent=11 // pred_check_branch
        %373 = sbr.rel (%p371) target = $region60
      $region59: #{my_module_forward.1} parent=11 // pred_region
        _
      $region60: #{my_module_forward.1} parent=11 // pred_fallthru
        _
    $region12: #{my_module_forward.1} parent=5 // pred_fallthru
      _
    %p374 = scmp.lt.s32.totalorder %s19, 2
    // Predicated region
    $region61: #{my_module_forward.1} parent=5 // pred_check
      %p375 = pneg %p374
    $region62: #{my_module_forward.1} parent=5 // pred_check_branch
      %377 = sbr.rel (%p375) target = $region64
    $region63: #{my_module_forward.1} parent=5 // pred_region
      // Predicated region
      $region65: #{my_module_forward.1} parent=63 // pred_check
        %p378 = pneg %p39
      $region66: #{my_module_forward.1} parent=63 // pred_check_branch
        %380 = sbr.rel (%p378) target = $region68
      $region67: #{my_module_forward.1} parent=63 // pred_region
        %p381 = scmp.lt.s32.totalorder %s19, 1
        %s382 = scalar_select %p381, %s19, 1
        %s383 = smul.addr %s382, 16
        %s384 = smul.addr %s383, 4
        %s385 = scalar_lea.vmem %s0, %s384
      $region68: #{my_module_forward.1} parent=63 // pred_fallthru
        _
    $region64: #{my_module_forward.1} parent=5 // pred_fallthru
      _
    %p386 = scmp.le.s32.totalorder 1, %s19
    %p387 = scmp.lt.s32.totalorder %s19, 3
    %p388 = pnand %p386, %p387
    %p389 = pneg %p388
    // Predicated region
    $region69: #{my_module_forward.1} parent=5 // pred_check
      _
    $region70: #{my_module_forward.1} parent=5 // pred_check_branch
      %391 = sbr.rel (%p388) target = $region72
    $region71: #{my_module_forward.1} parent=5 // pred_region
      %s392 = ssub.s32 %s19, 1
      %p393 = scmp.lt.s32.totalorder %s24, 1
      %s394 = scalar_select %p393, %s24, 1
      %s395 = smul.addr %s394, 16
      %s396 = smul.addr %s395, 4
      %s397 = scalar_lea.vmem %s0, %s396
      %p398 = pneg %p45
      %p399 = pneg %p42
      %p400 = pneg %p66
      %p401 = pneg %p63
      %p402 = pneg %p87
      %p403 = pneg %p84
      %p404 = pneg %p108
      %p405 = pneg %p105
      %p406 = pneg %p129
      %p407 = pneg %p126
      %p408 = pneg %p150
      %p409 = pneg %p147
      %p410 = pneg %p171
      %p411 = pneg %p168
      %p412 = pneg %p192
      %p413 = pneg %p189
      %p414 = pneg %p213
      %p415 = pneg %p210
      %p416 = pneg %p234
      %p417 = pneg %p231
      %p418 = pneg %p255
      %p419 = pneg %p252
      %p420 = pneg %p276
      %p421 = pneg %p273
      %p422 = pneg %p297
      %p423 = pneg %p294
      %p424 = pneg %p323
      %p425 = pneg %p320
      %p426 = scmp.lt.s32.totalorder %s24, 1
      %s427 = scalar_select %p426, %s24, 1
      %s428 = smul.addr %s427, 2
      %s429 = smul.addr %s428, 8
      %s430 = scalar_lea.vmem %s13, %s429
      %p431 = scmp.lt.s32.totalorder %s24, 1
      %s432 = scalar_select %p431, %s24, 1
      %s433 = smul.addr %s432, 16
      %s434 = smul.addr %s433, 4
      %s435 = scalar_lea.vmem %s0, %s434
      %p436 = scmp.lt.s32.totalorder %s24, 1
      %s437 = scalar_select %p436, %s24, 1
      %s438 = smul.addr %s437, 2
      %s439 = smul.addr %s438, 8
      %s440 = scalar_lea.vmem %s13, %s439
      %v442 = vld [vmem:[%s435] sm:$0xff]
      %v443 = vld [vmem:[%s435 + $0x8] sm:$0xff]
      %v444 = vld [vmem:[%s435 + $0x10] sm:$0xff]
      %v445 = vld [vmem:[%s435 + $0x18] sm:$0xff]
      %v446 = vld [vmem:[%s435 + $0x20] sm:$0xff]
      %v447 = vld [vmem:[%s435 + $0x28] sm:$0xff]
      %v448 = vld [vmem:[%s435 + $0x30] sm:$0xff]
      %v449 = vld [vmem:[%s435 + $0x38] sm:$0xff]
      %v450 = vld [vmem:[%s3] sm:$0xf]
      %v451 = vld [vmem:[%s3 + $0x4] sm:$0xf]
      %v452 = vld [vmem:[%s3 + $0x8] sm:$0xf]
      %v453 = vld [vmem:[%s3 + $0xc] sm:$0xf]
      %v454 = vld [vmem:[%s3 + $0x10] sm:$0xf]
      %v455 = vld [vmem:[%s3 + $0x14] sm:$0xf]
      %v456 = vld [vmem:[%s3 + $0x18] sm:$0xf]
      %v457 = vld [vmem:[%s3 + $0x1c] sm:$0xf]
      %v458 = vld [vmem:[%s3 + $0x20] sm:$0xf]
      %v459 = vld [vmem:[%s3 + $0x24] sm:$0xf]
      %v460 = vld [vmem:[%s3 + $0x28] sm:$0xf]
      %v461 = vld [vmem:[%s3 + $0x2c] sm:$0xf]
      %v462 = vld [vmem:[%s3 + $0x30] sm:$0xf]
      %v463 = vld [vmem:[%s3 + $0x34] sm:$0xf]
      %v464 = vld [vmem:[%s3 + $0x38] sm:$0xf]
      %v465 = vld [vmem:[%s3 + $0x3c] sm:$0xf]
      %v466 = vld [vmem:[%s3 + $0x40] sm:$0xf]
      %v467 = vld [vmem:[%s3 + $0x44] sm:$0xf]
      %v468 = vld [vmem:[%s3 + $0x48] sm:$0xf]
      %v469 = vld [vmem:[%s3 + $0x4c] sm:$0xf]
      %v470 = vld [vmem:[%s3 + $0x50] sm:$0xf]
      %v471 = vld [vmem:[%s3 + $0x54] sm:$0xf]
      %v472 = vld [vmem:[%s3 + $0x58] sm:$0xf]
      %v473 = vld [vmem:[%s3 + $0x5c] sm:$0xf]
      %v474 = vld [vmem:[%s3 + $0x60] sm:$0xf]
      %v475 = vld [vmem:[%s3 + $0x64] sm:$0xf]
      %v476 = vld [vmem:[%s3 + $0x68] sm:$0xf]
      %v477 = vld [vmem:[%s3 + $0x6c] sm:$0xf]
      %v478 = vld [vmem:[%s3 + $0x70] sm:$0xf]
      %v479 = vld [vmem:[%s3 + $0x74] sm:$0xf]
      %v480 = vld [vmem:[%s3 + $0x78] sm:$0xf]
      %v481 = vld [vmem:[%s3 + $0x7c] sm:$0xf]
      %v482 = vld [vmem:[%s4] sm:$0x1]
      %v484 = vlaneseq
      %v485 = vshrl.u32 %v484, 7
      %v486 = vsub.s32 0, %v485
      %v487 = vrot.slane %v482, %v486
      %v497 = vunpack.c.l.b16 %v442
      %v498 = vunpack.c.h.b16 %v442
      %v499 = vunpack.c.l.b16 %v443
      %v500 = vunpack.c.h.b16 %v443
      %v501 = vunpack.c.l.b16 %v444
      %v502 = vunpack.c.h.b16 %v444
      %v503 = vunpack.c.l.b16 %v445
      %v504 = vunpack.c.h.b16 %v445
      %v505 = vunpack.c.l.b16 %v446
      %v506 = vunpack.c.h.b16 %v446
      %v507 = vunpack.c.l.b16 %v447
      %v508 = vunpack.c.h.b16 %v447
      %v509 = vunpack.c.l.b16 %v448
      %v510 = vunpack.c.h.b16 %v448
      %v511 = vunpack.c.l.b16 %v449
      %v512 = vunpack.c.h.b16 %v449
      %v513 = vpack.c.b16 %v499, %v497
      %v514 = vpack.c.b16 %v500, %v498
      %v515 = vpack.c.b16 %v503, %v501
      %v516 = vpack.c.b16 %v504, %v502
      %v517 = vpack.c.b16 %v507, %v505
      %v518 = vpack.c.b16 %v508, %v506
      %v519 = vpack.c.b16 %v511, %v509
      %v520 = vpack.c.b16 %v512, %v510
      %v561 = vunpack.c.l.b16 %v450
      %v562 = vunpack.c.l.b16 %v451
      %v563 = vunpack.c.l.b16 %v452
      %v564 = vunpack.c.l.b16 %v453
      %v565 = vunpack.c.l.b16 %v454
      %v566 = vunpack.c.l.b16 %v455
      %v567 = vunpack.c.l.b16 %v456
      %v568 = vunpack.c.l.b16 %v457
      %v569 = vunpack.c.l.b16 %v458
      %v570 = vunpack.c.l.b16 %v459
      %v571 = vunpack.c.l.b16 %v460
      %v572 = vunpack.c.l.b16 %v461
      %v573 = vunpack.c.l.b16 %v462
      %v574 = vunpack.c.l.b16 %v463
      %v575 = vunpack.c.l.b16 %v464
      %v576 = vunpack.c.l.b16 %v465
      %v577 = vunpack.c.l.b16 %v466
      %v578 = vunpack.c.l.b16 %v467
      %v579 = vunpack.c.l.b16 %v468
      %v580 = vunpack.c.l.b16 %v469
      %v581 = vunpack.c.l.b16 %v470
      %v582 = vunpack.c.l.b16 %v471
      %v583 = vunpack.c.l.b16 %v472
      %v584 = vunpack.c.l.b16 %v473
      %v585 = vunpack.c.l.b16 %v474
      %v586 = vunpack.c.l.b16 %v475
      %v587 = vunpack.c.l.b16 %v476
      %v588 = vunpack.c.l.b16 %v477
      %v589 = vunpack.c.l.b16 %v478
      %v590 = vunpack.c.l.b16 %v479
      %v591 = vunpack.c.l.b16 %v480
      %v592 = vunpack.c.l.b16 %v481
      %v593 = vpack.c.b16 %v562, %v561
      %v594 = vpack.c.b16 %v564, %v563
      %v595 = vpack.c.b16 %v566, %v565
      %v596 = vpack.c.b16 %v568, %v567
      %v597 = vpack.c.b16 %v570, %v569
      %v598 = vpack.c.b16 %v572, %v571
      %v599 = vpack.c.b16 %v574, %v573
      %v600 = vpack.c.b16 %v576, %v575
      %v601 = vpack.c.b16 %v578, %v577
      %v602 = vpack.c.b16 %v580, %v579
      %v603 = vpack.c.b16 %v582, %v581
      %v604 = vpack.c.b16 %v584, %v583
      %v605 = vpack.c.b16 %v586, %v585
      %v606 = vpack.c.b16 %v588, %v587
      %v607 = vpack.c.b16 %v590, %v589
      %v608 = vpack.c.b16 %v592, %v591
      %625 = vmatprep.subr.bf16.mxu0 0
      %626 = vmatpush1.bf16.msra.mxu0 %v600
      %627 = vmatprep.subr.bf16.mxu0 0
      %628 = vmatpush1.bf16.msra.mxu0 %v599
      %629 = vmatprep.subr.bf16.mxu0 0
      %630 = vmatpush1.bf16.msra.mxu0 %v598
      %631 = vmatprep.subr.bf16.mxu0 0
      %632 = vmatpush1.bf16.msra.mxu0 %v597
      %633 = vmatprep.subr.bf16.mxu0 0
      %634 = vmatpush1.bf16.msra.mxu0 %v596
      %635 = vmatprep.subr.bf16.mxu0 0
      %636 = vmatpush1.bf16.msra.mxu0 %v595
      %637 = vmatprep.subr.bf16.mxu0 0
      %638 = vmatpush1.bf16.msra.mxu0 %v594
      %639 = vmatprep.subr.bf16.mxu0 0
      %640 = vmatpush1.bf16.msra.mxu0 %v593
      %641 = vmatprep.subr.bf16.mxu0 0
      %642 = vmatpush2.bf16.msra.mxu0 %v608
      %643 = vmatprep.subr.bf16.mxu0 0
      %644 = vmatpush2.bf16.msra.mxu0 %v607
      %645 = vmatprep.subr.bf16.mxu0 0
      %646 = vmatpush2.bf16.msra.mxu0 %v606
      %647 = vmatprep.subr.bf16.mxu0 0
      %648 = vmatpush2.bf16.msra.mxu0 %v605
      %649 = vmatprep.subr.bf16.mxu0 0
      %650 = vmatpush2.bf16.msra.mxu0 %v604
      %651 = vmatprep.subr.bf16.mxu0 0
      %652 = vmatpush2.bf16.msra.mxu0 %v603
      %653 = vmatprep.subr.bf16.mxu0 0
      %654 = vmatpush2.bf16.msra.mxu0 %v602
      %655 = vmatprep.subr.bf16.mxu0 0
      %656 = vmatpush2.bf16.msra.mxu0 %v601
      %657 = vmatprep.mubr.bf16.mxu0 %v514
      %658 = vmatmul.mubr.bf16.gmra.mxu0 %v513
      %v659 = vpop.f32.mrf.mxu0
      %v660 = vadd.f32 %v487, %v659
      %v661 = vpop.f32.mrf.mxu0
      %v662 = vpop.f32.mrf.mxu0
      %v663 = vadd.f32 %v487, %v662
      %v664 = vpop.f32.mrf.mxu0
      %665 = vmatprep.mubr.bf16.mxu0 %v516
      %666 = vmatmul.mubr.bf16.gmra.mxu0 %v515
      %v667 = vpop.f32.mrf.mxu0
      %v668 = vadd.f32 %v487, %v667
      %v669 = vpop.f32.mrf.mxu0
      %v670 = vpop.f32.mrf.mxu0
      %v671 = vadd.f32 %v487, %v670
      %v672 = vpop.f32.mrf.mxu0
      %673 = vmatprep.mubr.bf16.mxu0 %v518
      %674 = vmatmul.mubr.bf16.gmra.mxu0 %v517
      %v675 = vpop.f32.mrf.mxu0
      %v676 = vadd.f32 %v487, %v675
      %v677 = vpop.f32.mrf.mxu0
      %v678 = vpop.f32.mrf.mxu0
      %v679 = vadd.f32 %v487, %v678
      %v680 = vpop.f32.mrf.mxu0
      %681 = vmatprep.mubr.bf16.mxu0 %v520
      %682 = vmatmul.mubr.bf16.gmra.mxu0 %v519
      %v683 = vpop.f32.mrf.mxu0
      %v684 = vadd.f32 %v487, %v683
      %v685 = vpop.f32.mrf.mxu0
      %v686 = vpop.f32.mrf.mxu0
      %v687 = vadd.f32 %v487, %v686
      %v688 = vpop.f32.mrf.mxu0
      %689 = vdwg.mxu0
      %v690 = vmax.f32 %v660, 0.0
      %v691 = vmax.f32 %v663, 0.0
      %v692 = vmax.f32 %v668, 0.0
      %v693 = vmax.f32 %v671, 0.0
      %v694 = vmax.f32 %v676, 0.0
      %v695 = vmax.f32 %v679, 0.0
      %v696 = vmax.f32 %v684, 0.0
      %v697 = vmax.f32 %v687, 0.0
      %v698 = vld [vmem:[%s1] sm:$0xff]
      %v699 = vld [vmem:[%s1 + $0x8] sm:$0xff]
      %vm700 = vcmask 523264
      %v702 = vsel %vm700, %v698, 0
      %v705 = vsel %vm700, %v699, 0
      %707 = vmatprep.subr.mxu0 0.0
      %708 = vmatpush1.msra.mxu0 0.0
      %709 = vmatprep.subr.mxu0 0.0
      %710 = vmatpush1.msra.mxu0 0.0
      %711 = vmatprep.subr.mxu0 0.0
      %712 = vmatpush1.msra.mxu0 0.0
      %713 = vmatprep.subr.mxu0 0.0
      %714 = vmatpush1.msra.mxu0 0.0
      %715 = vmatprep.subr.mxu0 0.0
      %716 = vmatpush1.msra.mxu0 0.0
      %717 = vmatprep.subr.mxu0 0.0
      %718 = vmatpush1.msra.mxu0 0.0
      %719 = vmatprep.subr.mxu0 0.0
      %720 = vmatpush1.msra.mxu0 0.0
      %721 = vmatprep.subr.mxu0 0.0
      %722 = vmatpush1.msra.mxu0 0.0
      %723 = vmatprep.subr.mxu0 0.0
      %724 = vmatpush1.msra.mxu0 %v697
      %725 = vmatprep.subr.mxu0 0.0
      %726 = vmatpush1.msra.mxu0 %v696
      %727 = vmatprep.subr.mxu0 0.0
      %728 = vmatpush1.msra.mxu0 %v695
      %729 = vmatprep.subr.mxu0 0.0
      %730 = vmatpush1.msra.mxu0 %v694
      %731 = vmatprep.subr.mxu0 0.0
      %732 = vmatpush1.msra.mxu0 %v693
      %733 = vmatprep.subr.mxu0 0.0
      %734 = vmatpush1.msra.mxu0 %v692
      %735 = vmatprep.subr.mxu0 0.0
      %736 = vmatpush1.msra.mxu0 %v691
      %737 = vmatprep.subr.mxu0 0.0
      %738 = vmatpush1.msra.mxu0 %v690
      %739 = vmatprep.subr.mxu0 0.0
      %740 = vmatpush2.msra.mxu0 0.0
      %741 = vmatprep.subr.mxu0 0.0
      %742 = vmatpush2.msra.mxu0 0.0
      %743 = vmatprep.subr.mxu0 0.0
      %744 = vmatpush2.msra.mxu0 0.0
      %745 = vmatprep.subr.mxu0 0.0
      %746 = vmatpush2.msra.mxu0 0.0
      %747 = vmatprep.subr.mxu0 0.0
      %748 = vmatpush2.msra.mxu0 0.0
      %749 = vmatprep.subr.mxu0 0.0
      %750 = vmatpush2.msra.mxu0 0.0
      %751 = vmatprep.subr.mxu0 0.0
      %752 = vmatpush2.msra.mxu0 0.0
      %753 = vmatprep.subr.mxu0 0.0
      %754 = vmatpush2.msra.mxu0 0.0
      %755 = vmatprep.subr.mxu0 0.0
      %756 = vmatpush2.msra.mxu0 0.0
      %757 = vmatprep.subr.mxu0 0.0
      %758 = vmatpush2.msra.mxu0 0.0
      %759 = vmatprep.subr.mxu0 0.0
      %760 = vmatpush2.msra.mxu0 0.0
      %761 = vmatprep.subr.mxu0 0.0
      %762 = vmatpush2.msra.mxu0 0.0
      %763 = vmatprep.subr.mxu0 0.0
      %764 = vmatpush2.msra.mxu0 0.0
      %765 = vmatprep.subr.mxu0 0.0
      %766 = vmatpush2.msra.mxu0 0.0
      %767 = vmatprep.subr.mxu0 0.0
      %768 = vmatpush2.msra.mxu0 0.0
      %769 = vmatprep.subr.mxu0 0.0
      %770 = vmatpush2.msra.mxu0 0.0
      %771 = vmatprep.mubr.f32.mxu0 0.0
      %772 = vmatmul.mubr.f32.gmra.mxu0 %v702
      %v773 = vpop.f32.mrf.mxu0
      %v774 = vadd.f32 0.0, %v773
      %v775 = vpop.f32.mrf.mxu0
      %776 = vmatprep.mubr.f32.mxu0 0.0
      %777 = vmatmul.mubr.f32.gmra.mxu0 %v705
      %v778 = vpop.f32.mrf.mxu0
      %v779 = vadd.f32 0.0, %v778
      %v780 = vpop.f32.mrf.mxu0
      %781 = vdwg.mxu0
      %v782 = vld [vmem:[%s2] sm:$0xff]
      %v783 = vld [vmem:[%s2 + $0x8] sm:$0xff]
      %vm784 = vcmask 130048
      %v786 = vsel %vm784, %v782, 0
      %v789 = vsel %vm784, %v783, 0
      %791 = vmatprep.subr.mxu0 0.0
      %792 = vmatpush1.msra.mxu0 0.0
      %793 = vmatprep.subr.mxu0 0.0
      %794 = vmatpush1.msra.mxu0 0.0
      %795 = vmatprep.subr.mxu0 0.0
      %796 = vmatpush1.msra.mxu0 0.0
      %797 = vmatprep.subr.mxu0 0.0
      %798 = vmatpush1.msra.mxu0 0.0
      %799 = vmatprep.subr.mxu0 0.0
      %800 = vmatpush1.msra.mxu0 0.0
      %801 = vmatprep.subr.mxu0 0.0
      %802 = vmatpush1.msra.mxu0 0.0
      %803 = vmatprep.subr.mxu0 0.0
      %804 = vmatpush1.msra.mxu0 0.0
      %805 = vmatprep.subr.mxu0 0.0
      %806 = vmatpush1.msra.mxu0 0.0
      %807 = vmatprep.subr.mxu0 0.0
      %808 = vmatpush1.msra.mxu0 0.0
      %809 = vmatprep.subr.mxu0 0.0
      %810 = vmatpush1.msra.mxu0 0.0
      %811 = vmatprep.subr.mxu0 0.0
      %812 = vmatpush1.msra.mxu0 0.0
      %813 = vmatprep.subr.mxu0 0.0
      %814 = vmatpush1.msra.mxu0 0.0
      %815 = vmatprep.subr.mxu0 0.0
      %816 = vmatpush1.msra.mxu0 0.0
      %817 = vmatprep.subr.mxu0 0.0
      %818 = vmatpush1.msra.mxu0 0.0
      %819 = vmatprep.subr.mxu0 0.0
      %820 = vmatpush1.msra.mxu0 %v779
      %821 = vmatprep.subr.mxu0 0.0
      %822 = vmatpush1.msra.mxu0 %v774
      %823 = vmatprep.subr.mxu0 0.0
      %824 = vmatpush2.msra.mxu0 0.0
      %825 = vmatprep.subr.mxu0 0.0
      %826 = vmatpush2.msra.mxu0 0.0
      %827 = vmatprep.subr.mxu0 0.0
      %828 = vmatpush2.msra.mxu0 0.0
      %829 = vmatprep.subr.mxu0 0.0
      %830 = vmatpush2.msra.mxu0 0.0
      %831 = vmatprep.subr.mxu0 0.0
      %832 = vmatpush2.msra.mxu0 0.0
      %833 = vmatprep.subr.mxu0 0.0
      %834 = vmatpush2.msra.mxu0 0.0
      %835 = vmatprep.subr.mxu0 0.0
      %836 = vmatpush2.msra.mxu0 0.0
      %837 = vmatprep.subr.mxu0 0.0
      %838 = vmatpush2.msra.mxu0 0.0
      %839 = vmatprep.subr.mxu0 0.0
      %840 = vmatpush2.msra.mxu0 0.0
      %841 = vmatprep.subr.mxu0 0.0
      %842 = vmatpush2.msra.mxu0 0.0
      %843 = vmatprep.subr.mxu0 0.0
      %844 = vmatpush2.msra.mxu0 0.0
      %845 = vmatprep.subr.mxu0 0.0
      %846 = vmatpush2.msra.mxu0 0.0
      %847 = vmatprep.subr.mxu0 0.0
      %848 = vmatpush2.msra.mxu0 0.0
      %849 = vmatprep.subr.mxu0 0.0
      %850 = vmatpush2.msra.mxu0 0.0
      %851 = vmatprep.subr.mxu0 0.0
      %852 = vmatpush2.msra.mxu0 0.0
      %853 = vmatprep.subr.mxu0 0.0
      %854 = vmatpush2.msra.mxu0 0.0
      %855 = vmatprep.mubr.f32.mxu0 0.0
      %856 = vmatmul.mubr.f32.gmra.mxu0 %v786
      %v857 = vpop.f32.mrf.mxu0
      %v858 = vadd.f32 0.0, %v857
      %v859 = vpop.f32.mrf.mxu0
      %860 = vmatprep.mubr.f32.mxu0 0.0
      %861 = vmatmul.mubr.f32.gmra.mxu0 %v789
      %v862 = vpop.f32.mrf.mxu0
      %v863 = vadd.f32 0.0, %v862
      %v864 = vpop.f32.mrf.mxu0
      %865 = vdwg.mxu0
      %s866 = scalar_lea.vmem %s2, 16
      %v867 = vld [vmem:[%s866] sm:$0xff]
      %v868 = vld [vmem:[%s866 + $0x8] sm:$0xff]
      %v870 = vsel %vm784, %v867, 0
      %v873 = vsel %vm784, %v868, 0
      %875 = vmatprep.subr.mxu0 0.0
      %876 = vmatpush1.msra.mxu0 0.0
      %877 = vmatprep.subr.mxu0 0.0
      %878 = vmatpush1.msra.mxu0 0.0
      %879 = vmatprep.subr.mxu0 0.0
      %880 = vmatpush1.msra.mxu0 0.0
      %881 = vmatprep.subr.mxu0 0.0
      %882 = vmatpush1.msra.mxu0 0.0
      %883 = vmatprep.subr.mxu0 0.0
      %884 = vmatpush1.msra.mxu0 0.0
      %885 = vmatprep.subr.mxu0 0.0
      %886 = vmatpush1.msra.mxu0 0.0
      %887 = vmatprep.subr.mxu0 0.0
      %888 = vmatpush1.msra.mxu0 0.0
      %889 = vmatprep.subr.mxu0 0.0
      %890 = vmatpush1.msra.mxu0 0.0
      %891 = vmatprep.subr.mxu0 0.0
      %892 = vmatpush1.msra.mxu0 0.0
      %893 = vmatprep.subr.mxu0 0.0
      %894 = vmatpush1.msra.mxu0 0.0
      %895 = vmatprep.subr.mxu0 0.0
      %896 = vmatpush1.msra.mxu0 0.0
      %897 = vmatprep.subr.mxu0 0.0
      %898 = vmatpush1.msra.mxu0 0.0
      %899 = vmatprep.subr.mxu0 0.0
      %900 = vmatpush1.msra.mxu0 0.0
      %901 = vmatprep.subr.mxu0 0.0
      %902 = vmatpush1.msra.mxu0 0.0
      %903 = vmatprep.subr.mxu0 0.0
      %904 = vmatpush1.msra.mxu0 %v779
      %905 = vmatprep.subr.mxu0 0.0
      %906 = vmatpush1.msra.mxu0 %v774
      %907 = vmatprep.subr.mxu0 0.0
      %908 = vmatpush2.msra.mxu0 0.0
      %909 = vmatprep.subr.mxu0 0.0
      %910 = vmatpush2.msra.mxu0 0.0
      %911 = vmatprep.subr.mxu0 0.0
      %912 = vmatpush2.msra.mxu0 0.0
      %913 = vmatprep.subr.mxu0 0.0
      %914 = vmatpush2.msra.mxu0 0.0
      %915 = vmatprep.subr.mxu0 0.0
      %916 = vmatpush2.msra.mxu0 0.0
      %917 = vmatprep.subr.mxu0 0.0
      %918 = vmatpush2.msra.mxu0 0.0
      %919 = vmatprep.subr.mxu0 0.0
      %920 = vmatpush2.msra.mxu0 0.0
      %921 = vmatprep.subr.mxu0 0.0
      %922 = vmatpush2.msra.mxu0 0.0
      %923 = vmatprep.subr.mxu0 0.0
      %924 = vmatpush2.msra.mxu0 0.0
      %925 = vmatprep.subr.mxu0 0.0
      %926 = vmatpush2.msra.mxu0 0.0
      %927 = vmatprep.subr.mxu0 0.0
      %928 = vmatpush2.msra.mxu0 0.0
      %929 = vmatprep.subr.mxu0 0.0
      %930 = vmatpush2.msra.mxu0 0.0
      %931 = vmatprep.subr.mxu0 0.0
      %932 = vmatpush2.msra.mxu0 0.0
      %933 = vmatprep.subr.mxu0 0.0
      %934 = vmatpush2.msra.mxu0 0.0
      %935 = vmatprep.subr.mxu0 0.0
      %936 = vmatpush2.msra.mxu0 0.0
      %937 = vmatprep.subr.mxu0 0.0
      %938 = vmatpush2.msra.mxu0 0.0
      %939 = vmatprep.mubr.f32.mxu0 0.0
      %940 = vmatmul.mubr.f32.gmra.mxu0 %v870
      %v941 = vpop.f32.mrf.mxu0
      %v942 = vadd.f32 0.0, %v941
      %v943 = vpop.f32.mrf.mxu0
      %944 = vmatprep.mubr.f32.mxu0 0.0
      %945 = vmatmul.mubr.f32.gmra.mxu0 %v873
      %v946 = vpop.f32.mrf.mxu0
      %v947 = vadd.f32 0.0, %v946
      %v948 = vpop.f32.mrf.mxu0
      %949 = vdwg.mxu0
      %s950 = scalar_lea.vmem %s2, 32
      %v951 = vld [vmem:[%s950] sm:$0xff]
      %v952 = vld [vmem:[%s950 + $0x8] sm:$0xff]
      %v954 = vsel %vm784, %v951, 0
      %v957 = vsel %vm784, %v952, 0
      %959 = vmatprep.subr.mxu0 0.0
      %960 = vmatpush1.msra.mxu0 0.0
      %961 = vmatprep.subr.mxu0 0.0
      %962 = vmatpush1.msra.mxu0 0.0
      %963 = vmatprep.subr.mxu0 0.0
      %964 = vmatpush1.msra.mxu0 0.0
      %965 = vmatprep.subr.mxu0 0.0
      %966 = vmatpush1.msra.mxu0 0.0
      %967 = vmatprep.subr.mxu0 0.0
      %968 = vmatpush1.msra.mxu0 0.0
      %969 = vmatprep.subr.mxu0 0.0
      %970 = vmatpush1.msra.mxu0 0.0
      %971 = vmatprep.subr.mxu0 0.0
      %972 = vmatpush1.msra.mxu0 0.0
      %973 = vmatprep.subr.mxu0 0.0
      %974 = vmatpush1.msra.mxu0 0.0
      %975 = vmatprep.subr.mxu0 0.0
      %976 = vmatpush1.msra.mxu0 0.0
      %977 = vmatprep.subr.mxu0 0.0
      %978 = vmatpush1.msra.mxu0 0.0
      %979 = vmatprep.subr.mxu0 0.0
      %980 = vmatpush1.msra.mxu0 0.0
      %981 = vmatprep.subr.mxu0 0.0
      %982 = vmatpush1.msra.mxu0 0.0
      %983 = vmatprep.subr.mxu0 0.0
      %984 = vmatpush1.msra.mxu0 0.0
      %985 = vmatprep.subr.mxu0 0.0
      %986 = vmatpush1.msra.mxu0 0.0
      %987 = vmatprep.subr.mxu0 0.0
      %988 = vmatpush1.msra.mxu0 %v779
      %989 = vmatprep.subr.mxu0 0.0
      %990 = vmatpush1.msra.mxu0 %v774
      %991 = vmatprep.subr.mxu0 0.0
      %992 = vmatpush2.msra.mxu0 0.0
      %993 = vmatprep.subr.mxu0 0.0
      %994 = vmatpush2.msra.mxu0 0.0
      %995 = vmatprep.subr.mxu0 0.0
      %996 = vmatpush2.msra.mxu0 0.0
      %997 = vmatprep.subr.mxu0 0.0
      %998 = vmatpush2.msra.mxu0 0.0
      %999 = vmatprep.subr.mxu0 0.0
      %1000 = vmatpush2.msra.mxu0 0.0
      %1001 = vmatprep.subr.mxu0 0.0
      %1002 = vmatpush2.msra.mxu0 0.0
      %1003 = vmatprep.subr.mxu0 0.0
      %1004 = vmatpush2.msra.mxu0 0.0
      %1005 = vmatprep.subr.mxu0 0.0
      %1006 = vmatpush2.msra.mxu0 0.0
      %1007 = vmatprep.subr.mxu0 0.0
      %1008 = vmatpush2.msra.mxu0 0.0
      %1009 = vmatprep.subr.mxu0 0.0
      %1010 = vmatpush2.msra.mxu0 0.0
      %1011 = vmatprep.subr.mxu0 0.0
      %1012 = vmatpush2.msra.mxu0 0.0
      %1013 = vmatprep.subr.mxu0 0.0
      %1014 = vmatpush2.msra.mxu0 0.0
      %1015 = vmatprep.subr.mxu0 0.0
      %1016 = vmatpush2.msra.mxu0 0.0
      %1017 = vmatprep.subr.mxu0 0.0
      %1018 = vmatpush2.msra.mxu0 0.0
      %1019 = vmatprep.subr.mxu0 0.0
      %1020 = vmatpush2.msra.mxu0 0.0
      %1021 = vmatprep.subr.mxu0 0.0
      %1022 = vmatpush2.msra.mxu0 0.0
      %1023 = vmatprep.mubr.f32.mxu0 0.0
      %1024 = vmatmul.mubr.f32.gmra.mxu0 %v954
      %v1025 = vpop.f32.mrf.mxu0
      %v1026 = vadd.f32 0.0, %v1025
      %v1027 = vpop.f32.mrf.mxu0
      %1028 = vmatprep.mubr.f32.mxu0 0.0
      %1029 = vmatmul.mubr.f32.gmra.mxu0 %v957
      %v1030 = vpop.f32.mrf.mxu0
      %v1031 = vadd.f32 0.0, %v1030
      %v1032 = vpop.f32.mrf.mxu0
      %1033 = vdwg.mxu0
      %s1034 = scalar_lea.vmem %s2, 48
      %v1035 = vld [vmem:[%s1034] sm:$0xff]
      %v1036 = vld [vmem:[%s1034 + $0x8] sm:$0xff]
      %v1038 = vsel %vm784, %v1035, 0
      %v1041 = vsel %vm784, %v1036, 0
      %1043 = vmatprep.subr.mxu0 0.0
      %1044 = vmatpush1.msra.mxu0 0.0
      %1045 = vmatprep.subr.mxu0 0.0
      %1046 = vmatpush1.msra.mxu0 0.0
      %1047 = vmatprep.subr.mxu0 0.0
      %1048 = vmatpush1.msra.mxu0 0.0
      %1049 = vmatprep.subr.mxu0 0.0
      %1050 = vmatpush1.msra.mxu0 0.0
      %1051 = vmatprep.subr.mxu0 0.0
      %1052 = vmatpush1.msra.mxu0 0.0
      %1053 = vmatprep.subr.mxu0 0.0
      %1054 = vmatpush1.msra.mxu0 0.0
      %1055 = vmatprep.subr.mxu0 0.0
      %1056 = vmatpush1.msra.mxu0 0.0
      %1057 = vmatprep.subr.mxu0 0.0
      %1058 = vmatpush1.msra.mxu0 0.0
      %1059 = vmatprep.subr.mxu0 0.0
      %1060 = vmatpush1.msra.mxu0 0.0
      %1061 = vmatprep.subr.mxu0 0.0
      %1062 = vmatpush1.msra.mxu0 0.0
      %1063 = vmatprep.subr.mxu0 0.0
      %1064 = vmatpush1.msra.mxu0 0.0
      %1065 = vmatprep.subr.mxu0 0.0
      %1066 = vmatpush1.msra.mxu0 0.0
      %1067 = vmatprep.subr.mxu0 0.0
      %1068 = vmatpush1.msra.mxu0 0.0
      %1069 = vmatprep.subr.mxu0 0.0
      %1070 = vmatpush1.msra.mxu0 0.0
      %1071 = vmatprep.subr.mxu0 0.0
      %1072 = vmatpush1.msra.mxu0 %v779
      %1073 = vmatprep.subr.mxu0 0.0
      %1074 = vmatpush1.msra.mxu0 %v774
      %1075 = vmatprep.subr.mxu0 0.0
      %1076 = vmatpush2.msra.mxu0 0.0
      %1077 = vmatprep.subr.mxu0 0.0
      %1078 = vmatpush2.msra.mxu0 0.0
      %1079 = vmatprep.subr.mxu0 0.0
      %1080 = vmatpush2.msra.mxu0 0.0
      %1081 = vmatprep.subr.mxu0 0.0
      %1082 = vmatpush2.msra.mxu0 0.0
      %1083 = vmatprep.subr.mxu0 0.0
      %1084 = vmatpush2.msra.mxu0 0.0
      %1085 = vmatprep.subr.mxu0 0.0
      %1086 = vmatpush2.msra.mxu0 0.0
      %1087 = vmatprep.subr.mxu0 0.0
      %1088 = vmatpush2.msra.mxu0 0.0
      %1089 = vmatprep.subr.mxu0 0.0
      %1090 = vmatpush2.msra.mxu0 0.0
      %1091 = vmatprep.subr.mxu0 0.0
      %1092 = vmatpush2.msra.mxu0 0.0
      %1093 = vmatprep.subr.mxu0 0.0
      %1094 = vmatpush2.msra.mxu0 0.0
      %1095 = vmatprep.subr.mxu0 0.0
      %1096 = vmatpush2.msra.mxu0 0.0
      %1097 = vmatprep.subr.mxu0 0.0
      %1098 = vmatpush2.msra.mxu0 0.0
      %1099 = vmatprep.subr.mxu0 0.0
      %1100 = vmatpush2.msra.mxu0 0.0
      %1101 = vmatprep.subr.mxu0 0.0
      %1102 = vmatpush2.msra.mxu0 0.0
      %1103 = vmatprep.subr.mxu0 0.0
      %1104 = vmatpush2.msra.mxu0 0.0
      %1105 = vmatprep.subr.mxu0 0.0
      %1106 = vmatpush2.msra.mxu0 0.0
      %1107 = vmatprep.mubr.f32.mxu0 0.0
      %1108 = vmatmul.mubr.f32.gmra.mxu0 %v1038
      %v1109 = vpop.f32.mrf.mxu0
      %v1110 = vadd.f32 0.0, %v1109
      %v1111 = vpop.f32.mrf.mxu0
      %1112 = vmatprep.mubr.f32.mxu0 0.0
      %1113 = vmatmul.mubr.f32.gmra.mxu0 %v1041
      %v1114 = vpop.f32.mrf.mxu0
      %v1115 = vadd.f32 0.0, %v1114
      %v1116 = vpop.f32.mrf.mxu0
      %1117 = vdwg.mxu0
      %s1118 = scalar_lea.vmem %s2, 64
      %v1119 = vld [vmem:[%s1118] sm:$0xff]
      %v1120 = vld [vmem:[%s1118 + $0x8] sm:$0xff]
      %v1122 = vsel %vm784, %v1119, 0
      %v1125 = vsel %vm784, %v1120, 0
      %1127 = vmatprep.subr.mxu0 0.0
      %1128 = vmatpush1.msra.mxu0 0.0
      %1129 = vmatprep.subr.mxu0 0.0
      %1130 = vmatpush1.msra.mxu0 0.0
      %1131 = vmatprep.subr.mxu0 0.0
      %1132 = vmatpush1.msra.mxu0 0.0
      %1133 = vmatprep.subr.mxu0 0.0
      %1134 = vmatpush1.msra.mxu0 0.0
      %1135 = vmatprep.subr.mxu0 0.0
      %1136 = vmatpush1.msra.mxu0 0.0
      %1137 = vmatprep.subr.mxu0 0.0
      %1138 = vmatpush1.msra.mxu0 0.0
      %1139 = vmatprep.subr.mxu0 0.0
      %1140 = vmatpush1.msra.mxu0 0.0
      %1141 = vmatprep.subr.mxu0 0.0
      %1142 = vmatpush1.msra.mxu0 0.0
      %1143 = vmatprep.subr.mxu0 0.0
      %1144 = vmatpush1.msra.mxu0 0.0
      %1145 = vmatprep.subr.mxu0 0.0
      %1146 = vmatpush1.msra.mxu0 0.0
      %1147 = vmatprep.subr.mxu0 0.0
      %1148 = vmatpush1.msra.mxu0 0.0
      %1149 = vmatprep.subr.mxu0 0.0
      %1150 = vmatpush1.msra.mxu0 0.0
      %1151 = vmatprep.subr.mxu0 0.0
      %1152 = vmatpush1.msra.mxu0 0.0
      %1153 = vmatprep.subr.mxu0 0.0
      %1154 = vmatpush1.msra.mxu0 0.0
      %1155 = vmatprep.subr.mxu0 0.0
      %1156 = vmatpush1.msra.mxu0 %v779
      %1157 = vmatprep.subr.mxu0 0.0
      %1158 = vmatpush1.msra.mxu0 %v774
      %1159 = vmatprep.subr.mxu0 0.0
      %1160 = vmatpush2.msra.mxu0 0.0
      %1161 = vmatprep.subr.mxu0 0.0
      %1162 = vmatpush2.msra.mxu0 0.0
      %1163 = vmatprep.subr.mxu0 0.0
      %1164 = vmatpush2.msra.mxu0 0.0
      %1165 = vmatprep.subr.mxu0 0.0
      %1166 = vmatpush2.msra.mxu0 0.0
      %1167 = vmatprep.subr.mxu0 0.0
      %1168 = vmatpush2.msra.mxu0 0.0
      %1169 = vmatprep.subr.mxu0 0.0
      %1170 = vmatpush2.msra.mxu0 0.0
      %1171 = vmatprep.subr.mxu0 0.0
      %1172 = vmatpush2.msra.mxu0 0.0
      %1173 = vmatprep.subr.mxu0 0.0
      %1174 = vmatpush2.msra.mxu0 0.0
      %1175 = vmatprep.subr.mxu0 0.0
      %1176 = vmatpush2.msra.mxu0 0.0
      %1177 = vmatprep.subr.mxu0 0.0
      %1178 = vmatpush2.msra.mxu0 0.0
      %1179 = vmatprep.subr.mxu0 0.0
      %1180 = vmatpush2.msra.mxu0 0.0
      %1181 = vmatprep.subr.mxu0 0.0
      %1182 = vmatpush2.msra.mxu0 0.0
      %1183 = vmatprep.subr.mxu0 0.0
      %1184 = vmatpush2.msra.mxu0 0.0
      %1185 = vmatprep.subr.mxu0 0.0
      %1186 = vmatpush2.msra.mxu0 0.0
      %1187 = vmatprep.subr.mxu0 0.0
      %1188 = vmatpush2.msra.mxu0 0.0
      %1189 = vmatprep.subr.mxu0 0.0
      %1190 = vmatpush2.msra.mxu0 0.0
      %1191 = vmatprep.mubr.f32.mxu0 0.0
      %1192 = vmatmul.mubr.f32.gmra.mxu0 %v1122
      %v1193 = vpop.f32.mrf.mxu0
      %v1194 = vadd.f32 0.0, %v1193
      %v1195 = vpop.f32.mrf.mxu0
      %1196 = vmatprep.mubr.f32.mxu0 0.0
      %1197 = vmatmul.mubr.f32.gmra.mxu0 %v1125
      %v1198 = vpop.f32.mrf.mxu0
      %v1199 = vadd.f32 0.0, %v1198
      %v1200 = vpop.f32.mrf.mxu0
      %1201 = vdwg.mxu0
      %s1202 = scalar_lea.vmem %s2, 80
      %v1203 = vld [vmem:[%s1202] sm:$0xff]
      %v1204 = vld [vmem:[%s1202 + $0x8] sm:$0xff]
      %v1206 = vsel %vm784, %v1203, 0
      %v1209 = vsel %vm784, %v1204, 0
      %1211 = vmatprep.subr.mxu0 0.0
      %1212 = vmatpush1.msra.mxu0 0.0
      %1213 = vmatprep.subr.mxu0 0.0
      %1214 = vmatpush1.msra.mxu0 0.0
      %1215 = vmatprep.subr.mxu0 0.0
      %1216 = vmatpush1.msra.mxu0 0.0
      %1217 = vmatprep.subr.mxu0 0.0
      %1218 = vmatpush1.msra.mxu0 0.0
      %1219 = vmatprep.subr.mxu0 0.0
      %1220 = vmatpush1.msra.mxu0 0.0
      %1221 = vmatprep.subr.mxu0 0.0
      %1222 = vmatpush1.msra.mxu0 0.0
      %1223 = vmatprep.subr.mxu0 0.0
      %1224 = vmatpush1.msra.mxu0 0.0
      %1225 = vmatprep.subr.mxu0 0.0
      %1226 = vmatpush1.msra.mxu0 0.0
      %1227 = vmatprep.subr.mxu0 0.0
      %1228 = vmatpush1.msra.mxu0 0.0
      %1229 = vmatprep.subr.mxu0 0.0
      %1230 = vmatpush1.msra.mxu0 0.0
      %1231 = vmatprep.subr.mxu0 0.0
      %1232 = vmatpush1.msra.mxu0 0.0
      %1233 = vmatprep.subr.mxu0 0.0
      %1234 = vmatpush1.msra.mxu0 0.0
      %1235 = vmatprep.subr.mxu0 0.0
      %1236 = vmatpush1.msra.mxu0 0.0
      %1237 = vmatprep.subr.mxu0 0.0
      %1238 = vmatpush1.msra.mxu0 0.0
      %1239 = vmatprep.subr.mxu0 0.0
      %1240 = vmatpush1.msra.mxu0 %v779
      %1241 = vmatprep.subr.mxu0 0.0
      %1242 = vmatpush1.msra.mxu0 %v774
      %1243 = vmatprep.subr.mxu0 0.0
      %1244 = vmatpush2.msra.mxu0 0.0
      %1245 = vmatprep.subr.mxu0 0.0
      %1246 = vmatpush2.msra.mxu0 0.0
      %1247 = vmatprep.subr.mxu0 0.0
      %1248 = vmatpush2.msra.mxu0 0.0
      %1249 = vmatprep.subr.mxu0 0.0
      %1250 = vmatpush2.msra.mxu0 0.0
      %1251 = vmatprep.subr.mxu0 0.0
      %1252 = vmatpush2.msra.mxu0 0.0
      %1253 = vmatprep.subr.mxu0 0.0
      %1254 = vmatpush2.msra.mxu0 0.0
      %1255 = vmatprep.subr.mxu0 0.0
      %1256 = vmatpush2.msra.mxu0 0.0
      %1257 = vmatprep.subr.mxu0 0.0
      %1258 = vmatpush2.msra.mxu0 0.0
      %1259 = vmatprep.subr.mxu0 0.0
      %1260 = vmatpush2.msra.mxu0 0.0
      %1261 = vmatprep.subr.mxu0 0.0
      %1262 = vmatpush2.msra.mxu0 0.0
      %1263 = vmatprep.subr.mxu0 0.0
      %1264 = vmatpush2.msra.mxu0 0.0
      %1265 = vmatprep.subr.mxu0 0.0
      %1266 = vmatpush2.msra.mxu0 0.0
      %1267 = vmatprep.subr.mxu0 0.0
      %1268 = vmatpush2.msra.mxu0 0.0
      %1269 = vmatprep.subr.mxu0 0.0
      %1270 = vmatpush2.msra.mxu0 0.0
      %1271 = vmatprep.subr.mxu0 0.0
      %1272 = vmatpush2.msra.mxu0 0.0
      %1273 = vmatprep.subr.mxu0 0.0
      %1274 = vmatpush2.msra.mxu0 0.0
      %1275 = vmatprep.mubr.f32.mxu0 0.0
      %1276 = vmatmul.mubr.f32.gmra.mxu0 %v1206
      %v1277 = vpop.f32.mrf.mxu0
      %v1278 = vadd.f32 0.0, %v1277
      %v1279 = vpop.f32.mrf.mxu0
      %1280 = vmatprep.mubr.f32.mxu0 0.0
      %1281 = vmatmul.mubr.f32.gmra.mxu0 %v1209
      %v1282 = vpop.f32.mrf.mxu0
      %v1283 = vadd.f32 0.0, %v1282
      %v1284 = vpop.f32.mrf.mxu0
      %1285 = vdwg.mxu0
      %s1286 = scalar_lea.vmem %s2, 96
      %v1287 = vld [vmem:[%s1286] sm:$0xff]
      %v1288 = vld [vmem:[%s1286 + $0x8] sm:$0xff]
      %v1290 = vsel %vm784, %v1287, 0
      %v1293 = vsel %vm784, %v1288, 0
      %1295 = vmatprep.subr.mxu0 0.0
      %1296 = vmatpush1.msra.mxu0 0.0
      %1297 = vmatprep.subr.mxu0 0.0
      %1298 = vmatpush1.msra.mxu0 0.0
      %1299 = vmatprep.subr.mxu0 0.0
      %1300 = vmatpush1.msra.mxu0 0.0
      %1301 = vmatprep.subr.mxu0 0.0
      %1302 = vmatpush1.msra.mxu0 0.0
      %1303 = vmatprep.subr.mxu0 0.0
      %1304 = vmatpush1.msra.mxu0 0.0
      %1305 = vmatprep.subr.mxu0 0.0
      %1306 = vmatpush1.msra.mxu0 0.0
      %1307 = vmatprep.subr.mxu0 0.0
      %1308 = vmatpush1.msra.mxu0 0.0
      %1309 = vmatprep.subr.mxu0 0.0
      %1310 = vmatpush1.msra.mxu0 0.0
      %1311 = vmatprep.subr.mxu0 0.0
      %1312 = vmatpush1.msra.mxu0 0.0
      %1313 = vmatprep.subr.mxu0 0.0
      %1314 = vmatpush1.msra.mxu0 0.0
      %1315 = vmatprep.subr.mxu0 0.0
      %1316 = vmatpush1.msra.mxu0 0.0
      %1317 = vmatprep.subr.mxu0 0.0
      %1318 = vmatpush1.msra.mxu0 0.0
      %1319 = vmatprep.subr.mxu0 0.0
      %1320 = vmatpush1.msra.mxu0 0.0
      %1321 = vmatprep.subr.mxu0 0.0
      %1322 = vmatpush1.msra.mxu0 0.0
      %1323 = vmatprep.subr.mxu0 0.0
      %1324 = vmatpush1.msra.mxu0 %v779
      %1325 = vmatprep.subr.mxu0 0.0
      %1326 = vmatpush1.msra.mxu0 %v774
      %1327 = vmatprep.subr.mxu0 0.0
      %1328 = vmatpush2.msra.mxu0 0.0
      %1329 = vmatprep.subr.mxu0 0.0
      %1330 = vmatpush2.msra.mxu0 0.0
      %1331 = vmatprep.subr.mxu0 0.0
      %1332 = vmatpush2.msra.mxu0 0.0
      %1333 = vmatprep.subr.mxu0 0.0
      %1334 = vmatpush2.msra.mxu0 0.0
      %1335 = vmatprep.subr.mxu0 0.0
      %1336 = vmatpush2.msra.mxu0 0.0
      %1337 = vmatprep.subr.mxu0 0.0
      %1338 = vmatpush2.msra.mxu0 0.0
      %1339 = vmatprep.subr.mxu0 0.0
      %1340 = vmatpush2.msra.mxu0 0.0
      %1341 = vmatprep.subr.mxu0 0.0
      %1342 = vmatpush2.msra.mxu0 0.0
      %1343 = vmatprep.subr.mxu0 0.0
      %1344 = vmatpush2.msra.mxu0 0.0
      %1345 = vmatprep.subr.mxu0 0.0
      %1346 = vmatpush2.msra.mxu0 0.0
      %1347 = vmatprep.subr.mxu0 0.0
      %1348 = vmatpush2.msra.mxu0 0.0
      %1349 = vmatprep.subr.mxu0 0.0
      %1350 = vmatpush2.msra.mxu0 0.0
      %1351 = vmatprep.subr.mxu0 0.0
      %1352 = vmatpush2.msra.mxu0 0.0
      %1353 = vmatprep.subr.mxu0 0.0
      %1354 = vmatpush2.msra.mxu0 0.0
      %1355 = vmatprep.subr.mxu0 0.0
      %1356 = vmatpush2.msra.mxu0 0.0
      %1357 = vmatprep.subr.mxu0 0.0
      %1358 = vmatpush2.msra.mxu0 0.0
      %1359 = vmatprep.mubr.f32.mxu0 0.0
      %1360 = vmatmul.mubr.f32.gmra.mxu0 %v1290
      %v1361 = vpop.f32.mrf.mxu0
      %v1362 = vadd.f32 0.0, %v1361
      %v1363 = vpop.f32.mrf.mxu0
      %1364 = vmatprep.mubr.f32.mxu0 0.0
      %1365 = vmatmul.mubr.f32.gmra.mxu0 %v1293
      %v1366 = vpop.f32.mrf.mxu0
      %v1367 = vadd.f32 0.0, %v1366
      %v1368 = vpop.f32.mrf.mxu0
      %1369 = vdwg.mxu0
      %s1370 = scalar_lea.vmem %s2, 112
      %v1371 = vld [vmem:[%s1370] sm:$0xff]
      %v1372 = vld [vmem:[%s1370 + $0x8] sm:$0xff]
      %v1374 = vsel %vm784, %v1371, 0
      %v1377 = vsel %vm784, %v1372, 0
      %1379 = vmatprep.subr.mxu0 0.0
      %1380 = vmatpush1.msra.mxu0 0.0
      %1381 = vmatprep.subr.mxu0 0.0
      %1382 = vmatpush1.msra.mxu0 0.0
      %1383 = vmatprep.subr.mxu0 0.0
      %1384 = vmatpush1.msra.mxu0 0.0
      %1385 = vmatprep.subr.mxu0 0.0
      %1386 = vmatpush1.msra.mxu0 0.0
      %1387 = vmatprep.subr.mxu0 0.0
      %1388 = vmatpush1.msra.mxu0 0.0
      %1389 = vmatprep.subr.mxu0 0.0
      %1390 = vmatpush1.msra.mxu0 0.0
      %1391 = vmatprep.subr.mxu0 0.0
      %1392 = vmatpush1.msra.mxu0 0.0
      %1393 = vmatprep.subr.mxu0 0.0
      %1394 = vmatpush1.msra.mxu0 0.0
      %1395 = vmatprep.subr.mxu0 0.0
      %1396 = vmatpush1.msra.mxu0 0.0
      %1397 = vmatprep.subr.mxu0 0.0
      %1398 = vmatpush1.msra.mxu0 0.0
      %1399 = vmatprep.subr.mxu0 0.0
      %1400 = vmatpush1.msra.mxu0 0.0
      %1401 = vmatprep.subr.mxu0 0.0
      %1402 = vmatpush1.msra.mxu0 0.0
      %1403 = vmatprep.subr.mxu0 0.0
      %1404 = vmatpush1.msra.mxu0 0.0
      %1405 = vmatprep.subr.mxu0 0.0
      %1406 = vmatpush1.msra.mxu0 0.0
      %1407 = vmatprep.subr.mxu0 0.0
      %1408 = vmatpush1.msra.mxu0 %v779
      %1409 = vmatprep.subr.mxu0 0.0
      %1410 = vmatpush1.msra.mxu0 %v774
      %1411 = vmatprep.subr.mxu0 0.0
      %1412 = vmatpush2.msra.mxu0 0.0
      %1413 = vmatprep.subr.mxu0 0.0
      %1414 = vmatpush2.msra.mxu0 0.0
      %1415 = vmatprep.subr.mxu0 0.0
      %1416 = vmatpush2.msra.mxu0 0.0
      %1417 = vmatprep.subr.mxu0 0.0
      %1418 = vmatpush2.msra.mxu0 0.0
      %1419 = vmatprep.subr.mxu0 0.0
      %1420 = vmatpush2.msra.mxu0 0.0
      %1421 = vmatprep.subr.mxu0 0.0
      %1422 = vmatpush2.msra.mxu0 0.0
      %1423 = vmatprep.subr.mxu0 0.0
      %1424 = vmatpush2.msra.mxu0 0.0
      %1425 = vmatprep.subr.mxu0 0.0
      %1426 = vmatpush2.msra.mxu0 0.0
      %1427 = vmatprep.subr.mxu0 0.0
      %1428 = vmatpush2.msra.mxu0 0.0
      %1429 = vmatprep.subr.mxu0 0.0
      %1430 = vmatpush2.msra.mxu0 0.0
      %1431 = vmatprep.subr.mxu0 0.0
      %1432 = vmatpush2.msra.mxu0 0.0
      %1433 = vmatprep.subr.mxu0 0.0
      %1434 = vmatpush2.msra.mxu0 0.0
      %1435 = vmatprep.subr.mxu0 0.0
      %1436 = vmatpush2.msra.mxu0 0.0
      %1437 = vmatprep.subr.mxu0 0.0
      %1438 = vmatpush2.msra.mxu0 0.0
      %1439 = vmatprep.subr.mxu0 0.0
      %1440 = vmatpush2.msra.mxu0 0.0
      %1441 = vmatprep.subr.mxu0 0.0
      %1442 = vmatpush2.msra.mxu0 0.0
      %1443 = vmatprep.mubr.f32.mxu0 0.0
      %1444 = vmatmul.mubr.f32.gmra.mxu0 %v1374
      %v1445 = vpop.f32.mrf.mxu0
      %v1446 = vadd.f32 0.0, %v1445
      %v1447 = vpop.f32.mrf.mxu0
      %1448 = vmatprep.mubr.f32.mxu0 0.0
      %1449 = vmatmul.mubr.f32.gmra.mxu0 %v1377
      %v1450 = vpop.f32.mrf.mxu0
      %v1451 = vadd.f32 0.0, %v1450
      %v1452 = vpop.f32.mrf.mxu0
      %1453 = vdwg.mxu0
      %s1454 = scalar_lea.vmem %s2, 128
      %v1455 = vld [vmem:[%s1454] sm:$0xff]
      %v1456 = vld [vmem:[%s1454 + $0x8] sm:$0xff]
      %v1458 = vsel %vm784, %v1455, 0
      %v1461 = vsel %vm784, %v1456, 0
      %1463 = vmatprep.subr.mxu0 0.0
      %1464 = vmatpush1.msra.mxu0 0.0
      %1465 = vmatprep.subr.mxu0 0.0
      %1466 = vmatpush1.msra.mxu0 0.0
      %1467 = vmatprep.subr.mxu0 0.0
      %1468 = vmatpush1.msra.mxu0 0.0
      %1469 = vmatprep.subr.mxu0 0.0
      %1470 = vmatpush1.msra.mxu0 0.0
      %1471 = vmatprep.subr.mxu0 0.0
      %1472 = vmatpush1.msra.mxu0 0.0
      %1473 = vmatprep.subr.mxu0 0.0
      %1474 = vmatpush1.msra.mxu0 0.0
      %1475 = vmatprep.subr.mxu0 0.0
      %1476 = vmatpush1.msra.mxu0 0.0
      %1477 = vmatprep.subr.mxu0 0.0
      %1478 = vmatpush1.msra.mxu0 0.0
      %1479 = vmatprep.subr.mxu0 0.0
      %1480 = vmatpush1.msra.mxu0 0.0
      %1481 = vmatprep.subr.mxu0 0.0
      %1482 = vmatpush1.msra.mxu0 0.0
      %1483 = vmatprep.subr.mxu0 0.0
      %1484 = vmatpush1.msra.mxu0 0.0
      %1485 = vmatprep.subr.mxu0 0.0
      %1486 = vmatpush1.msra.mxu0 0.0
      %1487 = vmatprep.subr.mxu0 0.0
      %1488 = vmatpush1.msra.mxu0 0.0
      %1489 = vmatprep.subr.mxu0 0.0
      %1490 = vmatpush1.msra.mxu0 0.0
      %1491 = vmatprep.subr.mxu0 0.0
      %1492 = vmatpush1.msra.mxu0 %v779
      %1493 = vmatprep.subr.mxu0 0.0
      %1494 = vmatpush1.msra.mxu0 %v774
      %1495 = vmatprep.subr.mxu0 0.0
      %1496 = vmatpush2.msra.mxu0 0.0
      %1497 = vmatprep.subr.mxu0 0.0
      %1498 = vmatpush2.msra.mxu0 0.0
      %1499 = vmatprep.subr.mxu0 0.0
      %1500 = vmatpush2.msra.mxu0 0.0
      %1501 = vmatprep.subr.mxu0 0.0
      %1502 = vmatpush2.msra.mxu0 0.0
      %1503 = vmatprep.subr.mxu0 0.0
      %1504 = vmatpush2.msra.mxu0 0.0
      %1505 = vmatprep.subr.mxu0 0.0
      %1506 = vmatpush2.msra.mxu0 0.0
      %1507 = vmatprep.subr.mxu0 0.0
      %1508 = vmatpush2.msra.mxu0 0.0
      %1509 = vmatprep.subr.mxu0 0.0
      %1510 = vmatpush2.msra.mxu0 0.0
      %1511 = vmatprep.subr.mxu0 0.0
      %1512 = vmatpush2.msra.mxu0 0.0
      %1513 = vmatprep.subr.mxu0 0.0
      %1514 = vmatpush2.msra.mxu0 0.0
      %1515 = vmatprep.subr.mxu0 0.0
      %1516 = vmatpush2.msra.mxu0 0.0
      %1517 = vmatprep.subr.mxu0 0.0
      %1518 = vmatpush2.msra.mxu0 0.0
      %1519 = vmatprep.subr.mxu0 0.0
      %1520 = vmatpush2.msra.mxu0 0.0
      %1521 = vmatprep.subr.mxu0 0.0
      %1522 = vmatpush2.msra.mxu0 0.0
      %1523 = vmatprep.subr.mxu0 0.0
      %1524 = vmatpush2.msra.mxu0 0.0
      %1525 = vmatprep.subr.mxu0 0.0
      %1526 = vmatpush2.msra.mxu0 0.0
      %1527 = vmatprep.mubr.f32.mxu0 0.0
      %1528 = vmatmul.mubr.f32.gmra.mxu0 %v1458
      %v1529 = vpop.f32.mrf.mxu0
      %v1530 = vadd.f32 0.0, %v1529
      %v1531 = vpop.f32.mrf.mxu0
      %1532 = vmatprep.mubr.f32.mxu0 0.0
      %1533 = vmatmul.mubr.f32.gmra.mxu0 %v1461
      %v1534 = vpop.f32.mrf.mxu0
      %v1535 = vadd.f32 0.0, %v1534
      %v1536 = vpop.f32.mrf.mxu0
      %1537 = vdwg.mxu0
      %v1538 = vpack.c.bf16 %v863, %v858
      %v1539 = vpack.c.bf16 %v947, %v942
      %v1540 = vpack.c.bf16 %v1031, %v1026
      %v1541 = vpack.c.bf16 %v1115, %v1110
      %v1542 = vpack.c.bf16 %v1199, %v1194
      %v1543 = vpack.c.bf16 %v1283, %v1278
      %v1544 = vpack.c.bf16 %v1367, %v1362
      %v1545 = vpack.c.bf16 %v1451, %v1446
      %v1546 = vpack.c.bf16 %v1535, %v1530
      %v1547 = vld [vmem:[%s5] sm:$0xf]
      %v1548 = vld [vmem:[%s5 + $0x4] sm:$0xf]
      %v1549 = vld [vmem:[%s5 + $0x8] sm:$0xf]
      %v1550 = vld [vmem:[%s5 + $0xc] sm:$0xf]
      %v1551 = vld [vmem:[%s5 + $0x10] sm:$0xf]
      %v1552 = vld [vmem:[%s5 + $0x14] sm:$0xf]
      %v1553 = vld [vmem:[%s5 + $0x18] sm:$0xf]
      %v1554 = vld [vmem:[%s5 + $0x1c] sm:$0xf]
      %v1555 = vld [vmem:[%s5 + $0x20] sm:$0xf]
      %v1556 = vld [vmem:[%s5 + $0x24] sm:$0xf]
      %v1557 = vld [vmem:[%s5 + $0x28] sm:$0xf]
      %v1558 = vld [vmem:[%s5 + $0x2c] sm:$0xf]
      %v1559 = vld [vmem:[%s5 + $0x30] sm:$0xf]
      %v1560 = vld [vmem:[%s5 + $0x34] sm:$0xf]
      %v1561 = vld [vmem:[%s5 + $0x38] sm:$0xf]
      %v1562 = vld [vmem:[%s5 + $0x3c] sm:$0xf]
      %v1563 = vld [vmem:[%s5 + $0x40] sm:$0xf]
      %v1564 = vld [vmem:[%s5 + $0x44] sm:$0xf]
      %v1565 = vld [vmem:[%s5 + $0x48] sm:$0xf]
      %v1566 = vld [vmem:[%s5 + $0x4c] sm:$0xf]
      %v1567 = vld [vmem:[%s5 + $0x50] sm:$0xf]
      %v1568 = vld [vmem:[%s5 + $0x54] sm:$0xf]
      %v1569 = vld [vmem:[%s5 + $0x58] sm:$0xf]
      %v1570 = vld [vmem:[%s5 + $0x5c] sm:$0xf]
      %v1571 = vld [vmem:[%s5 + $0x60] sm:$0xf]
      %v1572 = vld [vmem:[%s5 + $0x64] sm:$0xf]
      %v1573 = vld [vmem:[%s5 + $0x68] sm:$0xf]
      %v1574 = vld [vmem:[%s5 + $0x6c] sm:$0xf]
      %v1575 = vld [vmem:[%s5 + $0x70] sm:$0xf]
      %v1576 = vld [vmem:[%s5 + $0x74] sm:$0xf]
      %v1577 = vld [vmem:[%s5 + $0x78] sm:$0xf]
      %v1578 = vld [vmem:[%s5 + $0x7c] sm:$0xf]
      %v1579 = vld [vmem:[%s5 + $0x80] sm:$0xf]
      %v1580 = vld [vmem:[%s5 + $0x84] sm:$0xf]
      %v1581 = vld [vmem:[%s5 + $0x88] sm:$0xf]
      %v1582 = vld [vmem:[%s5 + $0x8c] sm:$0xf]
      %v1583 = vld [vmem:[%s5 + $0x90] sm:$0xf]
      %v1584 = vld [vmem:[%s5 + $0x94] sm:$0xf]
      %v1585 = vld [vmem:[%s5 + $0x98] sm:$0xf]
      %v1586 = vld [vmem:[%s5 + $0x9c] sm:$0xf]
      %v1587 = vld [vmem:[%s5 + $0xa0] sm:$0xf]
      %v1588 = vld [vmem:[%s5 + $0xa4] sm:$0xf]
      %v1589 = vld [vmem:[%s5 + $0xa8] sm:$0xf]
      %v1590 = vld [vmem:[%s5 + $0xac] sm:$0xf]
      %v1591 = vld [vmem:[%s5 + $0xb0] sm:$0xf]
      %v1592 = vld [vmem:[%s5 + $0xb4] sm:$0xf]
      %v1593 = vld [vmem:[%s5 + $0xb8] sm:$0xf]
      %v1594 = vld [vmem:[%s5 + $0xbc] sm:$0xf]
      %v1595 = vld [vmem:[%s5 + $0xc0] sm:$0xf]
      %v1596 = vld [vmem:[%s5 + $0xc4] sm:$0xf]
      %v1597 = vld [vmem:[%s5 + $0xc8] sm:$0xf]
      %v1598 = vld [vmem:[%s5 + $0xcc] sm:$0xf]
      %v1599 = vld [vmem:[%s5 + $0xd0] sm:$0xf]
      %v1600 = vld [vmem:[%s5 + $0xd4] sm:$0xf]
      %v1601 = vld [vmem:[%s5 + $0xd8] sm:$0xf]
      %v1602 = vld [vmem:[%s5 + $0xdc] sm:$0xf]
      %v1603 = vld [vmem:[%s5 + $0xe0] sm:$0xf]
      %v1604 = vld [vmem:[%s5 + $0xe4] sm:$0xf]
      %v1605 = vld [vmem:[%s5 + $0xe8] sm:$0xf]
      %v1606 = vld [vmem:[%s5 + $0xec] sm:$0xf]
      %v1607 = vld [vmem:[%s5 + $0xf0] sm:$0xf]
      %v1608 = vld [vmem:[%s5 + $0xf4] sm:$0xf]
      %v1609 = vld [vmem:[%s5 + $0xf8] sm:$0xf]
      %v1610 = vld [vmem:[%s5 + $0xfc] sm:$0xf]
      %v1611 = vld [vmem:[%s5 + $0x100] sm:$0xf]
      %v1612 = vld [vmem:[%s5 + $0x104] sm:$0xf]
      %v1613 = vld [vmem:[%s5 + $0x108] sm:$0xf]
      %v1614 = vld [vmem:[%s5 + $0x10c] sm:$0xf]
      %v1615 = vld [vmem:[%s5 + $0x110] sm:$0xf]
      %v1616 = vld [vmem:[%s5 + $0x114] sm:$0xf]
      %v1617 = vld [vmem:[%s5 + $0x118] sm:$0xf]
      %v1618 = vld [vmem:[%s5 + $0x11c] sm:$0xf]
      %v1619 = vld [vmem:[%s5 + $0x120] sm:$0xf]
      %v1620 = vld [vmem:[%s5 + $0x124] sm:$0xf]
      %v1621 = vld [vmem:[%s5 + $0x128] sm:$0xf]
      %v1622 = vld [vmem:[%s5 + $0x12c] sm:$0xf]
      %v1623 = vld [vmem:[%s5 + $0x130] sm:$0xf]
      %v1624 = vld [vmem:[%s5 + $0x134] sm:$0xf]
      %v1625 = vld [vmem:[%s5 + $0x138] sm:$0xf]
      %v1626 = vld [vmem:[%s5 + $0x13c] sm:$0xf]
      %v1627 = vld [vmem:[%s5 + $0x140] sm:$0xf]
      %v1628 = vld [vmem:[%s5 + $0x144] sm:$0xf]
      %v1629 = vld [vmem:[%s5 + $0x148] sm:$0xf]
      %v1630 = vld [vmem:[%s5 + $0x14c] sm:$0xf]
      %v1631 = vld [vmem:[%s5 + $0x150] sm:$0xf]
      %v1632 = vld [vmem:[%s5 + $0x154] sm:$0xf]
      %v1633 = vld [vmem:[%s5 + $0x158] sm:$0xf]
      %v1634 = vld [vmem:[%s5 + $0x15c] sm:$0xf]
      %v1635 = vld [vmem:[%s5 + $0x160] sm:$0xf]
      %v1636 = vld [vmem:[%s5 + $0x164] sm:$0xf]
      %v1637 = vld [vmem:[%s5 + $0x168] sm:$0xf]
      %v1638 = vld [vmem:[%s5 + $0x16c] sm:$0xf]
      %v1639 = vld [vmem:[%s5 + $0x170] sm:$0xf]
      %v1640 = vld [vmem:[%s5 + $0x174] sm:$0xf]
      %v1641 = vld [vmem:[%s5 + $0x178] sm:$0xf]
      %v1642 = vld [vmem:[%s5 + $0x17c] sm:$0xf]
      %v1643 = vld [vmem:[%s5 + $0x180] sm:$0xf]
      %v1644 = vld [vmem:[%s5 + $0x184] sm:$0xf]
      %v1645 = vld [vmem:[%s5 + $0x188] sm:$0xf]
      %v1646 = vld [vmem:[%s5 + $0x18c] sm:$0xf]
      %v1647 = vld [vmem:[%s5 + $0x190] sm:$0xf]
      %v1648 = vld [vmem:[%s5 + $0x194] sm:$0xf]
      %v1649 = vld [vmem:[%s5 + $0x198] sm:$0xf]
      %v1650 = vld [vmem:[%s5 + $0x19c] sm:$0xf]
      %v1651 = vld [vmem:[%s5 + $0x1a0] sm:$0xf]
      %v1652 = vld [vmem:[%s5 + $0x1a4] sm:$0xf]
      %v1653 = vld [vmem:[%s5 + $0x1a8] sm:$0xf]
      %v1654 = vld [vmem:[%s5 + $0x1ac] sm:$0xf]
      %v1655 = vld [vmem:[%s5 + $0x1b0] sm:$0xf]
      %v1656 = vld [vmem:[%s5 + $0x1b4] sm:$0xf]
      %v1657 = vld [vmem:[%s5 + $0x1b8] sm:$0xf]
      %v1658 = vld [vmem:[%s5 + $0x1bc] sm:$0xf]
      %v1659 = vld [vmem:[%s5 + $0x1c0] sm:$0xf]
      %v1660 = vld [vmem:[%s5 + $0x1c4] sm:$0xf]
      %v1661 = vld [vmem:[%s5 + $0x1c8] sm:$0xf]
      %v1662 = vld [vmem:[%s5 + $0x1cc] sm:$0xf]
      %v1663 = vld [vmem:[%s5 + $0x1d0] sm:$0xf]
      %v1664 = vld [vmem:[%s5 + $0x1d4] sm:$0xf]
      %v1665 = vld [vmem:[%s5 + $0x1d8] sm:$0xf]
      %v1666 = vld [vmem:[%s5 + $0x1dc] sm:$0xf]
      %v1667 = vld [vmem:[%s5 + $0x1e0] sm:$0xf]
      %v1668 = vld [vmem:[%s5 + $0x1e4] sm:$0xf]
      %v1669 = vld [vmem:[%s5 + $0x1e8] sm:$0xf]
      %v1670 = vld [vmem:[%s5 + $0x1ec] sm:$0xf]
      %v1671 = vld [vmem:[%s5 + $0x1f0] sm:$0xf]
      %v1672 = vld [vmem:[%s5 + $0x1f4] sm:$0xf]
      %v1673 = vld [vmem:[%s5 + $0x1f8] sm:$0xf]
      %v1674 = vld [vmem:[%s5 + $0x1fc] sm:$0xf]
      %v1675 = vld [vmem:[%s5 + $0x200] sm:$0xf]
      %v1676 = vld [vmem:[%s5 + $0x204] sm:$0xf]
      %v1677 = vld [vmem:[%s5 + $0x208] sm:$0xf]
      %v1678 = vld [vmem:[%s5 + $0x20c] sm:$0xf]
      %v1679 = vld [vmem:[%s5 + $0x210] sm:$0xf]
      %v1680 = vld [vmem:[%s5 + $0x214] sm:$0xf]
      %v1681 = vld [vmem:[%s5 + $0x218] sm:$0xf]
      %v1682 = vld [vmem:[%s5 + $0x21c] sm:$0xf]
      %v1683 = vld [vmem:[%s5 + $0x220] sm:$0xf]
      %v1684 = vld [vmem:[%s5 + $0x224] sm:$0xf]
      %v1685 = vld [vmem:[%s5 + $0x228] sm:$0xf]
      %v1686 = vld [vmem:[%s5 + $0x22c] sm:$0xf]
      %v1687 = vld [vmem:[%s5 + $0x230] sm:$0xf]
      %v1688 = vld [vmem:[%s5 + $0x234] sm:$0xf]
      %v1689 = vld [vmem:[%s5 + $0x238] sm:$0xf]
      %v1690 = vld [vmem:[%s5 + $0x23c] sm:$0xf]
      %v1691 = vld [vmem:[%s6] sm:$0x1]
      %v1693 = vlaneseq
      %v1694 = vshrl.u32 %v1693, 7
      %v1695 = vsub.s32 0, %v1694
      %v1696 = vrot.slane %v1691, %v1695
      %v1842 = vunpack.c.l.b16 %v1547
      %v1843 = vunpack.c.l.b16 %v1548
      %v1844 = vunpack.c.l.b16 %v1549
      %v1845 = vunpack.c.l.b16 %v1550
      %v1846 = vunpack.c.l.b16 %v1551
      %v1847 = vunpack.c.l.b16 %v1552
      %v1848 = vunpack.c.l.b16 %v1553
      %v1849 = vunpack.c.l.b16 %v1554
      %v1850 = vunpack.c.l.b16 %v1555
      %v1851 = vunpack.c.l.b16 %v1556
      %v1852 = vunpack.c.l.b16 %v1557
      %v1853 = vunpack.c.l.b16 %v1558
      %v1854 = vunpack.c.l.b16 %v1559
      %v1855 = vunpack.c.l.b16 %v1560
      %v1856 = vunpack.c.l.b16 %v1561
      %v1857 = vunpack.c.l.b16 %v1562
      %v1858 = vunpack.c.l.b16 %v1563
      %v1859 = vunpack.c.l.b16 %v1564
      %v1860 = vunpack.c.l.b16 %v1565
      %v1861 = vunpack.c.l.b16 %v1566
      %v1862 = vunpack.c.l.b16 %v1567
      %v1863 = vunpack.c.l.b16 %v1568
      %v1864 = vunpack.c.l.b16 %v1569
      %v1865 = vunpack.c.l.b16 %v1570
      %v1866 = vunpack.c.l.b16 %v1571
      %v1867 = vunpack.c.l.b16 %v1572
      %v1868 = vunpack.c.l.b16 %v1573
      %v1869 = vunpack.c.l.b16 %v1574
      %v1870 = vunpack.c.l.b16 %v1575
      %v1871 = vunpack.c.l.b16 %v1576
      %v1872 = vunpack.c.l.b16 %v1577
      %v1873 = vunpack.c.l.b16 %v1578
      %v1874 = vunpack.c.l.b16 %v1579
      %v1875 = vunpack.c.l.b16 %v1580
      %v1876 = vunpack.c.l.b16 %v1581
      %v1877 = vunpack.c.l.b16 %v1582
      %v1878 = vunpack.c.l.b16 %v1583
      %v1879 = vunpack.c.l.b16 %v1584
      %v1880 = vunpack.c.l.b16 %v1585
      %v1881 = vunpack.c.l.b16 %v1586
      %v1882 = vunpack.c.l.b16 %v1587
      %v1883 = vunpack.c.l.b16 %v1588
      %v1884 = vunpack.c.l.b16 %v1589
      %v1885 = vunpack.c.l.b16 %v1590
      %v1886 = vunpack.c.l.b16 %v1591
      %v1887 = vunpack.c.l.b16 %v1592
      %v1888 = vunpack.c.l.b16 %v1593
      %v1889 = vunpack.c.l.b16 %v1594
      %v1890 = vunpack.c.l.b16 %v1595
      %v1891 = vunpack.c.l.b16 %v1596
      %v1892 = vunpack.c.l.b16 %v1597
      %v1893 = vunpack.c.l.b16 %v1598
      %v1894 = vunpack.c.l.b16 %v1599
      %v1895 = vunpack.c.l.b16 %v1600
      %v1896 = vunpack.c.l.b16 %v1601
      %v1897 = vunpack.c.l.b16 %v1602
      %v1898 = vunpack.c.l.b16 %v1603
      %v1899 = vunpack.c.l.b16 %v1604
      %v1900 = vunpack.c.l.b16 %v1605
      %v1901 = vunpack.c.l.b16 %v1606
      %v1902 = vunpack.c.l.b16 %v1607
      %v1903 = vunpack.c.l.b16 %v1608
      %v1904 = vunpack.c.l.b16 %v1609
      %v1905 = vunpack.c.l.b16 %v1610
      %v1906 = vunpack.c.l.b16 %v1611
      %v1907 = vunpack.c.l.b16 %v1612
      %v1908 = vunpack.c.l.b16 %v1613
      %v1909 = vunpack.c.l.b16 %v1614
      %v1910 = vunpack.c.l.b16 %v1615
      %v1911 = vunpack.c.l.b16 %v1616
      %v1912 = vunpack.c.l.b16 %v1617
      %v1913 = vunpack.c.l.b16 %v1618
      %v1914 = vunpack.c.l.b16 %v1619
      %v1915 = vunpack.c.l.b16 %v1620
      %v1916 = vunpack.c.l.b16 %v1621
      %v1917 = vunpack.c.l.b16 %v1622
      %v1918 = vunpack.c.l.b16 %v1623
      %v1919 = vunpack.c.l.b16 %v1624
      %v1920 = vunpack.c.l.b16 %v1625
      %v1921 = vunpack.c.l.b16 %v1626
      %v1922 = vunpack.c.l.b16 %v1627
      %v1923 = vunpack.c.l.b16 %v1628
      %v1924 = vunpack.c.l.b16 %v1629
      %v1925 = vunpack.c.l.b16 %v1630
      %v1926 = vunpack.c.l.b16 %v1631
      %v1927 = vunpack.c.l.b16 %v1632
      %v1928 = vunpack.c.l.b16 %v1633
      %v1929 = vunpack.c.l.b16 %v1634
      %v1930 = vunpack.c.l.b16 %v1635
      %v1931 = vunpack.c.l.b16 %v1636
      %v1932 = vunpack.c.l.b16 %v1637
      %v1933 = vunpack.c.l.b16 %v1638
      %v1934 = vunpack.c.l.b16 %v1639
      %v1935 = vunpack.c.l.b16 %v1640
      %v1936 = vunpack.c.l.b16 %v1641
      %v1937 = vunpack.c.l.b16 %v1642
      %v1938 = vunpack.c.l.b16 %v1643
      %v1939 = vunpack.c.l.b16 %v1644
      %v1940 = vunpack.c.l.b16 %v1645
      %v1941 = vunpack.c.l.b16 %v1646
      %v1942 = vunpack.c.l.b16 %v1647
      %v1943 = vunpack.c.l.b16 %v1648
      %v1944 = vunpack.c.l.b16 %v1649
      %v1945 = vunpack.c.l.b16 %v1650
      %v1946 = vunpack.c.l.b16 %v1651
      %v1947 = vunpack.c.l.b16 %v1652
      %v1948 = vunpack.c.l.b16 %v1653
      %v1949 = vunpack.c.l.b16 %v1654
      %v1950 = vunpack.c.l.b16 %v1655
      %v1951 = vunpack.c.l.b16 %v1656
      %v1952 = vunpack.c.l.b16 %v1657
      %v1953 = vunpack.c.l.b16 %v1658
      %v1954 = vunpack.c.l.b16 %v1659
      %v1955 = vunpack.c.l.b16 %v1660
      %v1956 = vunpack.c.l.b16 %v1661
      %v1957 = vunpack.c.l.b16 %v1662
      %v1958 = vunpack.c.l.b16 %v1663
      %v1959 = vunpack.c.l.b16 %v1664
      %v1960 = vunpack.c.l.b16 %v1665
      %v1961 = vunpack.c.l.b16 %v1666
      %v1962 = vunpack.c.l.b16 %v1667
      %v1963 = vunpack.c.l.b16 %v1668
      %v1964 = vunpack.c.l.b16 %v1669
      %v1965 = vunpack.c.l.b16 %v1670
      %v1966 = vunpack.c.l.b16 %v1671
      %v1967 = vunpack.c.l.b16 %v1672
      %v1968 = vunpack.c.l.b16 %v1673
      %v1969 = vunpack.c.l.b16 %v1674
      %v1970 = vunpack.c.l.b16 %v1675
      %v1971 = vunpack.c.l.b16 %v1676
      %v1972 = vunpack.c.l.b16 %v1677
      %v1973 = vunpack.c.l.b16 %v1678
      %v1974 = vunpack.c.l.b16 %v1679
      %v1975 = vunpack.c.l.b16 %v1680
      %v1976 = vunpack.c.l.b16 %v1681
      %v1977 = vunpack.c.l.b16 %v1682
      %v1978 = vunpack.c.l.b16 %v1683
      %v1979 = vunpack.c.l.b16 %v1684
      %v1980 = vunpack.c.l.b16 %v1685
      %v1981 = vunpack.c.l.b16 %v1686
      %v1982 = vunpack.c.l.b16 %v1687
      %v1983 = vunpack.c.l.b16 %v1688
      %v1984 = vunpack.c.l.b16 %v1689
      %v1985 = vunpack.c.l.b16 %v1690
      %v1986 = vpack.c.b16 %v1843, %v1842
      %v1987 = vpack.c.b16 %v1845, %v1844
      %v1988 = vpack.c.b16 %v1847, %v1846
      %v1989 = vpack.c.b16 %v1849, %v1848
      %v1990 = vpack.c.b16 %v1851, %v1850
      %v1991 = vpack.c.b16 %v1853, %v1852
      %v1992 = vpack.c.b16 %v1855, %v1854
      %v1993 = vpack.c.b16 %v1857, %v1856
      %v1994 = vpack.c.b16 %v1859, %v1858
      %v1995 = vpack.c.b16 %v1861, %v1860
      %v1996 = vpack.c.b16 %v1863, %v1862
      %v1997 = vpack.c.b16 %v1865, %v1864
      %v1998 = vpack.c.b16 %v1867, %v1866
      %v1999 = vpack.c.b16 %v1869, %v1868
      %v2000 = vpack.c.b16 %v1871, %v1870
      %v2001 = vpack.c.b16 %v1873, %v1872
      %v2002 = vpack.c.b16 %v1875, %v1874
      %v2003 = vpack.c.b16 %v1877, %v1876
      %v2004 = vpack.c.b16 %v1879, %v1878
      %v2005 = vpack.c.b16 %v1881, %v1880
      %v2006 = vpack.c.b16 %v1883, %v1882
      %v2007 = vpack.c.b16 %v1885, %v1884
      %v2008 = vpack.c.b16 %v1887, %v1886
      %v2009 = vpack.c.b16 %v1889, %v1888
      %v2010 = vpack.c.b16 %v1891, %v1890
      %v2011 = vpack.c.b16 %v1893, %v1892
      %v2012 = vpack.c.b16 %v1895, %v1894
      %v2013 = vpack.c.b16 %v1897, %v1896
      %v2014 = vpack.c.b16 %v1899, %v1898
      %v2015 = vpack.c.b16 %v1901, %v1900
      %v2016 = vpack.c.b16 %v1903, %v1902
      %v2017 = vpack.c.b16 %v1905, %v1904
      %v2018 = vpack.c.b16 %v1907, %v1906
      %v2019 = vpack.c.b16 %v1909, %v1908
      %v2020 = vpack.c.b16 %v1911, %v1910
      %v2021 = vpack.c.b16 %v1913, %v1912
      %v2022 = vpack.c.b16 %v1915, %v1914
      %v2023 = vpack.c.b16 %v1917, %v1916
      %v2024 = vpack.c.b16 %v1919, %v1918
      %v2025 = vpack.c.b16 %v1921, %v1920
      %v2026 = vpack.c.b16 %v1923, %v1922
      %v2027 = vpack.c.b16 %v1925, %v1924
      %v2028 = vpack.c.b16 %v1927, %v1926
      %v2029 = vpack.c.b16 %v1929, %v1928
      %v2030 = vpack.c.b16 %v1931, %v1930
      %v2031 = vpack.c.b16 %v1933, %v1932
      %v2032 = vpack.c.b16 %v1935, %v1934
      %v2033 = vpack.c.b16 %v1937, %v1936
      %v2034 = vpack.c.b16 %v1939, %v1938
      %v2035 = vpack.c.b16 %v1941, %v1940
      %v2036 = vpack.c.b16 %v1943, %v1942
      %v2037 = vpack.c.b16 %v1945, %v1944
      %v2038 = vpack.c.b16 %v1947, %v1946
      %v2039 = vpack.c.b16 %v1949, %v1948
      %v2040 = vpack.c.b16 %v1951, %v1950
      %v2041 = vpack.c.b16 %v1953, %v1952
      %v2042 = vpack.c.b16 %v1955, %v1954
      %v2043 = vpack.c.b16 %v1957, %v1956
      %v2044 = vpack.c.b16 %v1959, %v1958
      %v2045 = vpack.c.b16 %v1961, %v1960
      %v2046 = vpack.c.b16 %v1963, %v1962
      %v2047 = vpack.c.b16 %v1965, %v1964
      %v2048 = vpack.c.b16 %v1967, %v1966
      %v2049 = vpack.c.b16 %v1969, %v1968
      %v2050 = vpack.c.b16 %v1971, %v1970
      %v2051 = vpack.c.b16 %v1973, %v1972
      %v2052 = vpack.c.b16 %v1975, %v1974
      %v2053 = vpack.c.b16 %v1977, %v1976
      %v2054 = vpack.c.b16 %v1979, %v1978
      %v2055 = vpack.c.b16 %v1981, %v1980
      %v2056 = vpack.c.b16 %v1983, %v1982
      %v2057 = vpack.c.b16 %v1985, %v1984
      %2130 = vmatprep.subr.bf16.mxu0 0
      %2131 = vmatpush1.bf16.msra.mxu0 %v1993
      %2132 = vmatprep.subr.bf16.mxu0 0
      %2133 = vmatpush1.bf16.msra.mxu0 %v1992
      %2134 = vmatprep.subr.bf16.mxu0 0
      %2135 = vmatpush1.bf16.msra.mxu0 %v1991
      %2136 = vmatprep.subr.bf16.mxu0 0
      %2137 = vmatpush1.bf16.msra.mxu0 %v1990
      %2138 = vmatprep.subr.bf16.mxu0 0
      %2139 = vmatpush1.bf16.msra.mxu0 %v1989
      %2140 = vmatprep.subr.bf16.mxu0 0
      %2141 = vmatpush1.bf16.msra.mxu0 %v1988
      %2142 = vmatprep.subr.bf16.mxu0 0
      %2143 = vmatpush1.bf16.msra.mxu0 %v1987
      %2144 = vmatprep.subr.bf16.mxu0 0
      %2145 = vmatpush1.bf16.msra.mxu0 %v1986
      %2146 = vmatprep.subr.bf16.mxu0 0
      %2147 = vmatpush2.bf16.msra.mxu0 %v2001
      %2148 = vmatprep.subr.bf16.mxu0 0
      %2149 = vmatpush2.bf16.msra.mxu0 %v2000
      %2150 = vmatprep.subr.bf16.mxu0 0
      %2151 = vmatpush2.bf16.msra.mxu0 %v1999
      %2152 = vmatprep.subr.bf16.mxu0 0
      %2153 = vmatpush2.bf16.msra.mxu0 %v1998
      %2154 = vmatprep.subr.bf16.mxu0 0
      %2155 = vmatpush2.bf16.msra.mxu0 %v1997
      %2156 = vmatprep.subr.bf16.mxu0 0
      %2157 = vmatpush2.bf16.msra.mxu0 %v1996
      %2158 = vmatprep.subr.bf16.mxu0 0
      %2159 = vmatpush2.bf16.msra.mxu0 %v1995
      %2160 = vmatprep.subr.bf16.mxu0 0
      %2161 = vmatpush2.bf16.msra.mxu0 %v1994
      %2162 = vmatprep.mubr.bf16.mxu0 %v1539
      %2163 = vmatmul.mubr.bf16.gmra.mxu0 %v1538
      %v2164 = vpop.f32.mrf.mxu0
      %v2165 = vadd.f32 %v1696, %v2164
      %v2166 = vpop.f32.mrf.mxu0
      %v2167 = vpop.f32.mrf.mxu0
      %v2168 = vadd.f32 %v1696, %v2167
      %v2169 = vpop.f32.mrf.mxu0
      %2170 = vdwg.mxu0
      %2171 = vmatprep.subr.bf16.mxu0 0
      %2172 = vmatpush1.bf16.msra.mxu0 %v2009
      %2173 = vmatprep.subr.bf16.mxu0 0
      %2174 = vmatpush1.bf16.msra.mxu0 %v2008
      %2175 = vmatprep.subr.bf16.mxu0 0
      %2176 = vmatpush1.bf16.msra.mxu0 %v2007
      %2177 = vmatprep.subr.bf16.mxu0 0
      %2178 = vmatpush1.bf16.msra.mxu0 %v2006
      %2179 = vmatprep.subr.bf16.mxu0 0
      %2180 = vmatpush1.bf16.msra.mxu0 %v2005
      %2181 = vmatprep.subr.bf16.mxu0 0
      %2182 = vmatpush1.bf16.msra.mxu0 %v2004
      %2183 = vmatprep.subr.bf16.mxu0 0
      %2184 = vmatpush1.bf16.msra.mxu0 %v2003
      %2185 = vmatprep.subr.bf16.mxu0 0
      %2186 = vmatpush1.bf16.msra.mxu0 %v2002
      %2187 = vmatprep.subr.bf16.mxu0 0
      %2188 = vmatpush2.bf16.msra.mxu0 %v2017
      %2189 = vmatprep.subr.bf16.mxu0 0
      %2190 = vmatpush2.bf16.msra.mxu0 %v2016
      %2191 = vmatprep.subr.bf16.mxu0 0
      %2192 = vmatpush2.bf16.msra.mxu0 %v2015
      %2193 = vmatprep.subr.bf16.mxu0 0
      %2194 = vmatpush2.bf16.msra.mxu0 %v2014
      %2195 = vmatprep.subr.bf16.mxu0 0
      %2196 = vmatpush2.bf16.msra.mxu0 %v2013
      %2197 = vmatprep.subr.bf16.mxu0 0
      %2198 = vmatpush2.bf16.msra.mxu0 %v2012
      %2199 = vmatprep.subr.bf16.mxu0 0
      %2200 = vmatpush2.bf16.msra.mxu0 %v2011
      %2201 = vmatprep.subr.bf16.mxu0 0
      %2202 = vmatpush2.bf16.msra.mxu0 %v2010
      %2203 = vmatprep.mubr.bf16.mxu0 %v1541
      %2204 = vmatmul.mubr.bf16.gmra.mxu0 %v1540
      %v2205 = vpop.f32.mrf.mxu0
      %v2206 = vadd.f32 %v2165, %v2205
      %v2207 = vpop.f32.mrf.mxu0
      %v2208 = vpop.f32.mrf.mxu0
      %v2209 = vadd.f32 %v2168, %v2208
      %v2210 = vpop.f32.mrf.mxu0
      %2211 = vdwg.mxu0
      %2212 = vmatprep.subr.bf16.mxu0 0
      %2213 = vmatpush1.bf16.msra.mxu0 %v2025
      %2214 = vmatprep.subr.bf16.mxu0 0
      %2215 = vmatpush1.bf16.msra.mxu0 %v2024
      %2216 = vmatprep.subr.bf16.mxu0 0
      %2217 = vmatpush1.bf16.msra.mxu0 %v2023
      %2218 = vmatprep.subr.bf16.mxu0 0
      %2219 = vmatpush1.bf16.msra.mxu0 %v2022
      %2220 = vmatprep.subr.bf16.mxu0 0
      %2221 = vmatpush1.bf16.msra.mxu0 %v2021
      %2222 = vmatprep.subr.bf16.mxu0 0
      %2223 = vmatpush1.bf16.msra.mxu0 %v2020
      %2224 = vmatprep.subr.bf16.mxu0 0
      %2225 = vmatpush1.bf16.msra.mxu0 %v2019
      %2226 = vmatprep.subr.bf16.mxu0 0
      %2227 = vmatpush1.bf16.msra.mxu0 %v2018
      %2228 = vmatprep.subr.bf16.mxu0 0
      %2229 = vmatpush2.bf16.msra.mxu0 %v2033
      %2230 = vmatprep.subr.bf16.mxu0 0
      %2231 = vmatpush2.bf16.msra.mxu0 %v2032
      %2232 = vmatprep.subr.bf16.mxu0 0
      %2233 = vmatpush2.bf16.msra.mxu0 %v2031
      %2234 = vmatprep.subr.bf16.mxu0 0
      %2235 = vmatpush2.bf16.msra.mxu0 %v2030
      %2236 = vmatprep.subr.bf16.mxu0 0
      %2237 = vmatpush2.bf16.msra.mxu0 %v2029
      %2238 = vmatprep.subr.bf16.mxu0 0
      %2239 = vmatpush2.bf16.msra.mxu0 %v2028
      %2240 = vmatprep.subr.bf16.mxu0 0
      %2241 = vmatpush2.bf16.msra.mxu0 %v2027
      %2242 = vmatprep.subr.bf16.mxu0 0
      %2243 = vmatpush2.bf16.msra.mxu0 %v2026
      %2244 = vmatprep.mubr.bf16.mxu0 %v1543
      %2245 = vmatmul.mubr.bf16.gmra.mxu0 %v1542
      %v2246 = vpop.f32.mrf.mxu0
      %v2247 = vadd.f32 %v2206, %v2246
      %v2248 = vpop.f32.mrf.mxu0
      %v2249 = vpop.f32.mrf.mxu0
      %v2250 = vadd.f32 %v2209, %v2249
      %v2251 = vpop.f32.mrf.mxu0
      %2252 = vdwg.mxu0
      %2253 = vmatprep.subr.bf16.mxu0 0
      %2254 = vmatpush1.bf16.msra.mxu0 %v2041
      %2255 = vmatprep.subr.bf16.mxu0 0
      %2256 = vmatpush1.bf16.msra.mxu0 %v2040
      %2257 = vmatprep.subr.bf16.mxu0 0
      %2258 = vmatpush1.bf16.msra.mxu0 %v2039
      %2259 = vmatprep.subr.bf16.mxu0 0
      %2260 = vmatpush1.bf16.msra.mxu0 %v2038
      %2261 = vmatprep.subr.bf16.mxu0 0
      %2262 = vmatpush1.bf16.msra.mxu0 %v2037
      %2263 = vmatprep.subr.bf16.mxu0 0
      %2264 = vmatpush1.bf16.msra.mxu0 %v2036
      %2265 = vmatprep.subr.bf16.mxu0 0
      %2266 = vmatpush1.bf16.msra.mxu0 %v2035
      %2267 = vmatprep.subr.bf16.mxu0 0
      %2268 = vmatpush1.bf16.msra.mxu0 %v2034
      %2269 = vmatprep.subr.bf16.mxu0 0
      %2270 = vmatpush2.bf16.msra.mxu0 %v2049
      %2271 = vmatprep.subr.bf16.mxu0 0
      %2272 = vmatpush2.bf16.msra.mxu0 %v2048
      %2273 = vmatprep.subr.bf16.mxu0 0
      %2274 = vmatpush2.bf16.msra.mxu0 %v2047
      %2275 = vmatprep.subr.bf16.mxu0 0
      %2276 = vmatpush2.bf16.msra.mxu0 %v2046
      %2277 = vmatprep.subr.bf16.mxu0 0
      %2278 = vmatpush2.bf16.msra.mxu0 %v2045
      %2279 = vmatprep.subr.bf16.mxu0 0
      %2280 = vmatpush2.bf16.msra.mxu0 %v2044
      %2281 = vmatprep.subr.bf16.mxu0 0
      %2282 = vmatpush2.bf16.msra.mxu0 %v2043
      %2283 = vmatprep.subr.bf16.mxu0 0
      %2284 = vmatpush2.bf16.msra.mxu0 %v2042
      %2285 = vmatprep.mubr.bf16.mxu0 %v1545
      %2286 = vmatmul.mubr.bf16.gmra.mxu0 %v1544
      %v2287 = vpop.f32.mrf.mxu0
      %v2288 = vadd.f32 %v2247, %v2287
      %v2289 = vpop.f32.mrf.mxu0
      %v2290 = vpop.f32.mrf.mxu0
      %v2291 = vadd.f32 %v2250, %v2290
      %v2292 = vpop.f32.mrf.mxu0
      %2293 = vdwg.mxu0
      %2294 = vmatprep.subr.bf16.mxu0 0
      %2295 = vmatpush1.bf16.msra.mxu0 %v2057
      %2296 = vmatprep.subr.bf16.mxu0 0
      %2297 = vmatpush1.bf16.msra.mxu0 %v2056
      %2298 = vmatprep.subr.bf16.mxu0 0
      %2299 = vmatpush1.bf16.msra.mxu0 %v2055
      %2300 = vmatprep.subr.bf16.mxu0 0
      %2301 = vmatpush1.bf16.msra.mxu0 %v2054
      %2302 = vmatprep.subr.bf16.mxu0 0
      %2303 = vmatpush1.bf16.msra.mxu0 %v2053
      %2304 = vmatprep.subr.bf16.mxu0 0
      %2305 = vmatpush1.bf16.msra.mxu0 %v2052
      %2306 = vmatprep.subr.bf16.mxu0 0
      %2307 = vmatpush1.bf16.msra.mxu0 %v2051
      %2308 = vmatprep.subr.bf16.mxu0 0
      %2309 = vmatpush1.bf16.msra.mxu0 %v2050
      %2310 = vmatprep.subr.bf16.mxu0 0
      %2311 = vmatpush2.bf16.msra.mxu0 0
      %2312 = vmatprep.subr.bf16.mxu0 0
      %2313 = vmatpush2.bf16.msra.mxu0 0
      %2314 = vmatprep.subr.bf16.mxu0 0
      %2315 = vmatpush2.bf16.msra.mxu0 0
      %2316 = vmatprep.subr.bf16.mxu0 0
      %2317 = vmatpush2.bf16.msra.mxu0 0
      %2318 = vmatprep.subr.bf16.mxu0 0
      %2319 = vmatpush2.bf16.msra.mxu0 0
      %2320 = vmatprep.subr.bf16.mxu0 0
      %2321 = vmatpush2.bf16.msra.mxu0 0
      %2322 = vmatprep.subr.bf16.mxu0 0
      %2323 = vmatpush2.bf16.msra.mxu0 0
      %2324 = vmatprep.subr.bf16.mxu0 0
      %2325 = vmatpush2.bf16.msra.mxu0 0
      %2326 = vmatprep.mubr.bf16.mxu0 0
      %2327 = vmatmul.mubr.bf16.gmra.mxu0 %v1546
      %v2328 = vpop.f32.mrf.mxu0
      %v2329 = vadd.f32 %v2288, %v2328
      %v2330 = vpop.f32.mrf.mxu0
      %v2331 = vpop.f32.mrf.mxu0
      %v2332 = vadd.f32 %v2291, %v2331
      %v2333 = vpop.f32.mrf.mxu0
      %2334 = vdwg.mxu0
      %v2335 = vmax.f32 %v2329, 0.0
      %v2336 = vmax.f32 %v2332, 0.0
      %2337 = vmatprep.subr.mxu0 0.0
      %2338 = vmatpush1.msra.mxu0 0.0
      %2339 = vmatprep.subr.mxu0 0.0
      %2340 = vmatpush1.msra.mxu0 0.0
      %2341 = vmatprep.subr.mxu0 0.0
      %2342 = vmatpush1.msra.mxu0 0.0
      %2343 = vmatprep.subr.mxu0 0.0
      %2344 = vmatpush1.msra.mxu0 0.0
      %2345 = vmatprep.subr.mxu0 0.0
      %2346 = vmatpush1.msra.mxu0 0.0
      %2347 = vmatprep.subr.mxu0 0.0
      %2348 = vmatpush1.msra.mxu0 0.0
      %2349 = vmatprep.subr.mxu0 0.0
      %2350 = vmatpush1.msra.mxu0 0.0
      %2351 = vmatprep.subr.mxu0 0.0
      %2352 = vmatpush1.msra.mxu0 0.0
      %2353 = vmatprep.subr.mxu0 0.0
      %2354 = vmatpush1.msra.mxu0 0.0
      %2355 = vmatprep.subr.mxu0 0.0
      %2356 = vmatpush1.msra.mxu0 0.0
      %2357 = vmatprep.subr.mxu0 0.0
      %2358 = vmatpush1.msra.mxu0 0.0
      %2359 = vmatprep.subr.mxu0 0.0
      %2360 = vmatpush1.msra.mxu0 0.0
      %2361 = vmatprep.subr.mxu0 0.0
      %2362 = vmatpush1.msra.mxu0 0.0
      %2363 = vmatprep.subr.mxu0 0.0
      %2364 = vmatpush1.msra.mxu0 0.0
      %2365 = vmatprep.subr.mxu0 0.0
      %2366 = vmatpush1.msra.mxu0 %v2336
      %2367 = vmatprep.subr.mxu0 0.0
      %2368 = vmatpush1.msra.mxu0 %v2335
      %2369 = vmatprep.subr.mxu0 0.0
      %2370 = vmatpush2.msra.mxu0 0.0
      %2371 = vmatprep.subr.mxu0 0.0
      %2372 = vmatpush2.msra.mxu0 0.0
      %2373 = vmatprep.subr.mxu0 0.0
      %2374 = vmatpush2.msra.mxu0 0.0
      %2375 = vmatprep.subr.mxu0 0.0
      %2376 = vmatpush2.msra.mxu0 0.0
      %2377 = vmatprep.subr.mxu0 0.0
      %2378 = vmatpush2.msra.mxu0 0.0
      %2379 = vmatprep.subr.mxu0 0.0
      %2380 = vmatpush2.msra.mxu0 0.0
      %2381 = vmatprep.subr.mxu0 0.0
      %2382 = vmatpush2.msra.mxu0 0.0
      %2383 = vmatprep.subr.mxu0 0.0
      %2384 = vmatpush2.msra.mxu0 0.0
      %2385 = vmatprep.subr.mxu0 0.0
      %2386 = vmatpush2.msra.mxu0 0.0
      %2387 = vmatprep.subr.mxu0 0.0
      %2388 = vmatpush2.msra.mxu0 0.0
      %2389 = vmatprep.subr.mxu0 0.0
      %2390 = vmatpush2.msra.mxu0 0.0
      %2391 = vmatprep.subr.mxu0 0.0
      %2392 = vmatpush2.msra.mxu0 0.0
      %2393 = vmatprep.subr.mxu0 0.0
      %2394 = vmatpush2.msra.mxu0 0.0
      %2395 = vmatprep.subr.mxu0 0.0
      %2396 = vmatpush2.msra.mxu0 0.0
      %2397 = vmatprep.subr.mxu0 0.0
      %2398 = vmatpush2.msra.mxu0 0.0
      %2399 = vmatprep.subr.mxu0 0.0
      %2400 = vmatpush2.msra.mxu0 0.0
      %2401 = vmatprep.mubr.f32.mxu0 0.0
      %2402 = vmatmul.mubr.f32.gmra.mxu0 %v786
      %v2403 = vpop.f32.mrf.mxu0
      %v2404 = vadd.f32 0.0, %v2403
      %v2405 = vpop.f32.mrf.mxu0
      %2406 = vmatprep.mubr.f32.mxu0 0.0
      %2407 = vmatmul.mubr.f32.gmra.mxu0 %v789
      %v2408 = vpop.f32.mrf.mxu0
      %v2409 = vadd.f32 0.0, %v2408
      %v2410 = vpop.f32.mrf.mxu0
      %2411 = vdwg.mxu0
      %2412 = vmatprep.subr.mxu0 0.0
      %2413 = vmatpush1.msra.mxu0 0.0
      %2414 = vmatprep.subr.mxu0 0.0
      %2415 = vmatpush1.msra.mxu0 0.0
      %2416 = vmatprep.subr.mxu0 0.0
      %2417 = vmatpush1.msra.mxu0 0.0
      %2418 = vmatprep.subr.mxu0 0.0
      %2419 = vmatpush1.msra.mxu0 0.0
      %2420 = vmatprep.subr.mxu0 0.0
      %2421 = vmatpush1.msra.mxu0 0.0
      %2422 = vmatprep.subr.mxu0 0.0
      %2423 = vmatpush1.msra.mxu0 0.0
      %2424 = vmatprep.subr.mxu0 0.0
      %2425 = vmatpush1.msra.mxu0 0.0
      %2426 = vmatprep.subr.mxu0 0.0
      %2427 = vmatpush1.msra.mxu0 0.0
      %2428 = vmatprep.subr.mxu0 0.0
      %2429 = vmatpush1.msra.mxu0 0.0
      %2430 = vmatprep.subr.mxu0 0.0
      %2431 = vmatpush1.msra.mxu0 0.0
      %2432 = vmatprep.subr.mxu0 0.0
      %2433 = vmatpush1.msra.mxu0 0.0
      %2434 = vmatprep.subr.mxu0 0.0
      %2435 = vmatpush1.msra.mxu0 0.0
      %2436 = vmatprep.subr.mxu0 0.0
      %2437 = vmatpush1.msra.mxu0 0.0
      %2438 = vmatprep.subr.mxu0 0.0
      %2439 = vmatpush1.msra.mxu0 0.0
      %2440 = vmatprep.subr.mxu0 0.0
      %2441 = vmatpush1.msra.mxu0 %v2336
      %2442 = vmatprep.subr.mxu0 0.0
      %2443 = vmatpush1.msra.mxu0 %v2335
      %2444 = vmatprep.subr.mxu0 0.0
      %2445 = vmatpush2.msra.mxu0 0.0
      %2446 = vmatprep.subr.mxu0 0.0
      %2447 = vmatpush2.msra.mxu0 0.0
      %2448 = vmatprep.subr.mxu0 0.0
      %2449 = vmatpush2.msra.mxu0 0.0
      %2450 = vmatprep.subr.mxu0 0.0
      %2451 = vmatpush2.msra.mxu0 0.0
      %2452 = vmatprep.subr.mxu0 0.0
      %2453 = vmatpush2.msra.mxu0 0.0
      %2454 = vmatprep.subr.mxu0 0.0
      %2455 = vmatpush2.msra.mxu0 0.0
      %2456 = vmatprep.subr.mxu0 0.0
      %2457 = vmatpush2.msra.mxu0 0.0
      %2458 = vmatprep.subr.mxu0 0.0
      %2459 = vmatpush2.msra.mxu0 0.0
      %2460 = vmatprep.subr.mxu0 0.0
      %2461 = vmatpush2.msra.mxu0 0.0
      %2462 = vmatprep.subr.mxu0 0.0
      %2463 = vmatpush2.msra.mxu0 0.0
      %2464 = vmatprep.subr.mxu0 0.0
      %2465 = vmatpush2.msra.mxu0 0.0
      %2466 = vmatprep.subr.mxu0 0.0
      %2467 = vmatpush2.msra.mxu0 0.0
      %2468 = vmatprep.subr.mxu0 0.0
      %2469 = vmatpush2.msra.mxu0 0.0
      %2470 = vmatprep.subr.mxu0 0.0
      %2471 = vmatpush2.msra.mxu0 0.0
      %2472 = vmatprep.subr.mxu0 0.0
      %2473 = vmatpush2.msra.mxu0 0.0
      %2474 = vmatprep.subr.mxu0 0.0
      %2475 = vmatpush2.msra.mxu0 0.0
      %2476 = vmatprep.mubr.f32.mxu0 0.0
      %2477 = vmatmul.mubr.f32.gmra.mxu0 %v870
      %v2478 = vpop.f32.mrf.mxu0
      %v2479 = vadd.f32 0.0, %v2478
      %v2480 = vpop.f32.mrf.mxu0
      %2481 = vmatprep.mubr.f32.mxu0 0.0
      %2482 = vmatmul.mubr.f32.gmra.mxu0 %v873
      %v2483 = vpop.f32.mrf.mxu0
      %v2484 = vadd.f32 0.0, %v2483
      %v2485 = vpop.f32.mrf.mxu0
      %2486 = vdwg.mxu0
      %2487 = vmatprep.subr.mxu0 0.0
      %2488 = vmatpush1.msra.mxu0 0.0
      %2489 = vmatprep.subr.mxu0 0.0
      %2490 = vmatpush1.msra.mxu0 0.0
      %2491 = vmatprep.subr.mxu0 0.0
      %2492 = vmatpush1.msra.mxu0 0.0
      %2493 = vmatprep.subr.mxu0 0.0
      %2494 = vmatpush1.msra.mxu0 0.0
      %2495 = vmatprep.subr.mxu0 0.0
      %2496 = vmatpush1.msra.mxu0 0.0
      %2497 = vmatprep.subr.mxu0 0.0
      %2498 = vmatpush1.msra.mxu0 0.0
      %2499 = vmatprep.subr.mxu0 0.0
      %2500 = vmatpush1.msra.mxu0 0.0
      %2501 = vmatprep.subr.mxu0 0.0
      %2502 = vmatpush1.msra.mxu0 0.0
      %2503 = vmatprep.subr.mxu0 0.0
      %2504 = vmatpush1.msra.mxu0 0.0
      %2505 = vmatprep.subr.mxu0 0.0
      %2506 = vmatpush1.msra.mxu0 0.0
      %2507 = vmatprep.subr.mxu0 0.0
      %2508 = vmatpush1.msra.mxu0 0.0
      %2509 = vmatprep.subr.mxu0 0.0
      %2510 = vmatpush1.msra.mxu0 0.0
      %2511 = vmatprep.subr.mxu0 0.0
      %2512 = vmatpush1.msra.mxu0 0.0
      %2513 = vmatprep.subr.mxu0 0.0
      %2514 = vmatpush1.msra.mxu0 0.0
      %2515 = vmatprep.subr.mxu0 0.0
      %2516 = vmatpush1.msra.mxu0 %v2336
      %2517 = vmatprep.subr.mxu0 0.0
      %2518 = vmatpush1.msra.mxu0 %v2335
      %2519 = vmatprep.subr.mxu0 0.0
      %2520 = vmatpush2.msra.mxu0 0.0
      %2521 = vmatprep.subr.mxu0 0.0
      %2522 = vmatpush2.msra.mxu0 0.0
      %2523 = vmatprep.subr.mxu0 0.0
      %2524 = vmatpush2.msra.mxu0 0.0
      %2525 = vmatprep.subr.mxu0 0.0
      %2526 = vmatpush2.msra.mxu0 0.0
      %2527 = vmatprep.subr.mxu0 0.0
      %2528 = vmatpush2.msra.mxu0 0.0
      %2529 = vmatprep.subr.mxu0 0.0
      %2530 = vmatpush2.msra.mxu0 0.0
      %2531 = vmatprep.subr.mxu0 0.0
      %2532 = vmatpush2.msra.mxu0 0.0
      %2533 = vmatprep.subr.mxu0 0.0
      %2534 = vmatpush2.msra.mxu0 0.0
      %2535 = vmatprep.subr.mxu0 0.0
      %2536 = vmatpush2.msra.mxu0 0.0
      %2537 = vmatprep.subr.mxu0 0.0
      %2538 = vmatpush2.msra.mxu0 0.0
      %2539 = vmatprep.subr.mxu0 0.0
      %2540 = vmatpush2.msra.mxu0 0.0
      %2541 = vmatprep.subr.mxu0 0.0
      %2542 = vmatpush2.msra.mxu0 0.0
      %2543 = vmatprep.subr.mxu0 0.0
      %2544 = vmatpush2.msra.mxu0 0.0
      %2545 = vmatprep.subr.mxu0 0.0
      %2546 = vmatpush2.msra.mxu0 0.0
      %2547 = vmatprep.subr.mxu0 0.0
      %2548 = vmatpush2.msra.mxu0 0.0
      %2549 = vmatprep.subr.mxu0 0.0
      %2550 = vmatpush2.msra.mxu0 0.0
      %2551 = vmatprep.mubr.f32.mxu0 0.0
      %2552 = vmatmul.mubr.f32.gmra.mxu0 %v954
      %v2553 = vpop.f32.mrf.mxu0
      %v2554 = vadd.f32 0.0, %v2553
      %v2555 = vpop.f32.mrf.mxu0
      %2556 = vmatprep.mubr.f32.mxu0 0.0
      %2557 = vmatmul.mubr.f32.gmra.mxu0 %v957
      %v2558 = vpop.f32.mrf.mxu0
      %v2559 = vadd.f32 0.0, %v2558
      %v2560 = vpop.f32.mrf.mxu0
      %2561 = vdwg.mxu0
      %2562 = vmatprep.subr.mxu0 0.0
      %2563 = vmatpush1.msra.mxu0 0.0
      %2564 = vmatprep.subr.mxu0 0.0
      %2565 = vmatpush1.msra.mxu0 0.0
      %2566 = vmatprep.subr.mxu0 0.0
      %2567 = vmatpush1.msra.mxu0 0.0
      %2568 = vmatprep.subr.mxu0 0.0
      %2569 = vmatpush1.msra.mxu0 0.0
      %2570 = vmatprep.subr.mxu0 0.0
      %2571 = vmatpush1.msra.mxu0 0.0
      %2572 = vmatprep.subr.mxu0 0.0
      %2573 = vmatpush1.msra.mxu0 0.0
      %2574 = vmatprep.subr.mxu0 0.0
      %2575 = vmatpush1.msra.mxu0 0.0
      %2576 = vmatprep.subr.mxu0 0.0
      %2577 = vmatpush1.msra.mxu0 0.0
      %2578 = vmatprep.subr.mxu0 0.0
      %2579 = vmatpush1.msra.mxu0 0.0
      %2580 = vmatprep.subr.mxu0 0.0
      %2581 = vmatpush1.msra.mxu0 0.0
      %2582 = vmatprep.subr.mxu0 0.0
      %2583 = vmatpush1.msra.mxu0 0.0
      %2584 = vmatprep.subr.mxu0 0.0
      %2585 = vmatpush1.msra.mxu0 0.0
      %2586 = vmatprep.subr.mxu0 0.0
      %2587 = vmatpush1.msra.mxu0 0.0
      %2588 = vmatprep.subr.mxu0 0.0
      %2589 = vmatpush1.msra.mxu0 0.0
      %2590 = vmatprep.subr.mxu0 0.0
      %2591 = vmatpush1.msra.mxu0 %v2336
      %2592 = vmatprep.subr.mxu0 0.0
      %2593 = vmatpush1.msra.mxu0 %v2335
      %2594 = vmatprep.subr.mxu0 0.0
      %2595 = vmatpush2.msra.mxu0 0.0
      %2596 = vmatprep.subr.mxu0 0.0
      %2597 = vmatpush2.msra.mxu0 0.0
      %2598 = vmatprep.subr.mxu0 0.0
      %2599 = vmatpush2.msra.mxu0 0.0
      %2600 = vmatprep.subr.mxu0 0.0
      %2601 = vmatpush2.msra.mxu0 0.0
      %2602 = vmatprep.subr.mxu0 0.0
      %2603 = vmatpush2.msra.mxu0 0.0
      %2604 = vmatprep.subr.mxu0 0.0
      %2605 = vmatpush2.msra.mxu0 0.0
      %2606 = vmatprep.subr.mxu0 0.0
      %2607 = vmatpush2.msra.mxu0 0.0
      %2608 = vmatprep.subr.mxu0 0.0
      %2609 = vmatpush2.msra.mxu0 0.0
      %2610 = vmatprep.subr.mxu0 0.0
      %2611 = vmatpush2.msra.mxu0 0.0
      %2612 = vmatprep.subr.mxu0 0.0
      %2613 = vmatpush2.msra.mxu0 0.0
      %2614 = vmatprep.subr.mxu0 0.0
      %2615 = vmatpush2.msra.mxu0 0.0
      %2616 = vmatprep.subr.mxu0 0.0
      %2617 = vmatpush2.msra.mxu0 0.0
      %2618 = vmatprep.subr.mxu0 0.0
      %2619 = vmatpush2.msra.mxu0 0.0
      %2620 = vmatprep.subr.mxu0 0.0
      %2621 = vmatpush2.msra.mxu0 0.0
      %2622 = vmatprep.subr.mxu0 0.0
      %2623 = vmatpush2.msra.mxu0 0.0
      %2624 = vmatprep.subr.mxu0 0.0
      %2625 = vmatpush2.msra.mxu0 0.0
      %2626 = vmatprep.mubr.f32.mxu0 0.0
      %2627 = vmatmul.mubr.f32.gmra.mxu0 %v1038
      %v2628 = vpop.f32.mrf.mxu0
      %v2629 = vadd.f32 0.0, %v2628
      %v2630 = vpop.f32.mrf.mxu0
      %2631 = vmatprep.mubr.f32.mxu0 0.0
      %2632 = vmatmul.mubr.f32.gmra.mxu0 %v1041
      %v2633 = vpop.f32.mrf.mxu0
      %v2634 = vadd.f32 0.0, %v2633
      %v2635 = vpop.f32.mrf.mxu0
      %2636 = vdwg.mxu0
      %2637 = vmatprep.subr.mxu0 0.0
      %2638 = vmatpush1.msra.mxu0 0.0
      %2639 = vmatprep.subr.mxu0 0.0
      %2640 = vmatpush1.msra.mxu0 0.0
      %2641 = vmatprep.subr.mxu0 0.0
      %2642 = vmatpush1.msra.mxu0 0.0
      %2643 = vmatprep.subr.mxu0 0.0
      %2644 = vmatpush1.msra.mxu0 0.0
      %2645 = vmatprep.subr.mxu0 0.0
      %2646 = vmatpush1.msra.mxu0 0.0
      %2647 = vmatprep.subr.mxu0 0.0
      %2648 = vmatpush1.msra.mxu0 0.0
      %2649 = vmatprep.subr.mxu0 0.0
      %2650 = vmatpush1.msra.mxu0 0.0
      %2651 = vmatprep.subr.mxu0 0.0
      %2652 = vmatpush1.msra.mxu0 0.0
      %2653 = vmatprep.subr.mxu0 0.0
      %2654 = vmatpush1.msra.mxu0 0.0
      %2655 = vmatprep.subr.mxu0 0.0
      %2656 = vmatpush1.msra.mxu0 0.0
      %2657 = vmatprep.subr.mxu0 0.0
      %2658 = vmatpush1.msra.mxu0 0.0
      %2659 = vmatprep.subr.mxu0 0.0
      %2660 = vmatpush1.msra.mxu0 0.0
      %2661 = vmatprep.subr.mxu0 0.0
      %2662 = vmatpush1.msra.mxu0 0.0
      %2663 = vmatprep.subr.mxu0 0.0
      %2664 = vmatpush1.msra.mxu0 0.0
      %2665 = vmatprep.subr.mxu0 0.0
      %2666 = vmatpush1.msra.mxu0 %v2336
      %2667 = vmatprep.subr.mxu0 0.0
      %2668 = vmatpush1.msra.mxu0 %v2335
      %2669 = vmatprep.subr.mxu0 0.0
      %2670 = vmatpush2.msra.mxu0 0.0
      %2671 = vmatprep.subr.mxu0 0.0
      %2672 = vmatpush2.msra.mxu0 0.0
      %2673 = vmatprep.subr.mxu0 0.0
      %2674 = vmatpush2.msra.mxu0 0.0
      %2675 = vmatprep.subr.mxu0 0.0
      %2676 = vmatpush2.msra.mxu0 0.0
      %2677 = vmatprep.subr.mxu0 0.0
      %2678 = vmatpush2.msra.mxu0 0.0
      %2679 = vmatprep.subr.mxu0 0.0
      %2680 = vmatpush2.msra.mxu0 0.0
      %2681 = vmatprep.subr.mxu0 0.0
      %2682 = vmatpush2.msra.mxu0 0.0
      %2683 = vmatprep.subr.mxu0 0.0
      %2684 = vmatpush2.msra.mxu0 0.0
      %2685 = vmatprep.subr.mxu0 0.0
      %2686 = vmatpush2.msra.mxu0 0.0
      %2687 = vmatprep.subr.mxu0 0.0
      %2688 = vmatpush2.msra.mxu0 0.0
      %2689 = vmatprep.subr.mxu0 0.0
      %2690 = vmatpush2.msra.mxu0 0.0
      %2691 = vmatprep.subr.mxu0 0.0
      %2692 = vmatpush2.msra.mxu0 0.0
      %2693 = vmatprep.subr.mxu0 0.0
      %2694 = vmatpush2.msra.mxu0 0.0
      %2695 = vmatprep.subr.mxu0 0.0
      %2696 = vmatpush2.msra.mxu0 0.0
      %2697 = vmatprep.subr.mxu0 0.0
      %2698 = vmatpush2.msra.mxu0 0.0
      %2699 = vmatprep.subr.mxu0 0.0
      %2700 = vmatpush2.msra.mxu0 0.0
      %2701 = vmatprep.mubr.f32.mxu0 0.0
      %2702 = vmatmul.mubr.f32.gmra.mxu0 %v1122
      %v2703 = vpop.f32.mrf.mxu0
      %v2704 = vadd.f32 0.0, %v2703
      %v2705 = vpop.f32.mrf.mxu0
      %2706 = vmatprep.mubr.f32.mxu0 0.0
      %2707 = vmatmul.mubr.f32.gmra.mxu0 %v1125
      %v2708 = vpop.f32.mrf.mxu0
      %v2709 = vadd.f32 0.0, %v2708
      %v2710 = vpop.f32.mrf.mxu0
      %2711 = vdwg.mxu0
      %2712 = vmatprep.subr.mxu0 0.0
      %2713 = vmatpush1.msra.mxu0 0.0
      %2714 = vmatprep.subr.mxu0 0.0
      %2715 = vmatpush1.msra.mxu0 0.0
      %2716 = vmatprep.subr.mxu0 0.0
      %2717 = vmatpush1.msra.mxu0 0.0
      %2718 = vmatprep.subr.mxu0 0.0
      %2719 = vmatpush1.msra.mxu0 0.0
      %2720 = vmatprep.subr.mxu0 0.0
      %2721 = vmatpush1.msra.mxu0 0.0
      %2722 = vmatprep.subr.mxu0 0.0
      %2723 = vmatpush1.msra.mxu0 0.0
      %2724 = vmatprep.subr.mxu0 0.0
      %2725 = vmatpush1.msra.mxu0 0.0
      %2726 = vmatprep.subr.mxu0 0.0
      %2727 = vmatpush1.msra.mxu0 0.0
      %2728 = vmatprep.subr.mxu0 0.0
      %2729 = vmatpush1.msra.mxu0 0.0
      %2730 = vmatprep.subr.mxu0 0.0
      %2731 = vmatpush1.msra.mxu0 0.0
      %2732 = vmatprep.subr.mxu0 0.0
      %2733 = vmatpush1.msra.mxu0 0.0
      %2734 = vmatprep.subr.mxu0 0.0
      %2735 = vmatpush1.msra.mxu0 0.0
      %2736 = vmatprep.subr.mxu0 0.0
      %2737 = vmatpush1.msra.mxu0 0.0
      %2738 = vmatprep.subr.mxu0 0.0
      %2739 = vmatpush1.msra.mxu0 0.0
      %2740 = vmatprep.subr.mxu0 0.0
      %2741 = vmatpush1.msra.mxu0 %v2336
      %2742 = vmatprep.subr.mxu0 0.0
      %2743 = vmatpush1.msra.mxu0 %v2335
      %2744 = vmatprep.subr.mxu0 0.0
      %2745 = vmatpush2.msra.mxu0 0.0
      %2746 = vmatprep.subr.mxu0 0.0
      %2747 = vmatpush2.msra.mxu0 0.0
      %2748 = vmatprep.subr.mxu0 0.0
      %2749 = vmatpush2.msra.mxu0 0.0
      %2750 = vmatprep.subr.mxu0 0.0
      %2751 = vmatpush2.msra.mxu0 0.0
      %2752 = vmatprep.subr.mxu0 0.0
      %2753 = vmatpush2.msra.mxu0 0.0
      %2754 = vmatprep.subr.mxu0 0.0
      %2755 = vmatpush2.msra.mxu0 0.0
      %2756 = vmatprep.subr.mxu0 0.0
      %2757 = vmatpush2.msra.mxu0 0.0
      %2758 = vmatprep.subr.mxu0 0.0
      %2759 = vmatpush2.msra.mxu0 0.0
      %2760 = vmatprep.subr.mxu0 0.0
      %2761 = vmatpush2.msra.mxu0 0.0
      %2762 = vmatprep.subr.mxu0 0.0
      %2763 = vmatpush2.msra.mxu0 0.0
      %2764 = vmatprep.subr.mxu0 0.0
      %2765 = vmatpush2.msra.mxu0 0.0
      %2766 = vmatprep.subr.mxu0 0.0
      %2767 = vmatpush2.msra.mxu0 0.0
      %2768 = vmatprep.subr.mxu0 0.0
      %2769 = vmatpush2.msra.mxu0 0.0
      %2770 = vmatprep.subr.mxu0 0.0
      %2771 = vmatpush2.msra.mxu0 0.0
      %2772 = vmatprep.subr.mxu0 0.0
      %2773 = vmatpush2.msra.mxu0 0.0
      %2774 = vmatprep.subr.mxu0 0.0
      %2775 = vmatpush2.msra.mxu0 0.0
      %2776 = vmatprep.mubr.f32.mxu0 0.0
      %2777 = vmatmul.mubr.f32.gmra.mxu0 %v1206
      %v2778 = vpop.f32.mrf.mxu0
      %v2779 = vadd.f32 0.0, %v2778
      %v2780 = vpop.f32.mrf.mxu0
      %2781 = vmatprep.mubr.f32.mxu0 0.0
      %2782 = vmatmul.mubr.f32.gmra.mxu0 %v1209
      %v2783 = vpop.f32.mrf.mxu0
      %v2784 = vadd.f32 0.0, %v2783
      %v2785 = vpop.f32.mrf.mxu0
      %2786 = vdwg.mxu0
      %2787 = vmatprep.subr.mxu0 0.0
      %2788 = vmatpush1.msra.mxu0 0.0
      %2789 = vmatprep.subr.mxu0 0.0
      %2790 = vmatpush1.msra.mxu0 0.0
      %2791 = vmatprep.subr.mxu0 0.0
      %2792 = vmatpush1.msra.mxu0 0.0
      %2793 = vmatprep.subr.mxu0 0.0
      %2794 = vmatpush1.msra.mxu0 0.0
      %2795 = vmatprep.subr.mxu0 0.0
      %2796 = vmatpush1.msra.mxu0 0.0
      %2797 = vmatprep.subr.mxu0 0.0
      %2798 = vmatpush1.msra.mxu0 0.0
      %2799 = vmatprep.subr.mxu0 0.0
      %2800 = vmatpush1.msra.mxu0 0.0
      %2801 = vmatprep.subr.mxu0 0.0
      %2802 = vmatpush1.msra.mxu0 0.0
      %2803 = vmatprep.subr.mxu0 0.0
      %2804 = vmatpush1.msra.mxu0 0.0
      %2805 = vmatprep.subr.mxu0 0.0
      %2806 = vmatpush1.msra.mxu0 0.0
      %2807 = vmatprep.subr.mxu0 0.0
      %2808 = vmatpush1.msra.mxu0 0.0
      %2809 = vmatprep.subr.mxu0 0.0
      %2810 = vmatpush1.msra.mxu0 0.0
      %2811 = vmatprep.subr.mxu0 0.0
      %2812 = vmatpush1.msra.mxu0 0.0
      %2813 = vmatprep.subr.mxu0 0.0
      %2814 = vmatpush1.msra.mxu0 0.0
      %2815 = vmatprep.subr.mxu0 0.0
      %2816 = vmatpush1.msra.mxu0 %v2336
      %2817 = vmatprep.subr.mxu0 0.0
      %2818 = vmatpush1.msra.mxu0 %v2335
      %2819 = vmatprep.subr.mxu0 0.0
      %2820 = vmatpush2.msra.mxu0 0.0
      %2821 = vmatprep.subr.mxu0 0.0
      %2822 = vmatpush2.msra.mxu0 0.0
      %2823 = vmatprep.subr.mxu0 0.0
      %2824 = vmatpush2.msra.mxu0 0.0
      %2825 = vmatprep.subr.mxu0 0.0
      %2826 = vmatpush2.msra.mxu0 0.0
      %2827 = vmatprep.subr.mxu0 0.0
      %2828 = vmatpush2.msra.mxu0 0.0
      %2829 = vmatprep.subr.mxu0 0.0
      %2830 = vmatpush2.msra.mxu0 0.0
      %2831 = vmatprep.subr.mxu0 0.0
      %2832 = vmatpush2.msra.mxu0 0.0
      %2833 = vmatprep.subr.mxu0 0.0
      %2834 = vmatpush2.msra.mxu0 0.0
      %2835 = vmatprep.subr.mxu0 0.0
      %2836 = vmatpush2.msra.mxu0 0.0
      %2837 = vmatprep.subr.mxu0 0.0
      %2838 = vmatpush2.msra.mxu0 0.0
      %2839 = vmatprep.subr.mxu0 0.0
      %2840 = vmatpush2.msra.mxu0 0.0
      %2841 = vmatprep.subr.mxu0 0.0
      %2842 = vmatpush2.msra.mxu0 0.0
      %2843 = vmatprep.subr.mxu0 0.0
      %2844 = vmatpush2.msra.mxu0 0.0
      %2845 = vmatprep.subr.mxu0 0.0
      %2846 = vmatpush2.msra.mxu0 0.0
      %2847 = vmatprep.subr.mxu0 0.0
      %2848 = vmatpush2.msra.mxu0 0.0
      %2849 = vmatprep.subr.mxu0 0.0
      %2850 = vmatpush2.msra.mxu0 0.0
      %2851 = vmatprep.mubr.f32.mxu0 0.0
      %2852 = vmatmul.mubr.f32.gmra.mxu0 %v1290
      %v2853 = vpop.f32.mrf.mxu0
      %v2854 = vadd.f32 0.0, %v2853
      %v2855 = vpop.f32.mrf.mxu0
      %2856 = vmatprep.mubr.f32.mxu0 0.0
      %2857 = vmatmul.mubr.f32.gmra.mxu0 %v1293
      %v2858 = vpop.f32.mrf.mxu0
      %v2859 = vadd.f32 0.0, %v2858
      %v2860 = vpop.f32.mrf.mxu0
      %2861 = vdwg.mxu0
      %2862 = vmatprep.subr.mxu0 0.0
      %2863 = vmatpush1.msra.mxu0 0.0
      %2864 = vmatprep.subr.mxu0 0.0
      %2865 = vmatpush1.msra.mxu0 0.0
      %2866 = vmatprep.subr.mxu0 0.0
      %2867 = vmatpush1.msra.mxu0 0.0
      %2868 = vmatprep.subr.mxu0 0.0
      %2869 = vmatpush1.msra.mxu0 0.0
      %2870 = vmatprep.subr.mxu0 0.0
      %2871 = vmatpush1.msra.mxu0 0.0
      %2872 = vmatprep.subr.mxu0 0.0
      %2873 = vmatpush1.msra.mxu0 0.0
      %2874 = vmatprep.subr.mxu0 0.0
      %2875 = vmatpush1.msra.mxu0 0.0
      %2876 = vmatprep.subr.mxu0 0.0
      %2877 = vmatpush1.msra.mxu0 0.0
      %2878 = vmatprep.subr.mxu0 0.0
      %2879 = vmatpush1.msra.mxu0 0.0
      %2880 = vmatprep.subr.mxu0 0.0
      %2881 = vmatpush1.msra.mxu0 0.0
      %2882 = vmatprep.subr.mxu0 0.0
      %2883 = vmatpush1.msra.mxu0 0.0
      %2884 = vmatprep.subr.mxu0 0.0
      %2885 = vmatpush1.msra.mxu0 0.0
      %2886 = vmatprep.subr.mxu0 0.0
      %2887 = vmatpush1.msra.mxu0 0.0
      %2888 = vmatprep.subr.mxu0 0.0
      %2889 = vmatpush1.msra.mxu0 0.0
      %2890 = vmatprep.subr.mxu0 0.0
      %2891 = vmatpush1.msra.mxu0 %v2336
      %2892 = vmatprep.subr.mxu0 0.0
      %2893 = vmatpush1.msra.mxu0 %v2335
      %2894 = vmatprep.subr.mxu0 0.0
      %2895 = vmatpush2.msra.mxu0 0.0
      %2896 = vmatprep.subr.mxu0 0.0
      %2897 = vmatpush2.msra.mxu0 0.0
      %2898 = vmatprep.subr.mxu0 0.0
      %2899 = vmatpush2.msra.mxu0 0.0
      %2900 = vmatprep.subr.mxu0 0.0
      %2901 = vmatpush2.msra.mxu0 0.0
      %2902 = vmatprep.subr.mxu0 0.0
      %2903 = vmatpush2.msra.mxu0 0.0
      %2904 = vmatprep.subr.mxu0 0.0
      %2905 = vmatpush2.msra.mxu0 0.0
      %2906 = vmatprep.subr.mxu0 0.0
      %2907 = vmatpush2.msra.mxu0 0.0
      %2908 = vmatprep.subr.mxu0 0.0
      %2909 = vmatpush2.msra.mxu0 0.0
      %2910 = vmatprep.subr.mxu0 0.0
      %2911 = vmatpush2.msra.mxu0 0.0
      %2912 = vmatprep.subr.mxu0 0.0
      %2913 = vmatpush2.msra.mxu0 0.0
      %2914 = vmatprep.subr.mxu0 0.0
      %2915 = vmatpush2.msra.mxu0 0.0
      %2916 = vmatprep.subr.mxu0 0.0
      %2917 = vmatpush2.msra.mxu0 0.0
      %2918 = vmatprep.subr.mxu0 0.0
      %2919 = vmatpush2.msra.mxu0 0.0
      %2920 = vmatprep.subr.mxu0 0.0
      %2921 = vmatpush2.msra.mxu0 0.0
      %2922 = vmatprep.subr.mxu0 0.0
      %2923 = vmatpush2.msra.mxu0 0.0
      %2924 = vmatprep.subr.mxu0 0.0
      %2925 = vmatpush2.msra.mxu0 0.0
      %2926 = vmatprep.mubr.f32.mxu0 0.0
      %2927 = vmatmul.mubr.f32.gmra.mxu0 %v1374
      %v2928 = vpop.f32.mrf.mxu0
      %v2929 = vadd.f32 0.0, %v2928
      %v2930 = vpop.f32.mrf.mxu0
      %2931 = vmatprep.mubr.f32.mxu0 0.0
      %2932 = vmatmul.mubr.f32.gmra.mxu0 %v1377
      %v2933 = vpop.f32.mrf.mxu0
      %v2934 = vadd.f32 0.0, %v2933
      %v2935 = vpop.f32.mrf.mxu0
      %2936 = vdwg.mxu0
      %2937 = vmatprep.subr.mxu0 0.0
      %2938 = vmatpush1.msra.mxu0 0.0
      %2939 = vmatprep.subr.mxu0 0.0
      %2940 = vmatpush1.msra.mxu0 0.0
      %2941 = vmatprep.subr.mxu0 0.0
      %2942 = vmatpush1.msra.mxu0 0.0
      %2943 = vmatprep.subr.mxu0 0.0
      %2944 = vmatpush1.msra.mxu0 0.0
      %2945 = vmatprep.subr.mxu0 0.0
      %2946 = vmatpush1.msra.mxu0 0.0
      %2947 = vmatprep.subr.mxu0 0.0
      %2948 = vmatpush1.msra.mxu0 0.0
      %2949 = vmatprep.subr.mxu0 0.0
      %2950 = vmatpush1.msra.mxu0 0.0
      %2951 = vmatprep.subr.mxu0 0.0
      %2952 = vmatpush1.msra.mxu0 0.0
      %2953 = vmatprep.subr.mxu0 0.0
      %2954 = vmatpush1.msra.mxu0 0.0
      %2955 = vmatprep.subr.mxu0 0.0
      %2956 = vmatpush1.msra.mxu0 0.0
      %2957 = vmatprep.subr.mxu0 0.0
      %2958 = vmatpush1.msra.mxu0 0.0
      %2959 = vmatprep.subr.mxu0 0.0
      %2960 = vmatpush1.msra.mxu0 0.0
      %2961 = vmatprep.subr.mxu0 0.0
      %2962 = vmatpush1.msra.mxu0 0.0
      %2963 = vmatprep.subr.mxu0 0.0
      %2964 = vmatpush1.msra.mxu0 0.0
      %2965 = vmatprep.subr.mxu0 0.0
      %2966 = vmatpush1.msra.mxu0 %v2336
      %2967 = vmatprep.subr.mxu0 0.0
      %2968 = vmatpush1.msra.mxu0 %v2335
      %2969 = vmatprep.subr.mxu0 0.0
      %2970 = vmatpush2.msra.mxu0 0.0
      %2971 = vmatprep.subr.mxu0 0.0
      %2972 = vmatpush2.msra.mxu0 0.0
      %2973 = vmatprep.subr.mxu0 0.0
      %2974 = vmatpush2.msra.mxu0 0.0
      %2975 = vmatprep.subr.mxu0 0.0
      %2976 = vmatpush2.msra.mxu0 0.0
      %2977 = vmatprep.subr.mxu0 0.0
      %2978 = vmatpush2.msra.mxu0 0.0
      %2979 = vmatprep.subr.mxu0 0.0
      %2980 = vmatpush2.msra.mxu0 0.0
      %2981 = vmatprep.subr.mxu0 0.0
      %2982 = vmatpush2.msra.mxu0 0.0
      %2983 = vmatprep.subr.mxu0 0.0
      %2984 = vmatpush2.msra.mxu0 0.0
      %2985 = vmatprep.subr.mxu0 0.0
      %2986 = vmatpush2.msra.mxu0 0.0
      %2987 = vmatprep.subr.mxu0 0.0
      %2988 = vmatpush2.msra.mxu0 0.0
      %2989 = vmatprep.subr.mxu0 0.0
      %2990 = vmatpush2.msra.mxu0 0.0
      %2991 = vmatprep.subr.mxu0 0.0
      %2992 = vmatpush2.msra.mxu0 0.0
      %2993 = vmatprep.subr.mxu0 0.0
      %2994 = vmatpush2.msra.mxu0 0.0
      %2995 = vmatprep.subr.mxu0 0.0
      %2996 = vmatpush2.msra.mxu0 0.0
      %2997 = vmatprep.subr.mxu0 0.0
      %2998 = vmatpush2.msra.mxu0 0.0
      %2999 = vmatprep.subr.mxu0 0.0
      %3000 = vmatpush2.msra.mxu0 0.0
      %3001 = vmatprep.mubr.f32.mxu0 0.0
      %3002 = vmatmul.mubr.f32.gmra.mxu0 %v1458
      %v3003 = vpop.f32.mrf.mxu0
      %v3004 = vadd.f32 0.0, %v3003
      %v3005 = vpop.f32.mrf.mxu0
      %3006 = vmatprep.mubr.f32.mxu0 0.0
      %3007 = vmatmul.mubr.f32.gmra.mxu0 %v1461
      %v3008 = vpop.f32.mrf.mxu0
      %v3009 = vadd.f32 0.0, %v3008
      %v3010 = vpop.f32.mrf.mxu0
      %3011 = vdwg.mxu0
      %v3012 = vpack.c.bf16 %v2409, %v2404
      %v3013 = vpack.c.bf16 %v2484, %v2479
      %v3014 = vpack.c.bf16 %v2559, %v2554
      %v3015 = vpack.c.bf16 %v2634, %v2629
      %v3016 = vpack.c.bf16 %v2709, %v2704
      %v3017 = vpack.c.bf16 %v2784, %v2779
      %v3018 = vpack.c.bf16 %v2859, %v2854
      %v3019 = vpack.c.bf16 %v2934, %v2929
      %v3020 = vpack.c.bf16 %v3009, %v3004
      %v3021 = vld [vmem:[%s7] sm:$0xf]
      %v3022 = vld [vmem:[%s7 + $0x4] sm:$0xf]
      %v3023 = vld [vmem:[%s7 + $0x8] sm:$0xf]
      %v3024 = vld [vmem:[%s7 + $0xc] sm:$0xf]
      %v3025 = vld [vmem:[%s7 + $0x10] sm:$0xf]
      %v3026 = vld [vmem:[%s7 + $0x14] sm:$0xf]
      %v3027 = vld [vmem:[%s7 + $0x18] sm:$0xf]
      %v3028 = vld [vmem:[%s7 + $0x1c] sm:$0xf]
      %v3029 = vld [vmem:[%s7 + $0x20] sm:$0xf]
      %v3030 = vld [vmem:[%s7 + $0x24] sm:$0xf]
      %v3031 = vld [vmem:[%s7 + $0x28] sm:$0xf]
      %v3032 = vld [vmem:[%s7 + $0x2c] sm:$0xf]
      %v3033 = vld [vmem:[%s7 + $0x30] sm:$0xf]
      %v3034 = vld [vmem:[%s7 + $0x34] sm:$0xf]
      %v3035 = vld [vmem:[%s7 + $0x38] sm:$0xf]
      %v3036 = vld [vmem:[%s7 + $0x3c] sm:$0xf]
      %v3037 = vld [vmem:[%s7 + $0x40] sm:$0xf]
      %v3038 = vld [vmem:[%s7 + $0x44] sm:$0xf]
      %v3039 = vld [vmem:[%s7 + $0x48] sm:$0xf]
      %v3040 = vld [vmem:[%s7 + $0x4c] sm:$0xf]
      %v3041 = vld [vmem:[%s7 + $0x50] sm:$0xf]
      %v3042 = vld [vmem:[%s7 + $0x54] sm:$0xf]
      %v3043 = vld [vmem:[%s7 + $0x58] sm:$0xf]
      %v3044 = vld [vmem:[%s7 + $0x5c] sm:$0xf]
      %v3045 = vld [vmem:[%s7 + $0x60] sm:$0xf]
      %v3046 = vld [vmem:[%s7 + $0x64] sm:$0xf]
      %v3047 = vld [vmem:[%s7 + $0x68] sm:$0xf]
      %v3048 = vld [vmem:[%s7 + $0x6c] sm:$0xf]
      %v3049 = vld [vmem:[%s7 + $0x70] sm:$0xf]
      %v3050 = vld [vmem:[%s7 + $0x74] sm:$0xf]
      %v3051 = vld [vmem:[%s7 + $0x78] sm:$0xf]
      %v3052 = vld [vmem:[%s7 + $0x7c] sm:$0xf]
      %v3053 = vld [vmem:[%s7 + $0x80] sm:$0xf]
      %v3054 = vld [vmem:[%s7 + $0x84] sm:$0xf]
      %v3055 = vld [vmem:[%s7 + $0x88] sm:$0xf]
      %v3056 = vld [vmem:[%s7 + $0x8c] sm:$0xf]
      %v3057 = vld [vmem:[%s7 + $0x90] sm:$0xf]
      %v3058 = vld [vmem:[%s7 + $0x94] sm:$0xf]
      %v3059 = vld [vmem:[%s7 + $0x98] sm:$0xf]
      %v3060 = vld [vmem:[%s7 + $0x9c] sm:$0xf]
      %v3061 = vld [vmem:[%s7 + $0xa0] sm:$0xf]
      %v3062 = vld [vmem:[%s7 + $0xa4] sm:$0xf]
      %v3063 = vld [vmem:[%s7 + $0xa8] sm:$0xf]
      %v3064 = vld [vmem:[%s7 + $0xac] sm:$0xf]
      %v3065 = vld [vmem:[%s7 + $0xb0] sm:$0xf]
      %v3066 = vld [vmem:[%s7 + $0xb4] sm:$0xf]
      %v3067 = vld [vmem:[%s7 + $0xb8] sm:$0xf]
      %v3068 = vld [vmem:[%s7 + $0xbc] sm:$0xf]
      %v3069 = vld [vmem:[%s7 + $0xc0] sm:$0xf]
      %v3070 = vld [vmem:[%s7 + $0xc4] sm:$0xf]
      %v3071 = vld [vmem:[%s7 + $0xc8] sm:$0xf]
      %v3072 = vld [vmem:[%s7 + $0xcc] sm:$0xf]
      %v3073 = vld [vmem:[%s7 + $0xd0] sm:$0xf]
      %v3074 = vld [vmem:[%s7 + $0xd4] sm:$0xf]
      %v3075 = vld [vmem:[%s7 + $0xd8] sm:$0xf]
      %v3076 = vld [vmem:[%s7 + $0xdc] sm:$0xf]
      %v3077 = vld [vmem:[%s7 + $0xe0] sm:$0xf]
      %v3078 = vld [vmem:[%s7 + $0xe4] sm:$0xf]
      %v3079 = vld [vmem:[%s7 + $0xe8] sm:$0xf]
      %v3080 = vld [vmem:[%s7 + $0xec] sm:$0xf]
      %v3081 = vld [vmem:[%s7 + $0xf0] sm:$0xf]
      %v3082 = vld [vmem:[%s7 + $0xf4] sm:$0xf]
      %v3083 = vld [vmem:[%s7 + $0xf8] sm:$0xf]
      %v3084 = vld [vmem:[%s7 + $0xfc] sm:$0xf]
      %v3085 = vld [vmem:[%s7 + $0x100] sm:$0xf]
      %v3086 = vld [vmem:[%s7 + $0x104] sm:$0xf]
      %v3087 = vld [vmem:[%s7 + $0x108] sm:$0xf]
      %v3088 = vld [vmem:[%s7 + $0x10c] sm:$0xf]
      %v3089 = vld [vmem:[%s7 + $0x110] sm:$0xf]
      %v3090 = vld [vmem:[%s7 + $0x114] sm:$0xf]
      %v3091 = vld [vmem:[%s7 + $0x118] sm:$0xf]
      %v3092 = vld [vmem:[%s7 + $0x11c] sm:$0xf]
      %v3093 = vld [vmem:[%s7 + $0x120] sm:$0xf]
      %v3094 = vld [vmem:[%s7 + $0x124] sm:$0xf]
      %v3095 = vld [vmem:[%s7 + $0x128] sm:$0xf]
      %v3096 = vld [vmem:[%s7 + $0x12c] sm:$0xf]
      %v3097 = vld [vmem:[%s7 + $0x130] sm:$0xf]
      %v3098 = vld [vmem:[%s7 + $0x134] sm:$0xf]
      %v3099 = vld [vmem:[%s7 + $0x138] sm:$0xf]
      %v3100 = vld [vmem:[%s7 + $0x13c] sm:$0xf]
      %v3101 = vld [vmem:[%s7 + $0x140] sm:$0xf]
      %v3102 = vld [vmem:[%s7 + $0x144] sm:$0xf]
      %v3103 = vld [vmem:[%s7 + $0x148] sm:$0xf]
      %v3104 = vld [vmem:[%s7 + $0x14c] sm:$0xf]
      %v3105 = vld [vmem:[%s7 + $0x150] sm:$0xf]
      %v3106 = vld [vmem:[%s7 + $0x154] sm:$0xf]
      %v3107 = vld [vmem:[%s7 + $0x158] sm:$0xf]
      %v3108 = vld [vmem:[%s7 + $0x15c] sm:$0xf]
      %v3109 = vld [vmem:[%s7 + $0x160] sm:$0xf]
      %v3110 = vld [vmem:[%s7 + $0x164] sm:$0xf]
      %v3111 = vld [vmem:[%s7 + $0x168] sm:$0xf]
      %v3112 = vld [vmem:[%s7 + $0x16c] sm:$0xf]
      %v3113 = vld [vmem:[%s7 + $0x170] sm:$0xf]
      %v3114 = vld [vmem:[%s7 + $0x174] sm:$0xf]
      %v3115 = vld [vmem:[%s7 + $0x178] sm:$0xf]
      %v3116 = vld [vmem:[%s7 + $0x17c] sm:$0xf]
      %v3117 = vld [vmem:[%s7 + $0x180] sm:$0xf]
      %v3118 = vld [vmem:[%s7 + $0x184] sm:$0xf]
      %v3119 = vld [vmem:[%s7 + $0x188] sm:$0xf]
      %v3120 = vld [vmem:[%s7 + $0x18c] sm:$0xf]
      %v3121 = vld [vmem:[%s7 + $0x190] sm:$0xf]
      %v3122 = vld [vmem:[%s7 + $0x194] sm:$0xf]
      %v3123 = vld [vmem:[%s7 + $0x198] sm:$0xf]
      %v3124 = vld [vmem:[%s7 + $0x19c] sm:$0xf]
      %v3125 = vld [vmem:[%s7 + $0x1a0] sm:$0xf]
      %v3126 = vld [vmem:[%s7 + $0x1a4] sm:$0xf]
      %v3127 = vld [vmem:[%s7 + $0x1a8] sm:$0xf]
      %v3128 = vld [vmem:[%s7 + $0x1ac] sm:$0xf]
      %v3129 = vld [vmem:[%s7 + $0x1b0] sm:$0xf]
      %v3130 = vld [vmem:[%s7 + $0x1b4] sm:$0xf]
      %v3131 = vld [vmem:[%s7 + $0x1b8] sm:$0xf]
      %v3132 = vld [vmem:[%s7 + $0x1bc] sm:$0xf]
      %v3133 = vld [vmem:[%s7 + $0x1c0] sm:$0xf]
      %v3134 = vld [vmem:[%s7 + $0x1c4] sm:$0xf]
      %v3135 = vld [vmem:[%s7 + $0x1c8] sm:$0xf]
      %v3136 = vld [vmem:[%s7 + $0x1cc] sm:$0xf]
      %v3137 = vld [vmem:[%s7 + $0x1d0] sm:$0xf]
      %v3138 = vld [vmem:[%s7 + $0x1d4] sm:$0xf]
      %v3139 = vld [vmem:[%s7 + $0x1d8] sm:$0xf]
      %v3140 = vld [vmem:[%s7 + $0x1dc] sm:$0xf]
      %v3141 = vld [vmem:[%s7 + $0x1e0] sm:$0xf]
      %v3142 = vld [vmem:[%s7 + $0x1e4] sm:$0xf]
      %v3143 = vld [vmem:[%s7 + $0x1e8] sm:$0xf]
      %v3144 = vld [vmem:[%s7 + $0x1ec] sm:$0xf]
      %v3145 = vld [vmem:[%s7 + $0x1f0] sm:$0xf]
      %v3146 = vld [vmem:[%s7 + $0x1f4] sm:$0xf]
      %v3147 = vld [vmem:[%s7 + $0x1f8] sm:$0xf]
      %v3148 = vld [vmem:[%s7 + $0x1fc] sm:$0xf]
      %v3149 = vld [vmem:[%s7 + $0x200] sm:$0xf]
      %v3150 = vld [vmem:[%s7 + $0x204] sm:$0xf]
      %v3151 = vld [vmem:[%s7 + $0x208] sm:$0xf]
      %v3152 = vld [vmem:[%s7 + $0x20c] sm:$0xf]
      %v3153 = vld [vmem:[%s7 + $0x210] sm:$0xf]
      %v3154 = vld [vmem:[%s7 + $0x214] sm:$0xf]
      %v3155 = vld [vmem:[%s7 + $0x218] sm:$0xf]
      %v3156 = vld [vmem:[%s7 + $0x21c] sm:$0xf]
      %v3157 = vld [vmem:[%s7 + $0x220] sm:$0xf]
      %v3158 = vld [vmem:[%s7 + $0x224] sm:$0xf]
      %v3159 = vld [vmem:[%s7 + $0x228] sm:$0xf]
      %v3160 = vld [vmem:[%s7 + $0x22c] sm:$0xf]
      %v3161 = vld [vmem:[%s7 + $0x230] sm:$0xf]
      %v3162 = vld [vmem:[%s7 + $0x234] sm:$0xf]
      %v3163 = vld [vmem:[%s7 + $0x238] sm:$0xf]
      %v3164 = vld [vmem:[%s7 + $0x23c] sm:$0xf]
      %v3165 = vld [vmem:[%s8] sm:$0x1]
      %v3167 = vlaneseq
      %v3168 = vshrl.u32 %v3167, 7
      %v3169 = vsub.s32 0, %v3168
      %v3170 = vrot.slane %v3165, %v3169
      %v3316 = vunpack.c.l.b16 %v3021
      %v3317 = vunpack.c.l.b16 %v3022
      %v3318 = vunpack.c.l.b16 %v3023
      %v3319 = vunpack.c.l.b16 %v3024
      %v3320 = vunpack.c.l.b16 %v3025
      %v3321 = vunpack.c.l.b16 %v3026
      %v3322 = vunpack.c.l.b16 %v3027
      %v3323 = vunpack.c.l.b16 %v3028
      %v3324 = vunpack.c.l.b16 %v3029
      %v3325 = vunpack.c.l.b16 %v3030
      %v3326 = vunpack.c.l.b16 %v3031
      %v3327 = vunpack.c.l.b16 %v3032
      %v3328 = vunpack.c.l.b16 %v3033
      %v3329 = vunpack.c.l.b16 %v3034
      %v3330 = vunpack.c.l.b16 %v3035
      %v3331 = vunpack.c.l.b16 %v3036
      %v3332 = vunpack.c.l.b16 %v3037
      %v3333 = vunpack.c.l.b16 %v3038
      %v3334 = vunpack.c.l.b16 %v3039
      %v3335 = vunpack.c.l.b16 %v3040
      %v3336 = vunpack.c.l.b16 %v3041
      %v3337 = vunpack.c.l.b16 %v3042
      %v3338 = vunpack.c.l.b16 %v3043
      %v3339 = vunpack.c.l.b16 %v3044
      %v3340 = vunpack.c.l.b16 %v3045
      %v3341 = vunpack.c.l.b16 %v3046
      %v3342 = vunpack.c.l.b16 %v3047
      %v3343 = vunpack.c.l.b16 %v3048
      %v3344 = vunpack.c.l.b16 %v3049
      %v3345 = vunpack.c.l.b16 %v3050
      %v3346 = vunpack.c.l.b16 %v3051
      %v3347 = vunpack.c.l.b16 %v3052
      %v3348 = vunpack.c.l.b16 %v3053
      %v3349 = vunpack.c.l.b16 %v3054
      %v3350 = vunpack.c.l.b16 %v3055
      %v3351 = vunpack.c.l.b16 %v3056
      %v3352 = vunpack.c.l.b16 %v3057
      %v3353 = vunpack.c.l.b16 %v3058
      %v3354 = vunpack.c.l.b16 %v3059
      %v3355 = vunpack.c.l.b16 %v3060
      %v3356 = vunpack.c.l.b16 %v3061
      %v3357 = vunpack.c.l.b16 %v3062
      %v3358 = vunpack.c.l.b16 %v3063
      %v3359 = vunpack.c.l.b16 %v3064
      %v3360 = vunpack.c.l.b16 %v3065
      %v3361 = vunpack.c.l.b16 %v3066
      %v3362 = vunpack.c.l.b16 %v3067
      %v3363 = vunpack.c.l.b16 %v3068
      %v3364 = vunpack.c.l.b16 %v3069
      %v3365 = vunpack.c.l.b16 %v3070
      %v3366 = vunpack.c.l.b16 %v3071
      %v3367 = vunpack.c.l.b16 %v3072
      %v3368 = vunpack.c.l.b16 %v3073
      %v3369 = vunpack.c.l.b16 %v3074
      %v3370 = vunpack.c.l.b16 %v3075
      %v3371 = vunpack.c.l.b16 %v3076
      %v3372 = vunpack.c.l.b16 %v3077
      %v3373 = vunpack.c.l.b16 %v3078
      %v3374 = vunpack.c.l.b16 %v3079
      %v3375 = vunpack.c.l.b16 %v3080
      %v3376 = vunpack.c.l.b16 %v3081
      %v3377 = vunpack.c.l.b16 %v3082
      %v3378 = vunpack.c.l.b16 %v3083
      %v3379 = vunpack.c.l.b16 %v3084
      %v3380 = vunpack.c.l.b16 %v3085
      %v3381 = vunpack.c.l.b16 %v3086
      %v3382 = vunpack.c.l.b16 %v3087
      %v3383 = vunpack.c.l.b16 %v3088
      %v3384 = vunpack.c.l.b16 %v3089
      %v3385 = vunpack.c.l.b16 %v3090
      %v3386 = vunpack.c.l.b16 %v3091
      %v3387 = vunpack.c.l.b16 %v3092
      %v3388 = vunpack.c.l.b16 %v3093
      %v3389 = vunpack.c.l.b16 %v3094
      %v3390 = vunpack.c.l.b16 %v3095
      %v3391 = vunpack.c.l.b16 %v3096
      %v3392 = vunpack.c.l.b16 %v3097
      %v3393 = vunpack.c.l.b16 %v3098
      %v3394 = vunpack.c.l.b16 %v3099
      %v3395 = vunpack.c.l.b16 %v3100
      %v3396 = vunpack.c.l.b16 %v3101
      %v3397 = vunpack.c.l.b16 %v3102
      %v3398 = vunpack.c.l.b16 %v3103
      %v3399 = vunpack.c.l.b16 %v3104
      %v3400 = vunpack.c.l.b16 %v3105
      %v3401 = vunpack.c.l.b16 %v3106
      %v3402 = vunpack.c.l.b16 %v3107
      %v3403 = vunpack.c.l.b16 %v3108
      %v3404 = vunpack.c.l.b16 %v3109
      %v3405 = vunpack.c.l.b16 %v3110
      %v3406 = vunpack.c.l.b16 %v3111
      %v3407 = vunpack.c.l.b16 %v3112
      %v3408 = vunpack.c.l.b16 %v3113
      %v3409 = vunpack.c.l.b16 %v3114
      %v3410 = vunpack.c.l.b16 %v3115
      %v3411 = vunpack.c.l.b16 %v3116
      %v3412 = vunpack.c.l.b16 %v3117
      %v3413 = vunpack.c.l.b16 %v3118
      %v3414 = vunpack.c.l.b16 %v3119
      %v3415 = vunpack.c.l.b16 %v3120
      %v3416 = vunpack.c.l.b16 %v3121
      %v3417 = vunpack.c.l.b16 %v3122
      %v3418 = vunpack.c.l.b16 %v3123
      %v3419 = vunpack.c.l.b16 %v3124
      %v3420 = vunpack.c.l.b16 %v3125
      %v3421 = vunpack.c.l.b16 %v3126
      %v3422 = vunpack.c.l.b16 %v3127
      %v3423 = vunpack.c.l.b16 %v3128
      %v3424 = vunpack.c.l.b16 %v3129
      %v3425 = vunpack.c.l.b16 %v3130
      %v3426 = vunpack.c.l.b16 %v3131
      %v3427 = vunpack.c.l.b16 %v3132
      %v3428 = vunpack.c.l.b16 %v3133
      %v3429 = vunpack.c.l.b16 %v3134
      %v3430 = vunpack.c.l.b16 %v3135
      %v3431 = vunpack.c.l.b16 %v3136
      %v3432 = vunpack.c.l.b16 %v3137
      %v3433 = vunpack.c.l.b16 %v3138
      %v3434 = vunpack.c.l.b16 %v3139
      %v3435 = vunpack.c.l.b16 %v3140
      %v3436 = vunpack.c.l.b16 %v3141
      %v3437 = vunpack.c.l.b16 %v3142
      %v3438 = vunpack.c.l.b16 %v3143
      %v3439 = vunpack.c.l.b16 %v3144
      %v3440 = vunpack.c.l.b16 %v3145
      %v3441 = vunpack.c.l.b16 %v3146
      %v3442 = vunpack.c.l.b16 %v3147
      %v3443 = vunpack.c.l.b16 %v3148
      %v3444 = vunpack.c.l.b16 %v3149
      %v3445 = vunpack.c.l.b16 %v3150
      %v3446 = vunpack.c.l.b16 %v3151
      %v3447 = vunpack.c.l.b16 %v3152
      %v3448 = vunpack.c.l.b16 %v3153
      %v3449 = vunpack.c.l.b16 %v3154
      %v3450 = vunpack.c.l.b16 %v3155
      %v3451 = vunpack.c.l.b16 %v3156
      %v3452 = vunpack.c.l.b16 %v3157
      %v3453 = vunpack.c.l.b16 %v3158
      %v3454 = vunpack.c.l.b16 %v3159
      %v3455 = vunpack.c.l.b16 %v3160
      %v3456 = vunpack.c.l.b16 %v3161
      %v3457 = vunpack.c.l.b16 %v3162
      %v3458 = vunpack.c.l.b16 %v3163
      %v3459 = vunpack.c.l.b16 %v3164
      %v3460 = vpack.c.b16 %v3317, %v3316
      %v3461 = vpack.c.b16 %v3319, %v3318
      %v3462 = vpack.c.b16 %v3321, %v3320
      %v3463 = vpack.c.b16 %v3323, %v3322
      %v3464 = vpack.c.b16 %v3325, %v3324
      %v3465 = vpack.c.b16 %v3327, %v3326
      %v3466 = vpack.c.b16 %v3329, %v3328
      %v3467 = vpack.c.b16 %v3331, %v3330
      %v3468 = vpack.c.b16 %v3333, %v3332
      %v3469 = vpack.c.b16 %v3335, %v3334
      %v3470 = vpack.c.b16 %v3337, %v3336
      %v3471 = vpack.c.b16 %v3339, %v3338
      %v3472 = vpack.c.b16 %v3341, %v3340
      %v3473 = vpack.c.b16 %v3343, %v3342
      %v3474 = vpack.c.b16 %v3345, %v3344
      %v3475 = vpack.c.b16 %v3347, %v3346
      %v3476 = vpack.c.b16 %v3349, %v3348
      %v3477 = vpack.c.b16 %v3351, %v3350
      %v3478 = vpack.c.b16 %v3353, %v3352
      %v3479 = vpack.c.b16 %v3355, %v3354
      %v3480 = vpack.c.b16 %v3357, %v3356
      %v3481 = vpack.c.b16 %v3359, %v3358
      %v3482 = vpack.c.b16 %v3361, %v3360
      %v3483 = vpack.c.b16 %v3363, %v3362
      %v3484 = vpack.c.b16 %v3365, %v3364
      %v3485 = vpack.c.b16 %v3367, %v3366
      %v3486 = vpack.c.b16 %v3369, %v3368
      %v3487 = vpack.c.b16 %v3371, %v3370
      %v3488 = vpack.c.b16 %v3373, %v3372
      %v3489 = vpack.c.b16 %v3375, %v3374
      %v3490 = vpack.c.b16 %v3377, %v3376
      %v3491 = vpack.c.b16 %v3379, %v3378
      %v3492 = vpack.c.b16 %v3381, %v3380
      %v3493 = vpack.c.b16 %v3383, %v3382
      %v3494 = vpack.c.b16 %v3385, %v3384
      %v3495 = vpack.c.b16 %v3387, %v3386
      %v3496 = vpack.c.b16 %v3389, %v3388
      %v3497 = vpack.c.b16 %v3391, %v3390
      %v3498 = vpack.c.b16 %v3393, %v3392
      %v3499 = vpack.c.b16 %v3395, %v3394
      %v3500 = vpack.c.b16 %v3397, %v3396
      %v3501 = vpack.c.b16 %v3399, %v3398
      %v3502 = vpack.c.b16 %v3401, %v3400
      %v3503 = vpack.c.b16 %v3403, %v3402
      %v3504 = vpack.c.b16 %v3405, %v3404
      %v3505 = vpack.c.b16 %v3407, %v3406
      %v3506 = vpack.c.b16 %v3409, %v3408
      %v3507 = vpack.c.b16 %v3411, %v3410
      %v3508 = vpack.c.b16 %v3413, %v3412
      %v3509 = vpack.c.b16 %v3415, %v3414
      %v3510 = vpack.c.b16 %v3417, %v3416
      %v3511 = vpack.c.b16 %v3419, %v3418
      %v3512 = vpack.c.b16 %v3421, %v3420
      %v3513 = vpack.c.b16 %v3423, %v3422
      %v3514 = vpack.c.b16 %v3425, %v3424
      %v3515 = vpack.c.b16 %v3427, %v3426
      %v3516 = vpack.c.b16 %v3429, %v3428
      %v3517 = vpack.c.b16 %v3431, %v3430
      %v3518 = vpack.c.b16 %v3433, %v3432
      %v3519 = vpack.c.b16 %v3435, %v3434
      %v3520 = vpack.c.b16 %v3437, %v3436
      %v3521 = vpack.c.b16 %v3439, %v3438
      %v3522 = vpack.c.b16 %v3441, %v3440
      %v3523 = vpack.c.b16 %v3443, %v3442
      %v3524 = vpack.c.b16 %v3445, %v3444
      %v3525 = vpack.c.b16 %v3447, %v3446
      %v3526 = vpack.c.b16 %v3449, %v3448
      %v3527 = vpack.c.b16 %v3451, %v3450
      %v3528 = vpack.c.b16 %v3453, %v3452
      %v3529 = vpack.c.b16 %v3455, %v3454
      %v3530 = vpack.c.b16 %v3457, %v3456
      %v3531 = vpack.c.b16 %v3459, %v3458
      %3604 = vmatprep.subr.bf16.mxu0 0
      %3605 = vmatpush1.bf16.msra.mxu0 %v3467
      %3606 = vmatprep.subr.bf16.mxu0 0
      %3607 = vmatpush1.bf16.msra.mxu0 %v3466
      %3608 = vmatprep.subr.bf16.mxu0 0
      %3609 = vmatpush1.bf16.msra.mxu0 %v3465
      %3610 = vmatprep.subr.bf16.mxu0 0
      %3611 = vmatpush1.bf16.msra.mxu0 %v3464
      %3612 = vmatprep.subr.bf16.mxu0 0
      %3613 = vmatpush1.bf16.msra.mxu0 %v3463
      %3614 = vmatprep.subr.bf16.mxu0 0
      %3615 = vmatpush1.bf16.msra.mxu0 %v3462
      %3616 = vmatprep.subr.bf16.mxu0 0
      %3617 = vmatpush1.bf16.msra.mxu0 %v3461
      %3618 = vmatprep.subr.bf16.mxu0 0
      %3619 = vmatpush1.bf16.msra.mxu0 %v3460
      %3620 = vmatprep.subr.bf16.mxu0 0
      %3621 = vmatpush2.bf16.msra.mxu0 %v3475
      %3622 = vmatprep.subr.bf16.mxu0 0
      %3623 = vmatpush2.bf16.msra.mxu0 %v3474
      %3624 = vmatprep.subr.bf16.mxu0 0
      %3625 = vmatpush2.bf16.msra.mxu0 %v3473
      %3626 = vmatprep.subr.bf16.mxu0 0
      %3627 = vmatpush2.bf16.msra.mxu0 %v3472
      %3628 = vmatprep.subr.bf16.mxu0 0
      %3629 = vmatpush2.bf16.msra.mxu0 %v3471
      %3630 = vmatprep.subr.bf16.mxu0 0
      %3631 = vmatpush2.bf16.msra.mxu0 %v3470
      %3632 = vmatprep.subr.bf16.mxu0 0
      %3633 = vmatpush2.bf16.msra.mxu0 %v3469
      %3634 = vmatprep.subr.bf16.mxu0 0
      %3635 = vmatpush2.bf16.msra.mxu0 %v3468
      %3636 = vmatprep.mubr.bf16.mxu0 %v3013
      %3637 = vmatmul.mubr.bf16.gmra.mxu0 %v3012
      %v3638 = vpop.f32.mrf.mxu0
      %v3639 = vadd.f32 %v3170, %v3638
      %v3640 = vpop.f32.mrf.mxu0
      %v3641 = vpop.f32.mrf.mxu0
      %v3642 = vadd.f32 %v3170, %v3641
      %v3643 = vpop.f32.mrf.mxu0
      %3644 = vdwg.mxu0
      %3645 = vmatprep.subr.bf16.mxu0 0
      %3646 = vmatpush1.bf16.msra.mxu0 %v3483
      %3647 = vmatprep.subr.bf16.mxu0 0
      %3648 = vmatpush1.bf16.msra.mxu0 %v3482
      %3649 = vmatprep.subr.bf16.mxu0 0
      %3650 = vmatpush1.bf16.msra.mxu0 %v3481
      %3651 = vmatprep.subr.bf16.mxu0 0
      %3652 = vmatpush1.bf16.msra.mxu0 %v3480
      %3653 = vmatprep.subr.bf16.mxu0 0
      %3654 = vmatpush1.bf16.msra.mxu0 %v3479
      %3655 = vmatprep.subr.bf16.mxu0 0
      %3656 = vmatpush1.bf16.msra.mxu0 %v3478
      %3657 = vmatprep.subr.bf16.mxu0 0
      %3658 = vmatpush1.bf16.msra.mxu0 %v3477
      %3659 = vmatprep.subr.bf16.mxu0 0
      %3660 = vmatpush1.bf16.msra.mxu0 %v3476
      %3661 = vmatprep.subr.bf16.mxu0 0
      %3662 = vmatpush2.bf16.msra.mxu0 %v3491
      %3663 = vmatprep.subr.bf16.mxu0 0
      %3664 = vmatpush2.bf16.msra.mxu0 %v3490
      %3665 = vmatprep.subr.bf16.mxu0 0
      %3666 = vmatpush2.bf16.msra.mxu0 %v3489
      %3667 = vmatprep.subr.bf16.mxu0 0
      %3668 = vmatpush2.bf16.msra.mxu0 %v3488
      %3669 = vmatprep.subr.bf16.mxu0 0
      %3670 = vmatpush2.bf16.msra.mxu0 %v3487
      %3671 = vmatprep.subr.bf16.mxu0 0
      %3672 = vmatpush2.bf16.msra.mxu0 %v3486
      %3673 = vmatprep.subr.bf16.mxu0 0
      %3674 = vmatpush2.bf16.msra.mxu0 %v3485
      %3675 = vmatprep.subr.bf16.mxu0 0
      %3676 = vmatpush2.bf16.msra.mxu0 %v3484
      %3677 = vmatprep.mubr.bf16.mxu0 %v3015
      %3678 = vmatmul.mubr.bf16.gmra.mxu0 %v3014
      %v3679 = vpop.f32.mrf.mxu0
      %v3680 = vadd.f32 %v3639, %v3679
      %v3681 = vpop.f32.mrf.mxu0
      %v3682 = vpop.f32.mrf.mxu0
      %v3683 = vadd.f32 %v3642, %v3682
      %v3684 = vpop.f32.mrf.mxu0
      %3685 = vdwg.mxu0
      %3686 = vmatprep.subr.bf16.mxu0 0
      %3687 = vmatpush1.bf16.msra.mxu0 %v3499
      %3688 = vmatprep.subr.bf16.mxu0 0
      %3689 = vmatpush1.bf16.msra.mxu0 %v3498
      %3690 = vmatprep.subr.bf16.mxu0 0
      %3691 = vmatpush1.bf16.msra.mxu0 %v3497
      %3692 = vmatprep.subr.bf16.mxu0 0
      %3693 = vmatpush1.bf16.msra.mxu0 %v3496
      %3694 = vmatprep.subr.bf16.mxu0 0
      %3695 = vmatpush1.bf16.msra.mxu0 %v3495
      %3696 = vmatprep.subr.bf16.mxu0 0
      %3697 = vmatpush1.bf16.msra.mxu0 %v3494
      %3698 = vmatprep.subr.bf16.mxu0 0
      %3699 = vmatpush1.bf16.msra.mxu0 %v3493
      %3700 = vmatprep.subr.bf16.mxu0 0
      %3701 = vmatpush1.bf16.msra.mxu0 %v3492
      %3702 = vmatprep.subr.bf16.mxu0 0
      %3703 = vmatpush2.bf16.msra.mxu0 %v3507
      %3704 = vmatprep.subr.bf16.mxu0 0
      %3705 = vmatpush2.bf16.msra.mxu0 %v3506
      %3706 = vmatprep.subr.bf16.mxu0 0
      %3707 = vmatpush2.bf16.msra.mxu0 %v3505
      %3708 = vmatprep.subr.bf16.mxu0 0
      %3709 = vmatpush2.bf16.msra.mxu0 %v3504
      %3710 = vmatprep.subr.bf16.mxu0 0
      %3711 = vmatpush2.bf16.msra.mxu0 %v3503
      %3712 = vmatprep.subr.bf16.mxu0 0
      %3713 = vmatpush2.bf16.msra.mxu0 %v3502
      %3714 = vmatprep.subr.bf16.mxu0 0
      %3715 = vmatpush2.bf16.msra.mxu0 %v3501
      %3716 = vmatprep.subr.bf16.mxu0 0
      %3717 = vmatpush2.bf16.msra.mxu0 %v3500
      %3718 = vmatprep.mubr.bf16.mxu0 %v3017
      %3719 = vmatmul.mubr.bf16.gmra.mxu0 %v3016
      %v3720 = vpop.f32.mrf.mxu0
      %v3721 = vadd.f32 %v3680, %v3720
      %v3722 = vpop.f32.mrf.mxu0
      %v3723 = vpop.f32.mrf.mxu0
      %v3724 = vadd.f32 %v3683, %v3723
      %v3725 = vpop.f32.mrf.mxu0
      %3726 = vdwg.mxu0
      %3727 = vmatprep.subr.bf16.mxu0 0
      %3728 = vmatpush1.bf16.msra.mxu0 %v3515
      %3729 = vmatprep.subr.bf16.mxu0 0
      %3730 = vmatpush1.bf16.msra.mxu0 %v3514
      %3731 = vmatprep.subr.bf16.mxu0 0
      %3732 = vmatpush1.bf16.msra.mxu0 %v3513
      %3733 = vmatprep.subr.bf16.mxu0 0
      %3734 = vmatpush1.bf16.msra.mxu0 %v3512
      %3735 = vmatprep.subr.bf16.mxu0 0
      %3736 = vmatpush1.bf16.msra.mxu0 %v3511
      %3737 = vmatprep.subr.bf16.mxu0 0
      %3738 = vmatpush1.bf16.msra.mxu0 %v3510
      %3739 = vmatprep.subr.bf16.mxu0 0
      %3740 = vmatpush1.bf16.msra.mxu0 %v3509
      %3741 = vmatprep.subr.bf16.mxu0 0
      %3742 = vmatpush1.bf16.msra.mxu0 %v3508
      %3743 = vmatprep.subr.bf16.mxu0 0
      %3744 = vmatpush2.bf16.msra.mxu0 %v3523
      %3745 = vmatprep.subr.bf16.mxu0 0
      %3746 = vmatpush2.bf16.msra.mxu0 %v3522
      %3747 = vmatprep.subr.bf16.mxu0 0
      %3748 = vmatpush2.bf16.msra.mxu0 %v3521
      %3749 = vmatprep.subr.bf16.mxu0 0
      %3750 = vmatpush2.bf16.msra.mxu0 %v3520
      %3751 = vmatprep.subr.bf16.mxu0 0
      %3752 = vmatpush2.bf16.msra.mxu0 %v3519
      %3753 = vmatprep.subr.bf16.mxu0 0
      %3754 = vmatpush2.bf16.msra.mxu0 %v3518
      %3755 = vmatprep.subr.bf16.mxu0 0
      %3756 = vmatpush2.bf16.msra.mxu0 %v3517
      %3757 = vmatprep.subr.bf16.mxu0 0
      %3758 = vmatpush2.bf16.msra.mxu0 %v3516
      %3759 = vmatprep.mubr.bf16.mxu0 %v3019
      %3760 = vmatmul.mubr.bf16.gmra.mxu0 %v3018
      %v3761 = vpop.f32.mrf.mxu0
      %v3762 = vadd.f32 %v3721, %v3761
      %v3763 = vpop.f32.mrf.mxu0
      %v3764 = vpop.f32.mrf.mxu0
      %v3765 = vadd.f32 %v3724, %v3764
      %v3766 = vpop.f32.mrf.mxu0
      %3767 = vdwg.mxu0
      %3768 = vmatprep.subr.bf16.mxu0 0
      %3769 = vmatpush1.bf16.msra.mxu0 %v3531
      %3770 = vmatprep.subr.bf16.mxu0 0
      %3771 = vmatpush1.bf16.msra.mxu0 %v3530
      %3772 = vmatprep.subr.bf16.mxu0 0
      %3773 = vmatpush1.bf16.msra.mxu0 %v3529
      %3774 = vmatprep.subr.bf16.mxu0 0
      %3775 = vmatpush1.bf16.msra.mxu0 %v3528
      %3776 = vmatprep.subr.bf16.mxu0 0
      %3777 = vmatpush1.bf16.msra.mxu0 %v3527
      %3778 = vmatprep.subr.bf16.mxu0 0
      %3779 = vmatpush1.bf16.msra.mxu0 %v3526
      %3780 = vmatprep.subr.bf16.mxu0 0
      %3781 = vmatpush1.bf16.msra.mxu0 %v3525
      %3782 = vmatprep.subr.bf16.mxu0 0
      %3783 = vmatpush1.bf16.msra.mxu0 %v3524
      %3784 = vmatprep.subr.bf16.mxu0 0
      %3785 = vmatpush2.bf16.msra.mxu0 0
      %3786 = vmatprep.subr.bf16.mxu0 0
      %3787 = vmatpush2.bf16.msra.mxu0 0
      %3788 = vmatprep.subr.bf16.mxu0 0
      %3789 = vmatpush2.bf16.msra.mxu0 0
      %3790 = vmatprep.subr.bf16.mxu0 0
      %3791 = vmatpush2.bf16.msra.mxu0 0
      %3792 = vmatprep.subr.bf16.mxu0 0
      %3793 = vmatpush2.bf16.msra.mxu0 0
      %3794 = vmatprep.subr.bf16.mxu0 0
      %3795 = vmatpush2.bf16.msra.mxu0 0
      %3796 = vmatprep.subr.bf16.mxu0 0
      %3797 = vmatpush2.bf16.msra.mxu0 0
      %3798 = vmatprep.subr.bf16.mxu0 0
      %3799 = vmatpush2.bf16.msra.mxu0 0
      %3800 = vmatprep.mubr.bf16.mxu0 0
      %3801 = vmatmul.mubr.bf16.gmra.mxu0 %v3020
      %v3802 = vpop.f32.mrf.mxu0
      %v3803 = vadd.f32 %v3762, %v3802
      %v3804 = vpop.f32.mrf.mxu0
      %v3805 = vpop.f32.mrf.mxu0
      %v3806 = vadd.f32 %v3765, %v3805
      %v3807 = vpop.f32.mrf.mxu0
      %3808 = vdwg.mxu0
      %v3809 = vmax.f32 %v3803, 0.0
      %v3810 = vmax.f32 %v3806, 0.0
      %v3811 = vadd.f32 %v3809, %v774
      %v3812 = vadd.f32 %v3810, %v779
      %v3813 = vmax.f32 %v3811, 0.0
      %v3814 = vmax.f32 %v3812, 0.0
      %v3815 = vpack.c.bf16 %v3814, %v3813
      %v3816 = vld [vmem:[%s9] sm:$0xf]
      %v3817 = vld [vmem:[%s9 + $0x4] sm:$0xf]
      %v3818 = vld [vmem:[%s9 + $0x8] sm:$0xf]
      %v3819 = vld [vmem:[%s9 + $0xc] sm:$0xf]
      %v3820 = vld [vmem:[%s9 + $0x10] sm:$0xf]
      %v3821 = vld [vmem:[%s9 + $0x14] sm:$0xf]
      %v3822 = vld [vmem:[%s9 + $0x18] sm:$0xf]
      %v3823 = vld [vmem:[%s9 + $0x1c] sm:$0xf]
      %v3824 = vld [vmem:[%s9 + $0x20] sm:$0xf]
      %v3825 = vld [vmem:[%s9 + $0x24] sm:$0xf]
      %v3826 = vld [vmem:[%s9 + $0x28] sm:$0xf]
      %v3827 = vld [vmem:[%s9 + $0x2c] sm:$0xf]
      %v3828 = vld [vmem:[%s9 + $0x30] sm:$0xf]
      %v3829 = vld [vmem:[%s9 + $0x34] sm:$0xf]
      %v3830 = vld [vmem:[%s9 + $0x38] sm:$0xf]
      %v3831 = vld [vmem:[%s9 + $0x3c] sm:$0xf]
      %v3832 = vld [vmem:[%s10] sm:$0x1]
      %v3834 = vlaneseq
      %v3835 = vshrl.u32 %v3834, 7
      %v3836 = vsub.s32 0, %v3835
      %v3837 = vrot.slane %v3832, %v3836
      %v3855 = vunpack.c.l.b16 %v3816
      %v3856 = vunpack.c.l.b16 %v3817
      %v3857 = vunpack.c.l.b16 %v3818
      %v3858 = vunpack.c.l.b16 %v3819
      %v3859 = vunpack.c.l.b16 %v3820
      %v3860 = vunpack.c.l.b16 %v3821
      %v3861 = vunpack.c.l.b16 %v3822
      %v3862 = vunpack.c.l.b16 %v3823
      %v3863 = vunpack.c.l.b16 %v3824
      %v3864 = vunpack.c.l.b16 %v3825
      %v3865 = vunpack.c.l.b16 %v3826
      %v3866 = vunpack.c.l.b16 %v3827
      %v3867 = vunpack.c.l.b16 %v3828
      %v3868 = vunpack.c.l.b16 %v3829
      %v3869 = vunpack.c.l.b16 %v3830
      %v3870 = vunpack.c.l.b16 %v3831
      %v3871 = vpack.c.b16 %v3856, %v3855
      %v3872 = vpack.c.b16 %v3858, %v3857
      %v3873 = vpack.c.b16 %v3860, %v3859
      %v3874 = vpack.c.b16 %v3862, %v3861
      %v3875 = vpack.c.b16 %v3864, %v3863
      %v3876 = vpack.c.b16 %v3866, %v3865
      %v3877 = vpack.c.b16 %v3868, %v3867
      %v3878 = vpack.c.b16 %v3870, %v3869
      %3887 = vmatprep.subr.bf16.mxu0 0
      %3888 = vmatpush1.bf16.msra.mxu0 %v3878
      %3889 = vmatprep.subr.bf16.mxu0 0
      %3890 = vmatpush1.bf16.msra.mxu0 %v3877
      %3891 = vmatprep.subr.bf16.mxu0 0
      %3892 = vmatpush1.bf16.msra.mxu0 %v3876
      %3893 = vmatprep.subr.bf16.mxu0 0
      %3894 = vmatpush1.bf16.msra.mxu0 %v3875
      %3895 = vmatprep.subr.bf16.mxu0 0
      %3896 = vmatpush1.bf16.msra.mxu0 %v3874
      %3897 = vmatprep.subr.bf16.mxu0 0
      %3898 = vmatpush1.bf16.msra.mxu0 %v3873
      %3899 = vmatprep.subr.bf16.mxu0 0
      %3900 = vmatpush1.bf16.msra.mxu0 %v3872
      %3901 = vmatprep.subr.bf16.mxu0 0
      %3902 = vmatpush1.bf16.msra.mxu0 %v3871
      %3903 = vmatprep.subr.bf16.mxu0 0
      %3904 = vmatpush2.bf16.msra.mxu0 0
      %3905 = vmatprep.subr.bf16.mxu0 0
      %3906 = vmatpush2.bf16.msra.mxu0 0
      %3907 = vmatprep.subr.bf16.mxu0 0
      %3908 = vmatpush2.bf16.msra.mxu0 0
      %3909 = vmatprep.subr.bf16.mxu0 0
      %3910 = vmatpush2.bf16.msra.mxu0 0
      %3911 = vmatprep.subr.bf16.mxu0 0
      %3912 = vmatpush2.bf16.msra.mxu0 0
      %3913 = vmatprep.subr.bf16.mxu0 0
      %3914 = vmatpush2.bf16.msra.mxu0 0
      %3915 = vmatprep.subr.bf16.mxu0 0
      %3916 = vmatpush2.bf16.msra.mxu0 0
      %3917 = vmatprep.subr.bf16.mxu0 0
      %3918 = vmatpush2.bf16.msra.mxu0 0
      %3919 = vmatprep.mubr.bf16.mxu0 0
      %3920 = vmatmul.mubr.bf16.gmra.mxu0 %v3815
      %v3921 = vpop.f32.mrf.mxu0
      %v3922 = vadd.f32 %v3837, %v3921
      %v3923 = vpop.f32.mrf.mxu0
      %v3924 = vpop.f32.mrf.mxu0
      %v3925 = vadd.f32 %v3837, %v3924
      %v3926 = vpop.f32.mrf.mxu0
      %3927 = vdwg.mxu0
      %v3928 = vadd.f32 %v3922, %v3925
      %v3929 = vrot.slane %v3928, 4
      %v3930 = vadd.f32 %v3928, %v3929
      %v3931 = vrot.slane %v3930, 2
      %v3932 = vadd.f32 %v3930, %v3931
      %v3933 = vrot.slane %v3932, 1
      %v3934 = vadd.f32 %v3932, %v3933
      %v3935 = vmul.f32 %v3934, 0.027777778
      %v3936 = vpack.c.bf16 %v3935, %v3935
      %v3937 = vld [vmem:[%s11] sm:$0xff]
      %v3938 = vld [vmem:[%s11 + $0x8] sm:$0xff]
      %v3939 = vld [vmem:[%s11 + $0x10] sm:$0xff]
      %v3940 = vld [vmem:[%s11 + $0x18] sm:$0xff]
      %v3941 = vld [vmem:[%s11 + $0x20] sm:$0xff]
      %v3942 = vld [vmem:[%s11 + $0x28] sm:$0xff]
      %v3943 = vld [vmem:[%s11 + $0x30] sm:$0xff]
      %v3944 = vld [vmem:[%s11 + $0x38] sm:$0xff]
      %v3945 = vld [vmem:[%s11 + $0x40] sm:$0xff]
      %v3946 = vld [vmem:[%s11 + $0x48] sm:$0xff]
      %v3947 = vld [vmem:[%s11 + $0x50] sm:$0xff]
      %v3948 = vld [vmem:[%s11 + $0x58] sm:$0xff]
      %v3949 = vld [vmem:[%s11 + $0x60] sm:$0xff]
      %v3950 = vld [vmem:[%s11 + $0x68] sm:$0xff]
      %v3951 = vld [vmem:[%s11 + $0x70] sm:$0xff]
      %v3952 = vld [vmem:[%s11 + $0x78] sm:$0xff]
      %v3953 = vld [vmem:[%s12] sm:$0x3]
      %v3970 = vunpack.c.l.b16 %v3937
      %v3971 = vunpack.c.h.b16 %v3937
      %v3972 = vunpack.c.l.b16 %v3938
      %v3973 = vunpack.c.h.b16 %v3938
      %v3974 = vunpack.c.l.b16 %v3939
      %v3975 = vunpack.c.h.b16 %v3939
      %v3976 = vunpack.c.l.b16 %v3940
      %v3977 = vunpack.c.h.b16 %v3940
      %v3978 = vunpack.c.l.b16 %v3941
      %v3979 = vunpack.c.h.b16 %v3941
      %v3980 = vunpack.c.l.b16 %v3942
      %v3981 = vunpack.c.h.b16 %v3942
      %v3982 = vunpack.c.l.b16 %v3943
      %v3983 = vunpack.c.h.b16 %v3943
      %v3984 = vunpack.c.l.b16 %v3944
      %v3985 = vunpack.c.h.b16 %v3944
      %v3986 = vunpack.c.l.b16 %v3945
      %v3987 = vunpack.c.h.b16 %v3945
      %v3988 = vunpack.c.l.b16 %v3946
      %v3989 = vunpack.c.h.b16 %v3946
      %v3990 = vunpack.c.l.b16 %v3947
      %v3991 = vunpack.c.h.b16 %v3947
      %v3992 = vunpack.c.l.b16 %v3948
      %v3993 = vunpack.c.h.b16 %v3948
      %v3994 = vunpack.c.l.b16 %v3949
      %v3995 = vunpack.c.h.b16 %v3949
      %v3996 = vunpack.c.l.b16 %v3950
      %v3997 = vunpack.c.h.b16 %v3950
      %v3998 = vunpack.c.l.b16 %v3951
      %v3999 = vunpack.c.h.b16 %v3951
      %v4000 = vunpack.c.l.b16 %v3952
      %v4001 = vunpack.c.h.b16 %v3952
      %v4002 = vpack.c.b16 %v3972, %v3970
      %v4003 = vpack.c.b16 %v3973, %v3971
      %v4004 = vpack.c.b16 %v3976, %v3974
      %v4005 = vpack.c.b16 %v3977, %v3975
      %v4006 = vpack.c.b16 %v3980, %v3978
      %v4007 = vpack.c.b16 %v3981, %v3979
      %v4008 = vpack.c.b16 %v3984, %v3982
      %v4009 = vpack.c.b16 %v3985, %v3983
      %v4010 = vpack.c.b16 %v3988, %v3986
      %v4011 = vpack.c.b16 %v3989, %v3987
      %v4012 = vpack.c.b16 %v3992, %v3990
      %v4013 = vpack.c.b16 %v3993, %v3991
      %v4014 = vpack.c.b16 %v3996, %v3994
      %v4015 = vpack.c.b16 %v3997, %v3995
      %v4016 = vpack.c.b16 %v4000, %v3998
      %v4017 = vpack.c.b16 %v4001, %v3999
      %v4035 = vlaneseq
      %v4036 = vshrl.u32 %v4035, 7
      %v4037 = vsub.s32 0, %v4036
      %v4038 = vrot.slane %v3953, %v4037
      %v4039 = vlaneseq
      %v4040 = vshrl.u32 %v4039, 7
      %v4041 = vsub.s32 1, %v4040
      %v4042 = vrot.slane %v3953, %v4041
      %4045 = vmatprep.subr.bf16.mxu0 %v4017
      %4046 = vmatpush1.bf16.msra.mxu0 %v4016
      %4047 = vmatprep.subr.bf16.mxu0 %v4015
      %4048 = vmatpush1.bf16.msra.mxu0 %v4014
      %4049 = vmatprep.subr.bf16.mxu0 %v4013
      %4050 = vmatpush1.bf16.msra.mxu0 %v4012
      %4051 = vmatprep.subr.bf16.mxu0 %v4011
      %4052 = vmatpush1.bf16.msra.mxu0 %v4010
      %4053 = vmatprep.subr.bf16.mxu0 %v4009
      %4054 = vmatpush1.bf16.msra.mxu0 %v4008
      %4055 = vmatprep.subr.bf16.mxu0 %v4007
      %4056 = vmatpush1.bf16.msra.mxu0 %v4006
      %4057 = vmatprep.subr.bf16.mxu0 %v4005
      %4058 = vmatpush1.bf16.msra.mxu0 %v4004
      %4059 = vmatprep.subr.bf16.mxu0 %v4003
      %4060 = vmatpush1.bf16.msra.mxu0 %v4002
      %4061 = vmatprep.subr.bf16.mxu0 0
      %4062 = vmatpush2.bf16.msra.mxu0 0
      %4063 = vmatprep.subr.bf16.mxu0 0
      %4064 = vmatpush2.bf16.msra.mxu0 0
      %4065 = vmatprep.subr.bf16.mxu0 0
      %4066 = vmatpush2.bf16.msra.mxu0 0
      %4067 = vmatprep.subr.bf16.mxu0 0
      %4068 = vmatpush2.bf16.msra.mxu0 0
      %4069 = vmatprep.subr.bf16.mxu0 0
      %4070 = vmatpush2.bf16.msra.mxu0 0
      %4071 = vmatprep.subr.bf16.mxu0 0
      %4072 = vmatpush2.bf16.msra.mxu0 0
      %4073 = vmatprep.subr.bf16.mxu0 0
      %4074 = vmatpush2.bf16.msra.mxu0 0
      %4075 = vmatprep.subr.bf16.mxu0 0
      %4076 = vmatpush2.bf16.msra.mxu0 0
      %4077 = vmatprep.mubr.bf16.mxu0 0
      %4078 = vmatmul.mubr.bf16.gmra.mxu0 %v3936
      %v4079 = vpop.f32.mrf.mxu0
      %v4080 = vadd.f32 %v4038, %v4079
      %v4081 = vpop.f32.mrf.mxu0
      %v4082 = vadd.f32 %v4042, %v4081
      %v4083 = vpop.f32.mrf.mxu0
      %v4084 = vpop.f32.mrf.mxu0
      %4085 = vdwg.mxu0
      %vm4086 = vcmask 1040384
      %v4087 = vsel %vm4086, %v4080, -inf
      %v4088 = vsel %vm4086, %v4082, -inf
      %v4089 = vmax.f32 %v4087, %v4088
      %4090 = vmax.xlane.f32.xlu0 %v4089
      %v4091 = vpop.xlane.xlu0 %4090
      %v4092 = vsub.f32 %v4080, %v4091
      %v4093 = vsub.f32 %v4082, %v4091
      %v4094 = vmul.f32 %v4092, 1.442695
      %v4095 = vpow.pop %v4094
      %v4096 = vmul.f32 %v4093, 1.442695
      %v4097 = vpow.pop %v4096
      %v4098 = vsel %vm4086, %v4095, 0.0
      %v4099 = vsel %vm4086, %v4097, 0.0
      %v4100 = vadd.f32 %v4098, %v4099
      %4101 = vadd.xlane.f32.xlu0 %v4100
      %v4102 = vpop.xlane.xlu0 %4101
      %v4103 = vrcp.pop %v4102
      %v4104 = vmul.f32 %v4095, %v4103
      %v4105 = vmul.f32 %v4097, %v4103
      %v4106 = vlaneseq
      %v4107 = vshrl.u32 %v4106, 7
      %v4108 = vsub.s32 0, %v4107
      %v4109 = vrot.slane %v4104, %v4108
      %v4110 = vlaneseq
      %v4111 = vshrl.u32 %v4110, 7
      %v4112 = vsub.s32 0, %v4111
      %v4113 = vrot.slane %v4105, %v4112
      %4114 = vst [vmem:[%s440] sm:$0xff] %v4109
      %4115 = vst [vmem:[%s440 + $0x8] sm:$0xff] %v4113
      %p4116 = scmp.lt.s32.totalorder %s24, 1
      %s4117 = scalar_select %p4116, %s24, 1
      %s4118 = smul.addr %s4117, 2
      %s4119 = smul.addr %s4118, 8
      %s4120 = scalar_lea.vmem %s13, %s4119
      // Predicated region
      $region73: #{my_module_forward.1} parent=71 // pred_check
        %p4121 = pneg %p320
      $region74: #{my_module_forward.1} parent=71 // pred_check_branch
        %4123 = sbr.rel (%p4121) target = $region76
      $region75: #{my_module_forward.1} parent=71 // pred_region
        _
      $region76: #{my_module_forward.1} parent=71 // pred_fallthru
        _
    $region72: #{my_module_forward.1} parent=5 // pred_fallthru
      _
    %p4124 = scmp.le.s32.totalorder 2, %s19
    // Predicated region
    $region77: #{my_module_forward.1} parent=5 // pred_check
      %p4125 = pneg %p4124
    $region78: #{my_module_forward.1} parent=5 // pred_check_branch
      %4127 = sbr.rel (%p4125) target = $region80
    $region79: #{my_module_forward.1} parent=5 // pred_region
      %s4128 = ssub.s32 %s19, 2
      // Predicated region
      $region81: #{my_module_forward.1} parent=79 // pred_check
        %p4129 = pneg %p326
      $region82: #{my_module_forward.1} parent=79 // pred_check_branch
        %4131 = sbr.rel (%p4129) target = $region84
      $region83: #{my_module_forward.1} parent=79 // pred_region
        %p4132 = scmp.lt.s32.totalorder %s25, 1
        %s4133 = scalar_select %p4132, %s25, 1
        %s4134 = smul.addr %s4133, 2
        %s4135 = smul.addr %s4134, 8
        %s4136 = scalar_lea.vmem %s13, %s4135
      $region84: #{my_module_forward.1} parent=79 // pred_fallthru
        _
    $region80: #{my_module_forward.1} parent=5 // pred_fallthru
      _
  $region6: #{my_module_forward.1} parent=0 // loop_footer
    %s23 = sadd.s32 1, %s19
  $region7: #{my_module_forward.1} parent=0 // loop_footer_branch
    %18 = sbr.rel target = $region3
  $region8: #{my_module_forward.1} parent=0 // loop_exit
    _

</llo_original>
